<compile_context>
chip_gen: v5e
topology: v5e:2x2
jax: 0.10.0
libtpu: 0.0.40
codegen_flags: <defaults>
</compile_context>

<pallas_src>
import functools

import jax
import jax.numpy as jnp
from jax import lax
from jax.experimental import pallas as pl
from jax.experimental.pallas import tpu as pltpu

# ----------------------------- configuration -------------------------------
FEAT = 64          # feature_extractor output channels
HIDDEN = 64        # hidden_dim
CONTEXT = 64       # context_dim
LEVELS = 3         # args.corr_levels
CORR_SCALES = (0.25, 1.0, 4.0)   # args.base_scales pyramid (synthetic)

PACKED_ORDER = (
    "feat_w1", "feat_b1", "feat_w2", "feat_b2",
    "ctx_w1", "ctx_b1", "ctx_w2", "ctx_b2",
    "wmef", "wmec", "bme",
    "w_i_all", "b_all", "w_m_all", "w_n_zr", "whn",
    "wf1", "bf1", "wf2", "bf2",
)


# ------------------------------- kernel ------------------------------------
def _rsf_kernel(xyz1_ref, xyz2_ref,
                feat_w1_ref, feat_b1_ref, feat_w2_ref, feat_b2_ref,
                ctx_w1_ref, ctx_b1_ref, ctx_w2_ref, ctx_b2_ref,
                wmef_ref, wmec_ref, bme_ref,
                w_i_all_ref, b_all_ref, w_m_all_ref, w_n_zr_ref, whn_ref,
                wf1_ref, bf1_ref, wf2_ref, bf2_ref,
                flow_ref,
                corr_scr, inp_scr,
                *, num_iters):
    """Full pt_RSF forward for one batch element (fused feature / corr / iterations)."""
    H = HIDDEN
    x1 = xyz1_ref[0]            # (N, 3) f32
    x2 = xyz2_ref[0]            # (N, 3) f32

    def mlp(x, w1_ref, b1_ref, w2_ref, b2_ref):
        h = jnp.dot(x, w1_ref[...], preferred_element_type=jnp.float32) + b1_ref[...]
        h = jnp.maximum(h, 0.0)
        return (jnp.dot(h.astype(jnp.bfloat16), w2_ref[...],
                        preferred_element_type=jnp.float32) + b2_ref[...])

    # feature extractor (stand-in) + all-pair correlation (corr_block.init_module)
    fmap1 = mlp(x1, feat_w1_ref, feat_b1_ref, feat_w2_ref, feat_b2_ref)   # (N, F)
    fmap2 = mlp(x2, feat_w1_ref, feat_b1_ref, feat_w2_ref, feat_b2_ref)   # (N, F)
    corr_scr[...] = lax.dot_general(
        fmap1.astype(jnp.bfloat16), fmap2.astype(jnp.bfloat16),
        (((1,), (1,)), ((), ())),
        preferred_element_type=jnp.float32) * (1.0 / float(FEAT) ** 0.5)

    # ||x2_j||^2 as a single lane-dense (1, N) row (the per-row ||c2_i||^2 term
    # cancels inside the row softmax); x2 never changes -> compute once.
    x2sq = lax.dot_general(jnp.ones((1, 3), jnp.float32), x2 * x2,
                           (((1,), (1,)), ((), ())),
                           preferred_element_type=jnp.float32)            # (1, N)

    # context extractor (stand-in): kept 128-lane dense, split inside the kernel
    fct1 = mlp(x1, ctx_w1_ref, ctx_b1_ref, ctx_w2_ref, ctx_b2_ref)        # (N, 2H)
    net0 = jnp.tanh(fct1[:, :H])                                          # (N, H)
    inp = jnp.maximum(fct1[:, H:], 0.0)                                   # (N, H)

    # inp is constant across iterations: project once, park in VMEM scratch so it
    # does not occupy vregs across the loop.
    inp_scr[...] = (jnp.dot(inp.astype(jnp.bfloat16), w_i_all_ref[...],
                            preferred_element_type=jnp.float32) + b_all_ref[...])  # (N, 3H)

    def body(it, carry):
        net, c2 = carry                           # (N, H) f32, (N, 3) f32
        c1 = xyz1_ref[0]                          # cheap VMEM re-read (frees vregs)
        flow = c2 - c1
        corr = corr_scr[...]

        # pairwise (squared) distance surrogate via one small MXU matmul per iter
        dots = lax.dot_general(c2, xyz2_ref[0], (((1,), (1,)), ((), ())),
                               preferred_element_type=jnp.float32)        # (N, N)
        dist2 = x2sq - 2.0 * dots
        # one stabilization shared by every scale:
        #   softmax(-dist2/s) == softmax(-(dist2 - min_row)/s)
        d = dist2 - jnp.min(dist2, axis=-1, keepdims=True)                # (N, N) >= 0

        # motion encoder: flow + multi-scale softmax-weighted correlation lookup
        mf = (jnp.dot(flow, wmef_ref[...], preferred_element_type=jnp.float32)
              + bme_ref[...])
        for l, s in enumerate(CORR_SCALES):
            e = jnp.exp(d * (-1.0 / s))
            num = jnp.sum(e * corr, axis=-1, keepdims=True)               # (N, 1)
            den = jnp.sum(e, axis=-1, keepdims=True)                      # (N, 1)
            cf = num * pl.reciprocal(den, approx=True)
            mf = mf + cf * wmec_ref[l:l + 1, :]
        mf = jnp.maximum(mf, 0.0)                                         # (N, H)

        # GRU (ConvGRU without graph aggregation), packed wide matmuls
        g = inp_scr[...] + jnp.dot(mf.astype(jnp.bfloat16), w_m_all_ref[...],
                                   preferred_element_type=jnp.float32)    # (N, 3H)
        zr = jnp.dot(net.astype(jnp.bfloat16), w_n_zr_ref[...],
                     preferred_element_type=jnp.float32)                  # (N, 2H)
        z = jax.nn.sigmoid(g[:, :H] + zr[:, :H])
        r = jax.nn.sigmoid(g[:, H:2 * H] + zr[:, H:])
        h = jnp.tanh(g[:, 2 * H:]
                     + jnp.dot((r * net).astype(jnp.bfloat16), whn_ref[...],
                               preferred_element_type=jnp.float32))
        net_new = (1.0 - z) * net + z * h

        # flow head
        fh = jnp.maximum(
            jnp.dot(net_new.astype(jnp.bfloat16), wf1_ref[...],
                    preferred_element_type=jnp.float32) + bf1_ref[...], 0.0)
        delta = (jnp.dot(fh, wf2_ref[...], preferred_element_type=jnp.float32)
                 + bf2_ref[...])                                          # (N, 3)

        c2_new = c2 + delta                       # coords2 = coords2 + delta_flow
        flow_ref[0, pl.ds(it, 1), :, :] = (c2_new - c1)[None]             # prediction
        return net_new, c2_new

    # coords2.detach() is a no-op in this forward-only kernel; coords2 init = xyz1.
    lax.fori_loop(0, num_iters, body, (net0, x1))


# ----------------------------- wrappers --------------------------------------
def _batch_spec(shape):
    nd = len(shape)
    return pl.BlockSpec((1,) + tuple(shape[1:]),
                        lambda b, _nd=nd: (b,) + (0,) * (_nd - 1))


def _full_spec(shape):
    nd = len(shape)
    return pl.BlockSpec(tuple(shape), lambda b, _nd=nd: (0,) * _nd)


def pt_rsf_forward(xyz1, xyz2, packed, num_iters=12):
    """Full pt_RSF forward in a single fused pallas_call; returns per-iter flows."""
    B, N, _ = xyz1.shape
    weights = [packed[k] for k in PACKED_ORDER]
    flow = pl.pallas_call(
        functools.partial(_rsf_kernel, num_iters=num_iters),
        out_shape=jax.ShapeDtypeStruct((B, num_iters, N, 3), jnp.float32),
        grid=(B,),
        in_specs=([_batch_spec(xyz1.shape), _batch_spec(xyz2.shape)]
                  + [_full_spec(w.shape) for w in weights]),
        out_specs=pl.BlockSpec((1, num_iters, N, 3), lambda b: (b, 0, 0, 0)),
        scratch_shapes=[pltpu.VMEM((N, N), jnp.float32),            # correlation matrix
                        pltpu.VMEM((N, 3 * HIDDEN), jnp.float32)],  # hoisted inp projection
        compiler_params=pltpu.CompilerParams(
            dimension_semantics=("parallel",)),              # v7x: one batch per TC
    )(xyz1, xyz2, *weights)
    return [flow[:, i] for i in range(num_iters)]


# ----------------------------- parameters ------------------------------------
def init_params(key):
    ks = jax.random.split(key, 20)

    def w(k, shape, scale=0.1):
        return (scale * jax.random.normal(k, shape)).astype(jnp.float32)

    z = lambda *s: jnp.zeros(s, jnp.float32)
    p = {}
    # feature_extractor (stand-in)
    p["feat_w1"] = w(ks[0], (3, FEAT));  p["feat_b1"] = z(1, FEAT)
    p["feat_w2"] = w(ks[1], (FEAT, FEAT)); p["feat_b2"] = z(1, FEAT)
    # context_extractor (stand-in; outputs hidden_dim + context_dim channels)
    p["ctx_w1"] = w(ks[2], (3, FEAT));  p["ctx_b1"] = z(1, FEAT)
    p["ctx_w2"] = w(ks[3], (FEAT, HIDDEN + CONTEXT)); p["ctx_b2"] = z(1, HIDDEN + CONTEXT)
    # update_block: motion encoder
    p["wmef"] = w(ks[4], (3, HIDDEN)); p["wmec"] = w(ks[5], (LEVELS, HIDDEN)); p["bme"] = z(1, HIDDEN)
    # update_block: GRU
    p["wzn"] = w(ks[6], (HIDDEN, HIDDEN)); p["wzi"] = w(ks[7], (CONTEXT, HIDDEN))
    p["wzm"] = w(ks[8], (HIDDEN, HIDDEN)); p["bz"] = z(1, HIDDEN)
    p["wrn"] = w(ks[9], (HIDDEN, HIDDEN)); p["wri"] = w(ks[10], (CONTEXT, HIDDEN))
    p["wrm"] = w(ks[11], (HIDDEN, HIDDEN)); p["br"] = z(1, HIDDEN)
    p["whn"] = w(ks[12], (HIDDEN, HIDDEN)); p["whi"] = w(ks[13], (CONTEXT, HIDDEN))
    p["whm"] = w(ks[14], (HIDDEN, HIDDEN)); p["bh"] = z(1, HIDDEN)
    # update_block: flow head
    p["wf1"] = w(ks[15], (HIDDEN, HIDDEN)); p["bf1"] = z(1, HIDDEN)
    p["wf2"] = w(ks[16], (HIDDEN, 3), scale=0.01); p["bf2"] = z(1, 3)
    return p


def pack_params(p):
    """Pack GRU weights into wide slabs; cast large matmul weights to bf16."""
    bf = jnp.bfloat16
    return {
        "feat_w1": p["feat_w1"], "feat_b1": p["feat_b1"],
        "feat_w2": p["feat_w2"].astype(bf), "feat_b2": p["feat_b2"],
        "ctx_w1": p["ctx_w1"], "ctx_b1": p["ctx_b1"],
        "ctx_w2": p["ctx_w2"].astype(bf), "ctx_b2": p["ctx_b2"],
        "wmef": p["wmef"], "wmec": p["wmec"], "bme": p["bme"],
        # columns: [z | r | h]
        "w_i_all": jnp.concatenate([p["wzi"], p["wri"], p["whi"]], axis=1).astype(bf),
        "b_all": jnp.concatenate([p["bz"], p["br"], p["bh"]], axis=1),
        "w_m_all": jnp.concatenate([p["wzm"], p["wrm"], p["whm"]], axis=1).astype(bf),
        # columns: [z | r]  (net's h-path goes through whn with r*net)
        "w_n_zr": jnp.concatenate([p["wzn"], p["wrn"]], axis=1).astype(bf),
        "whn": p["whn"].astype(bf),
        "wf1": p["wf1"].astype(bf), "bf1": p["bf1"],
        "wf2": p["wf2"], "bf2": p["bf2"],
    }


# --------------------------------- main ---------------------------------------
if __name__ == "__main__":
    B, N = 2, 128                                          # args.max_points = 128
    key = jax.random.PRNGKey(0)
    k1, k2, kp = jax.random.split(key, 3)
    xyz1 = jax.random.normal(k1, (B, N, 3), jnp.float32)
    xyz2 = xyz1 + 0.05 * jax.random.normal(k2, (B, N, 3), jnp.float32)
    packed = pack_params(init_params(kp))

    fwd = jax.jit(functools.partial(pt_rsf_forward, packed=packed, num_iters=12))
    preds = fwd(xyz1, xyz2)
    last = jax.block_until_ready(preds[-1])
    assert last.shape == (B, N, 3) and last.dtype == jnp.float32
    assert bool(jnp.all(jnp.isfinite(last)))
    print("KERNEL_OK")
</pallas_src>

<mosaic_0001>
module attributes {stable_mosaic.version = 11 : i64} {
  func.func @_rsf_kernel(%arg0: i32, %arg1: memref<1x128x3xf32, #tpu.memory_space<vmem>>, %arg2: memref<1x128x3xf32, #tpu.memory_space<vmem>>, %arg3: memref<3x64xf32, #tpu.memory_space<vmem>>, %arg4: memref<1x64xf32, #tpu.memory_space<vmem>>, %arg5: memref<64x64xbf16, #tpu.memory_space<vmem>>, %arg6: memref<1x64xf32, #tpu.memory_space<vmem>>, %arg7: memref<3x64xf32, #tpu.memory_space<vmem>>, %arg8: memref<1x64xf32, #tpu.memory_space<vmem>>, %arg9: memref<64x128xbf16, #tpu.memory_space<vmem>>, %arg10: memref<1x128xf32, #tpu.memory_space<vmem>>, %arg11: memref<3x64xf32, #tpu.memory_space<vmem>>, %arg12: memref<3x64xf32, #tpu.memory_space<vmem>>, %arg13: memref<1x64xf32, #tpu.memory_space<vmem>>, %arg14: memref<64x192xbf16, #tpu.memory_space<vmem>>, %arg15: memref<1x192xf32, #tpu.memory_space<vmem>>, %arg16: memref<64x192xbf16, #tpu.memory_space<vmem>>, %arg17: memref<64x128xbf16, #tpu.memory_space<vmem>>, %arg18: memref<64x64xbf16, #tpu.memory_space<vmem>>, %arg19: memref<64x64xbf16, #tpu.memory_space<vmem>>, %arg20: memref<1x64xf32, #tpu.memory_space<vmem>>, %arg21: memref<64x3xf32, #tpu.memory_space<vmem>>, %arg22: memref<1x3xf32, #tpu.memory_space<vmem>>, %arg23: memref<1x12x128x3xf32, #tpu.memory_space<vmem>>, %arg24: memref<128x128xf32, #tpu.memory_space<vmem>>, %arg25: memref<128x192xf32, #tpu.memory_space<vmem>>) attributes {dimension_semantics = [#tpu.dimension_semantics<parallel>], iteration_bounds = array<i64: 2>, scalar_prefetch = 0 : i64, scratch_operands = 2 : i64, tpu.core_type = #tpu.core_type<tc>, window_params = [{transform_indices = @transform_0, window_bounds = array<i64: 1, 128, 3>}, {transform_indices = @transform_1, window_bounds = array<i64: 1, 128, 3>}, {pipeline_mode = #tpu.pipeline_mode<synchronous>, transform_indices = @transform_2, window_bounds = array<i64: 3, 64>}, {pipeline_mode = #tpu.pipeline_mode<synchronous>, transform_indices = @transform_3, window_bounds = array<i64: 1, 64>}, {pipeline_mode = #tpu.pipeline_mode<synchronous>, transform_indices = @transform_4, window_bounds = array<i64: 64, 64>}, {pipeline_mode = #tpu.pipeline_mode<synchronous>, transform_indices = @transform_5, window_bounds = array<i64: 1, 64>}, {pipeline_mode = #tpu.pipeline_mode<synchronous>, transform_indices = @transform_6, window_bounds = array<i64: 3, 64>}, {pipeline_mode = #tpu.pipeline_mode<synchronous>, transform_indices = @transform_7, window_bounds = array<i64: 1, 64>}, {pipeline_mode = #tpu.pipeline_mode<synchronous>, transform_indices = @transform_8, window_bounds = array<i64: 64, 128>}, {pipeline_mode = #tpu.pipeline_mode<synchronous>, transform_indices = @transform_9, window_bounds = array<i64: 1, 128>}, {pipeline_mode = #tpu.pipeline_mode<synchronous>, transform_indices = @transform_10, window_bounds = array<i64: 3, 64>}, {pipeline_mode = #tpu.pipeline_mode<synchronous>, transform_indices = @transform_11, window_bounds = array<i64: 3, 64>}, {pipeline_mode = #tpu.pipeline_mode<synchronous>, transform_indices = @transform_12, window_bounds = array<i64: 1, 64>}, {pipeline_mode = #tpu.pipeline_mode<synchronous>, transform_indices = @transform_13, window_bounds = array<i64: 64, 192>}, {pipeline_mode = #tpu.pipeline_mode<synchronous>, transform_indices = @transform_14, window_bounds = array<i64: 1, 192>}, {pipeline_mode = #tpu.pipeline_mode<synchronous>, transform_indices = @transform_15, window_bounds = array<i64: 64, 192>}, {pipeline_mode = #tpu.pipeline_mode<synchronous>, transform_indices = @transform_16, window_bounds = array<i64: 64, 128>}, {pipeline_mode = #tpu.pipeline_mode<synchronous>, transform_indices = @transform_17, window_bounds = array<i64: 64, 64>}, {pipeline_mode = #tpu.pipeline_mode<synchronous>, transform_indices = @transform_18, window_bounds = array<i64: 64, 64>}, {pipeline_mode = #tpu.pipeline_mode<synchronous>, transform_indices = @transform_19, window_bounds = array<i64: 1, 64>}, {pipeline_mode = #tpu.pipeline_mode<synchronous>, transform_indices = @transform_20, window_bounds = array<i64: 64, 3>}, {pipeline_mode = #tpu.pipeline_mode<synchronous>, transform_indices = @transform_21, window_bounds = array<i64: 1, 3>}, {transform_indices = @transform_22, window_bounds = array<i64: 1, 12, 128, 3>}]} {
    %c0 = arith.constant 0 : index
    %c0_0 = arith.constant 0 : index
    %c0_1 = arith.constant 0 : index
    %0 = vector.load %arg1[%c0, %c0_0, %c0_1] : memref<1x128x3xf32, #tpu.memory_space<vmem>>, vector<1x128x3xf32>
    %1 = vector.shape_cast %0 : vector<1x128x3xf32> to vector<128x3xf32>
    %c0_2 = arith.constant 0 : index
    %c0_3 = arith.constant 0 : index
    %c0_4 = arith.constant 0 : index
    %2 = vector.load %arg2[%c0_2, %c0_3, %c0_4] : memref<1x128x3xf32, #tpu.memory_space<vmem>>, vector<1x128x3xf32>
    %3 = vector.shape_cast %2 : vector<1x128x3xf32> to vector<128x3xf32>
    %c0_5 = arith.constant 0 : index
    %c0_6 = arith.constant 0 : index
    %4 = vector.load %arg3[%c0_5, %c0_6] : memref<3x64xf32, #tpu.memory_space<vmem>>, vector<3x64xf32>
    %cst = arith.constant dense<0.000000e+00> : vector<128x64xf32>
    %5 = tpu.matmul %1, %4, %cst {dimension_numbers = #tpu.dot_dimension_numbers<[1], [0], [0], [1], [0, 0, 1, 1], [], []>} : vector<128x3xf32>, vector<3x64xf32>, vector<128x64xf32> -> vector<128x64xf32>
    %c0_7 = arith.constant 0 : index
    %c0_8 = arith.constant 0 : index
    %6 = vector.load %arg4[%c0_7, %c0_8] : memref<1x64xf32, #tpu.memory_space<vmem>>, vector<1x64xf32>
    %7 = vector.broadcast %6 : vector<1x64xf32> to vector<128x64xf32>
    %8 = arith.addf %5, %7 : vector<128x64xf32>
    %cst_9 = arith.constant 0.000000e+00 : f32
    %9 = vector.broadcast %cst_9 : f32 to vector<128x64xf32>
    %10 = arith.maximumf %8, %9 : vector<128x64xf32>
    %11 = arith.truncf %10 : vector<128x64xf32> to vector<128x64xbf16>
    %c0_10 = arith.constant 0 : index
    %c0_11 = arith.constant 0 : index
    %12 = vector.load %arg5[%c0_10, %c0_11] : memref<64x64xbf16, #tpu.memory_space<vmem>>, vector<64x64xbf16>
    %cst_12 = arith.constant dense<0.000000e+00> : vector<128x64xf32>
    %13 = tpu.matmul %11, %12, %cst_12 {dimension_numbers = #tpu.dot_dimension_numbers<[1], [0], [0], [1], [0, 0, 1, 1], [], []>} : vector<128x64xbf16>, vector<64x64xbf16>, vector<128x64xf32> -> vector<128x64xf32>
    %c0_13 = arith.constant 0 : index
    %c0_14 = arith.constant 0 : index
    %14 = vector.load %arg6[%c0_13, %c0_14] : memref<1x64xf32, #tpu.memory_space<vmem>>, vector<1x64xf32>
    %15 = vector.broadcast %14 : vector<1x64xf32> to vector<128x64xf32>
    %16 = arith.addf %13, %15 : vector<128x64xf32>
    %c0_15 = arith.constant 0 : index
    %c0_16 = arith.constant 0 : index
    %17 = vector.load %arg3[%c0_15, %c0_16] : memref<3x64xf32, #tpu.memory_space<vmem>>, vector<3x64xf32>
    %cst_17 = arith.constant dense<0.000000e+00> : vector<128x64xf32>
    %18 = tpu.matmul %3, %17, %cst_17 {dimension_numbers = #tpu.dot_dimension_numbers<[1], [0], [0], [1], [0, 0, 1, 1], [], []>} : vector<128x3xf32>, vector<3x64xf32>, vector<128x64xf32> -> vector<128x64xf32>
    %c0_18 = arith.constant 0 : index
    %c0_19 = arith.constant 0 : index
    %19 = vector.load %arg4[%c0_18, %c0_19] : memref<1x64xf32, #tpu.memory_space<vmem>>, vector<1x64xf32>
    %20 = vector.broadcast %19 : vector<1x64xf32> to vector<128x64xf32>
    %21 = arith.addf %18, %20 : vector<128x64xf32>
    %cst_20 = arith.constant 0.000000e+00 : f32
    %22 = vector.broadcast %cst_20 : f32 to vector<128x64xf32>
    %23 = arith.maximumf %21, %22 : vector<128x64xf32>
    %24 = arith.truncf %23 : vector<128x64xf32> to vector<128x64xbf16>
    %c0_21 = arith.constant 0 : index
    %c0_22 = arith.constant 0 : index
    %25 = vector.load %arg5[%c0_21, %c0_22] : memref<64x64xbf16, #tpu.memory_space<vmem>>, vector<64x64xbf16>
    %cst_23 = arith.constant dense<0.000000e+00> : vector<128x64xf32>
    %26 = tpu.matmul %24, %25, %cst_23 {dimension_numbers = #tpu.dot_dimension_numbers<[1], [0], [0], [1], [0, 0, 1, 1], [], []>} : vector<128x64xbf16>, vector<64x64xbf16>, vector<128x64xf32> -> vector<128x64xf32>
    %c0_24 = arith.constant 0 : index
    %c0_25 = arith.constant 0 : index
    %27 = vector.load %arg6[%c0_24, %c0_25] : memref<1x64xf32, #tpu.memory_space<vmem>>, vector<1x64xf32>
    %28 = vector.broadcast %27 : vector<1x64xf32> to vector<128x64xf32>
    %29 = arith.addf %26, %28 : vector<128x64xf32>
    %30 = arith.truncf %16 : vector<128x64xf32> to vector<128x64xbf16>
    %31 = arith.truncf %29 : vector<128x64xf32> to vector<128x64xbf16>
    %cst_26 = arith.constant dense<0.000000e+00> : vector<128x128xf32>
    %32 = tpu.matmul %30, %31, %cst_26 {dimension_numbers = #tpu.dot_dimension_numbers<[1], [1], [0], [0], [0, 0, 1, 0], [], []>} : vector<128x64xbf16>, vector<128x64xbf16>, vector<128x128xf32> -> vector<128x128xf32>
    %cst_27 = arith.constant 1.250000e-01 : f32
    %33 = vector.broadcast %cst_27 : f32 to vector<128x128xf32>
    %34 = arith.mulf %32, %33 : vector<128x128xf32>
    %c0_28 = arith.constant 0 : index
    %c0_29 = arith.constant 0 : index
    %35 = vector.load %arg24[%c0_28, %c0_29] : memref<128x128xf32, #tpu.memory_space<vmem>>, vector<128x128xf32>
    tpu.vector_store %arg24[%c0_28, %c0_29], %34 {strides = array<i32>} : memref<128x128xf32, #tpu.memory_space<vmem>>, vector<128x128xf32>,
    %cst_30 = arith.constant 1.000000e+00 : f32
    %36 = vector.broadcast %cst_30 : f32 to vector<1x3xf32>
    %37 = arith.mulf %3, %3 : vector<128x3xf32>
    %cst_31 = arith.constant dense<0.000000e+00> : vector<1x128xf32>
    %38 = tpu.matmul %36, %37, %cst_31 {dimension_numbers = #tpu.dot_dimension_numbers<[1], [1], [0], [0], [0, 0, 1, 0], [], []>} : vector<1x3xf32>, vector<128x3xf32>, vector<1x128xf32> -> vector<1x128xf32>
    %c0_32 = arith.constant 0 : index
    %c0_33 = arith.constant 0 : index
    %39 = vector.load %arg7[%c0_32, %c0_33] : memref<3x64xf32, #tpu.memory_space<vmem>>, vector<3x64xf32>
    %cst_34 = arith.constant dense<0.000000e+00> : vector<128x64xf32>
    %40 = tpu.matmul %1, %39, %cst_34 {dimension_numbers = #tpu.dot_dimension_numbers<[1], [0], [0], [1], [0, 0, 1, 1], [], []>} : vector<128x3xf32>, vector<3x64xf32>, vector<128x64xf32> -> vector<128x64xf32>
    %c0_35 = arith.constant 0 : index
    %c0_36 = arith.constant 0 : index
    %41 = vector.load %arg8[%c0_35, %c0_36] : memref<1x64xf32, #tpu.memory_space<vmem>>, vector<1x64xf32>
    %42 = vector.broadcast %41 : vector<1x64xf32> to vector<128x64xf32>
    %43 = arith.addf %40, %42 : vector<128x64xf32>
    %cst_37 = arith.constant 0.000000e+00 : f32
    %44 = vector.broadcast %cst_37 : f32 to vector<128x64xf32>
    %45 = arith.maximumf %43, %44 : vector<128x64xf32>
    %46 = arith.truncf %45 : vector<128x64xf32> to vector<128x64xbf16>
    %c0_38 = arith.constant 0 : index
    %c0_39 = arith.constant 0 : index
    %47 = vector.load %arg9[%c0_38, %c0_39] : memref<64x128xbf16, #tpu.memory_space<vmem>>, vector<64x128xbf16>
    %cst_40 = arith.constant dense<0.000000e+00> : vector<128x128xf32>
    %48 = tpu.matmul %46, %47, %cst_40 {dimension_numbers = #tpu.dot_dimension_numbers<[1], [0], [0], [1], [0, 0, 1, 1], [], []>} : vector<128x64xbf16>, vector<64x128xbf16>, vector<128x128xf32> -> vector<128x128xf32>
    %c0_41 = arith.constant 0 : index
    %c0_42 = arith.constant 0 : index
    %49 = vector.load %arg10[%c0_41, %c0_42] : memref<1x128xf32, #tpu.memory_space<vmem>>, vector<1x128xf32>
    %50 = vector.broadcast %49 : vector<1x128xf32> to vector<128x128xf32>
    %51 = arith.addf %48, %50 : vector<128x128xf32>
    %52 = vector.extract_strided_slice %51 {offsets = [0, 0], sizes = [128, 64], strides = [1, 1]} : vector<128x128xf32> to vector<128x64xf32>
    %53 = math.tanh %52 : vector<128x64xf32>
    %54 = vector.extract_strided_slice %51 {offsets = [0, 64], sizes = [128, 64], strides = [1, 1]} : vector<128x128xf32> to vector<128x64xf32>
    %cst_43 = arith.constant 0.000000e+00 : f32
    %55 = vector.broadcast %cst_43 : f32 to vector<128x64xf32>
    %56 = arith.maximumf %54, %55 : vector<128x64xf32>
    %57 = arith.truncf %56 : vector<128x64xf32> to vector<128x64xbf16>
    %c0_44 = arith.constant 0 : index
    %c0_45 = arith.constant 0 : index
    %58 = vector.load %arg14[%c0_44, %c0_45] : memref<64x192xbf16, #tpu.memory_space<vmem>>, vector<64x192xbf16>
    %cst_46 = arith.constant dense<0.000000e+00> : vector<128x192xf32>
    %59 = tpu.matmul %57, %58, %cst_46 {dimension_numbers = #tpu.dot_dimension_numbers<[1], [0], [0], [1], [0, 0, 1, 1], [], []>} : vector<128x64xbf16>, vector<64x192xbf16>, vector<128x192xf32> -> vector<128x192xf32>
    %c0_47 = arith.constant 0 : index
    %c0_48 = arith.constant 0 : index
    %60 = vector.load %arg15[%c0_47, %c0_48] : memref<1x192xf32, #tpu.memory_space<vmem>>, vector<1x192xf32>
    %61 = vector.broadcast %60 : vector<1x192xf32> to vector<128x192xf32>
    %62 = arith.addf %59, %61 : vector<128x192xf32>
    %c0_49 = arith.constant 0 : index
    %c0_50 = arith.constant 0 : index
    %63 = vector.load %arg25[%c0_49, %c0_50] : memref<128x192xf32, #tpu.memory_space<vmem>>, vector<128x192xf32>
    tpu.vector_store %arg25[%c0_49, %c0_50], %62 {strides = array<i32>} : memref<128x192xf32, #tpu.memory_space<vmem>>, vector<128x192xf32>,
    %c0_i32 = arith.constant 0 : i32
    %c12_i32 = arith.constant 12 : i32
    %64 = arith.addi %c0_i32, %c12_i32 : i32
    %c1_i32 = arith.constant 1 : i32
    %65:2 = scf.for %arg26 = %c0_i32 to %64 step %c1_i32 iter_args(%arg27 = %53, %arg28 = %1) -> (vector<128x64xf32>, vector<128x3xf32>)  : i32 {
      %c0_52 = arith.constant 0 : index
      %c0_53 = arith.constant 0 : index
      %c0_54 = arith.constant 0 : index
      %66 = vector.load %arg1[%c0_52, %c0_53, %c0_54] : memref<1x128x3xf32, #tpu.memory_space<vmem>>, vector<1x128x3xf32>
      %67 = vector.shape_cast %66 : vector<1x128x3xf32> to vector<128x3xf32>
      %68 = arith.subf %arg28, %67 : vector<128x3xf32>
      %c0_55 = arith.constant 0 : index
      %c0_56 = arith.constant 0 : index
      %69 = vector.load %arg24[%c0_55, %c0_56] : memref<128x128xf32, #tpu.memory_space<vmem>>, vector<128x128xf32>
      %c0_57 = arith.constant 0 : index
      %c0_58 = arith.constant 0 : index
      %c0_59 = arith.constant 0 : index
      %70 = vector.load %arg2[%c0_57, %c0_58, %c0_59] : memref<1x128x3xf32, #tpu.memory_space<vmem>>, vector<1x128x3xf32>
      %71 = vector.shape_cast %70 : vector<1x128x3xf32> to vector<128x3xf32>
      %cst_60 = arith.constant dense<0.000000e+00> : vector<128x128xf32>
      %72 = tpu.matmul %arg28, %71, %cst_60 {dimension_numbers = #tpu.dot_dimension_numbers<[1], [1], [0], [0], [0, 0, 1, 0], [], []>} : vector<128x3xf32>, vector<128x3xf32>, vector<128x128xf32> -> vector<128x128xf32>
      %cst_61 = arith.constant 2.000000e+00 : f32
      %73 = vector.broadcast %cst_61 : f32 to vector<128x128xf32>
      %74 = arith.mulf %73, %72 : vector<128x128xf32>
      %75 = vector.broadcast %38 : vector<1x128xf32> to vector<128x128xf32>
      %76 = arith.subf %75, %74 : vector<128x128xf32>
      %cst_62 = arith.constant dense<0x7F800000> : vector<128xf32>
      %77 = vector.multi_reduction <minimumf>, %76, %cst_62 [1] : vector<128x128xf32> to vector<128xf32>
      %78 = vector.shape_cast %77 : vector<128xf32> to vector<128x1xf32>
      %79 = vector.broadcast %78 : vector<128x1xf32> to vector<128x128xf32>
      %80 = arith.subf %76, %79 : vector<128x128xf32>
      %c0_63 = arith.constant 0 : index
      %c0_64 = arith.constant 0 : index
      %81 = vector.load %arg11[%c0_63, %c0_64] : memref<3x64xf32, #tpu.memory_space<vmem>>, vector<3x64xf32>
      %cst_65 = arith.constant dense<0.000000e+00> : vector<128x64xf32>
      %82 = tpu.matmul %68, %81, %cst_65 {dimension_numbers = #tpu.dot_dimension_numbers<[1], [0], [0], [1], [0, 0, 1, 1], [], []>} : vector<128x3xf32>, vector<3x64xf32>, vector<128x64xf32> -> vector<128x64xf32>
      %c0_66 = arith.constant 0 : index
      %c0_67 = arith.constant 0 : index
      %83 = vector.load %arg13[%c0_66, %c0_67] : memref<1x64xf32, #tpu.memory_space<vmem>>, vector<1x64xf32>
      %84 = vector.broadcast %83 : vector<1x64xf32> to vector<128x64xf32>
      %85 = arith.addf %82, %84 : vector<128x64xf32>
      %cst_68 = arith.constant -4.000000e+00 : f32
      %86 = vector.broadcast %cst_68 : f32 to vector<128x128xf32>
      %87 = arith.mulf %80, %86 : vector<128x128xf32>
      %88 = math.exp %87 : vector<128x128xf32>
      %89 = arith.mulf %88, %69 : vector<128x128xf32>
      %cst_69 = arith.constant dense<0.000000e+00> : vector<128xf32>
      %90 = vector.multi_reduction <add>, %89, %cst_69 [1] : vector<128x128xf32> to vector<128xf32>
      %91 = vector.shape_cast %90 : vector<128xf32> to vector<128x1xf32>
      %cst_70 = arith.constant dense<0.000000e+00> : vector<128xf32>
      %92 = vector.multi_reduction <add>, %88, %cst_70 [1] : vector<128x128xf32> to vector<128xf32>
      %93 = vector.shape_cast %92 : vector<128xf32> to vector<128x1xf32>
      %94 = tpu.reciprocal %93 {approx = true} : vector<128x1xf32> -> vector<128x1xf32>
      %95 = arith.mulf %91, %94 : vector<128x1xf32>
      %c0_71 = arith.constant 0 : index
      %c0_72 = arith.constant 0 : index
      %96 = vector.load %arg12[%c0_71, %c0_72] : memref<3x64xf32, #tpu.memory_space<vmem>>, vector<1x64xf32>
      %97 = vector.broadcast %95 : vector<128x1xf32> to vector<128x64xf32>
      %98 = vector.broadcast %96 : vector<1x64xf32> to vector<128x64xf32>
      %99 = arith.mulf %97, %98 : vector<128x64xf32>
      %100 = arith.addf %85, %99 : vector<128x64xf32>
      %cst_73 = arith.constant -1.000000e+00 : f32
      %101 = vector.broadcast %cst_73 : f32 to vector<128x128xf32>
      %102 = arith.mulf %80, %101 : vector<128x128xf32>
      %103 = math.exp %102 : vector<128x128xf32>
      %104 = arith.mulf %103, %69 : vector<128x128xf32>
      %cst_74 = arith.constant dense<0.000000e+00> : vector<128xf32>
      %105 = vector.multi_reduction <add>, %104, %cst_74 [1] : vector<128x128xf32> to vector<128xf32>
      %106 = vector.shape_cast %105 : vector<128xf32> to vector<128x1xf32>
      %cst_75 = arith.constant dense<0.000000e+00> : vector<128xf32>
      %107 = vector.multi_reduction <add>, %103, %cst_75 [1] : vector<128x128xf32> to vector<128xf32>
      %108 = vector.shape_cast %107 : vector<128xf32> to vector<128x1xf32>
      %109 = tpu.reciprocal %108 {approx = true} : vector<128x1xf32> -> vector<128x1xf32>
      %110 = arith.mulf %106, %109 : vector<128x1xf32>
      %c1 = arith.constant 1 : index
      %c0_76 = arith.constant 0 : index
      %111 = vector.load %arg12[%c1, %c0_76] : memref<3x64xf32, #tpu.memory_space<vmem>>, vector<1x64xf32>
      %112 = vector.broadcast %110 : vector<128x1xf32> to vector<128x64xf32>
      %113 = vector.broadcast %111 : vector<1x64xf32> to vector<128x64xf32>
      %114 = arith.mulf %112, %113 : vector<128x64xf32>
      %115 = arith.addf %100, %114 : vector<128x64xf32>
      %cst_77 = arith.constant -2.500000e-01 : f32
      %116 = vector.broadcast %cst_77 : f32 to vector<128x128xf32>
      %117 = arith.mulf %80, %116 : vector<128x128xf32>
      %118 = math.exp %117 : vector<128x128xf32>
      %119 = arith.mulf %118, %69 : vector<128x128xf32>
      %cst_78 = arith.constant dense<0.000000e+00> : vector<128xf32>
      %120 = vector.multi_reduction <add>, %119, %cst_78 [1] : vector<128x128xf32> to vector<128xf32>
      %121 = vector.shape_cast %120 : vector<128xf32> to vector<128x1xf32>
      %cst_79 = arith.constant dense<0.000000e+00> : vector<128xf32>
      %122 = vector.multi_reduction <add>, %118, %cst_79 [1] : vector<128x128xf32> to vector<128xf32>
      %123 = vector.shape_cast %122 : vector<128xf32> to vector<128x1xf32>
      %124 = tpu.reciprocal %123 {approx = true} : vector<128x1xf32> -> vector<128x1xf32>
      %125 = arith.mulf %121, %124 : vector<128x1xf32>
      %c2 = arith.constant 2 : index
      %c0_80 = arith.constant 0 : index
      %126 = vector.load %arg12[%c2, %c0_80] : memref<3x64xf32, #tpu.memory_space<vmem>>, vector<1x64xf32>
      %127 = vector.broadcast %125 : vector<128x1xf32> to vector<128x64xf32>
      %128 = vector.broadcast %126 : vector<1x64xf32> to vector<128x64xf32>
      %129 = arith.mulf %127, %128 : vector<128x64xf32>
      %130 = arith.addf %115, %129 : vector<128x64xf32>
      %cst_81 = arith.constant 0.000000e+00 : f32
      %131 = vector.broadcast %cst_81 : f32 to vector<128x64xf32>
      %132 = arith.maximumf %130, %131 : vector<128x64xf32>
      %c0_82 = arith.constant 0 : index
      %c0_83 = arith.constant 0 : index
      %133 = vector.load %arg25[%c0_82, %c0_83] : memref<128x192xf32, #tpu.memory_space<vmem>>, vector<128x192xf32>
      %134 = arith.truncf %132 : vector<128x64xf32> to vector<128x64xbf16>
      %c0_84 = arith.constant 0 : index
      %c0_85 = arith.constant 0 : index
      %135 = vector.load %arg16[%c0_84, %c0_85] : memref<64x192xbf16, #tpu.memory_space<vmem>>, vector<64x192xbf16>
      %cst_86 = arith.constant dense<0.000000e+00> : vector<128x192xf32>
      %136 = tpu.matmul %134, %135, %cst_86 {dimension_numbers = #tpu.dot_dimension_numbers<[1], [0], [0], [1], [0, 0, 1, 1], [], []>} : vector<128x64xbf16>, vector<64x192xbf16>, vector<128x192xf32> -> vector<128x192xf32>
      %137 = arith.addf %133, %136 : vector<128x192xf32>
      %138 = arith.truncf %arg27 : vector<128x64xf32> to vector<128x64xbf16>
      %c0_87 = arith.constant 0 : index
      %c0_88 = arith.constant 0 : index
      %139 = vector.load %arg17[%c0_87, %c0_88] : memref<64x128xbf16, #tpu.memory_space<vmem>>, vector<64x128xbf16>
      %cst_89 = arith.constant dense<0.000000e+00> : vector<128x128xf32>
      %140 = tpu.matmul %138, %139, %cst_89 {dimension_numbers = #tpu.dot_dimension_numbers<[1], [0], [0], [1], [0, 0, 1, 1], [], []>} : vector<128x64xbf16>, vector<64x128xbf16>, vector<128x128xf32> -> vector<128x128xf32>
      %141 = vector.extract_strided_slice %137 {offsets = [0, 0], sizes = [128, 64], strides = [1, 1]} : vector<128x192xf32> to vector<128x64xf32>
      %142 = vector.extract_strided_slice %140 {offsets = [0, 0], sizes = [128, 64], strides = [1, 1]} : vector<128x128xf32> to vector<128x64xf32>
      %143 = arith.addf %141, %142 : vector<128x64xf32>
      %144 = arith.negf %143 : vector<128x64xf32>
      %145 = math.exp %144 : vector<128x64xf32>
      %cst_90 = arith.constant 1.000000e+00 : f32
      %146 = vector.broadcast %cst_90 : f32 to vector<128x64xf32>
      %147 = arith.addf %146, %145 : vector<128x64xf32>
      %148 = arith.divf %146, %147 : vector<128x64xf32>
      %149 = vector.extract_strided_slice %137 {offsets = [0, 64], sizes = [128, 64], strides = [1, 1]} : vector<128x192xf32> to vector<128x64xf32>
      %150 = vector.extract_strided_slice %140 {offsets = [0, 64], sizes = [128, 64], strides = [1, 1]} : vector<128x128xf32> to vector<128x64xf32>
      %151 = arith.addf %149, %150 : vector<128x64xf32>
      %152 = arith.negf %151 : vector<128x64xf32>
      %153 = math.exp %152 : vector<128x64xf32>
      %cst_91 = arith.constant 1.000000e+00 : f32
      %154 = vector.broadcast %cst_91 : f32 to vector<128x64xf32>
      %155 = arith.addf %154, %153 : vector<128x64xf32>
      %156 = arith.divf %154, %155 : vector<128x64xf32>
      %157 = vector.extract_strided_slice %137 {offsets = [0, 128], sizes = [128, 64], strides = [1, 1]} : vector<128x192xf32> to vector<128x64xf32>
      %158 = arith.mulf %156, %arg27 : vector<128x64xf32>
      %159 = arith.truncf %158 : vector<128x64xf32> to vector<128x64xbf16>
      %c0_92 = arith.constant 0 : index
      %c0_93 = arith.constant 0 : index
      %160 = vector.load %arg18[%c0_92, %c0_93] : memref<64x64xbf16, #tpu.memory_space<vmem>>, vector<64x64xbf16>
      %cst_94 = arith.constant dense<0.000000e+00> : vector<128x64xf32>
      %161 = tpu.matmul %159, %160, %cst_94 {dimension_numbers = #tpu.dot_dimension_numbers<[1], [0], [0], [1], [0, 0, 1, 1], [], []>} : vector<128x64xbf16>, vector<64x64xbf16>, vector<128x64xf32> -> vector<128x64xf32>
      %162 = arith.addf %157, %161 : vector<128x64xf32>
      %163 = math.tanh %162 : vector<128x64xf32>
      %cst_95 = arith.constant 1.000000e+00 : f32
      %164 = vector.broadcast %cst_95 : f32 to vector<128x64xf32>
      %165 = arith.subf %164, %148 : vector<128x64xf32>
      %166 = arith.mulf %165, %arg27 : vector<128x64xf32>
      %167 = arith.mulf %148, %163 : vector<128x64xf32>
      %168 = arith.addf %166, %167 : vector<128x64xf32>
      %169 = arith.truncf %168 : vector<128x64xf32> to vector<128x64xbf16>
      %c0_96 = arith.constant 0 : index
      %c0_97 = arith.constant 0 : index
      %170 = vector.load %arg19[%c0_96, %c0_97] : memref<64x64xbf16, #tpu.memory_space<vmem>>, vector<64x64xbf16>
      %cst_98 = arith.constant dense<0.000000e+00> : vector<128x64xf32>
      %171 = tpu.matmul %169, %170, %cst_98 {dimension_numbers = #tpu.dot_dimension_numbers<[1], [0], [0], [1], [0, 0, 1, 1], [], []>} : vector<128x64xbf16>, vector<64x64xbf16>, vector<128x64xf32> -> vector<128x64xf32>
      %c0_99 = arith.constant 0 : index
      %c0_100 = arith.constant 0 : index
      %172 = vector.load %arg20[%c0_99, %c0_100] : memref<1x64xf32, #tpu.memory_space<vmem>>, vector<1x64xf32>
      %173 = vector.broadcast %172 : vector<1x64xf32> to vector<128x64xf32>
      %174 = arith.addf %171, %173 : vector<128x64xf32>
      %cst_101 = arith.constant 0.000000e+00 : f32
      %175 = vector.broadcast %cst_101 : f32 to vector<128x64xf32>
      %176 = arith.maximumf %174, %175 : vector<128x64xf32>
      %c0_102 = arith.constant 0 : index
      %c0_103 = arith.constant 0 : index
      %177 = vector.load %arg21[%c0_102, %c0_103] : memref<64x3xf32, #tpu.memory_space<vmem>>, vector<64x3xf32>
      %cst_104 = arith.constant dense<0.000000e+00> : vector<128x3xf32>
      %178 = tpu.matmul %176, %177, %cst_104 {dimension_numbers = #tpu.dot_dimension_numbers<[1], [0], [0], [1], [0, 0, 1, 1], [], []>} : vector<128x64xf32>, vector<64x3xf32>, vector<128x3xf32> -> vector<128x3xf32>
      %c0_105 = arith.constant 0 : index
      %c0_106 = arith.constant 0 : index
      %179 = vector.load %arg22[%c0_105, %c0_106] : memref<1x3xf32, #tpu.memory_space<vmem>>, vector<1x3xf32>
      %180 = vector.broadcast %179 : vector<1x3xf32> to vector<128x3xf32>
      %181 = arith.addf %178, %180 : vector<128x3xf32>
      %182 = arith.addf %arg28, %181 : vector<128x3xf32>
      %183 = arith.subf %182, %67 : vector<128x3xf32>
      %184 = vector.shape_cast %183 : vector<128x3xf32> to vector<1x128x3xf32>
      %c0_107 = arith.constant 0 : index
      %185 = arith.index_cast %arg26 : i32 to index
      %c0_108 = arith.constant 0 : index
      %c0_109 = arith.constant 0 : index
      %186 = vector.load %arg23[%c0_107, %185, %c0_108, %c0_109] : memref<1x12x128x3xf32, #tpu.memory_space<vmem>>, vector<1x1x128x3xf32>
      %187 = vector.shape_cast %186 : vector<1x1x128x3xf32> to vector<1x128x3xf32>
      %188 = vector.shape_cast %184 : vector<1x128x3xf32> to vector<1x1x128x3xf32>
      tpu.vector_store %arg23[%c0_107, %185, %c0_108, %c0_109], %188 {strides = array<i32>} : memref<1x12x128x3xf32, #tpu.memory_space<vmem>>, vector<1x1x128x3xf32>,
      scf.yield %168, %182 : vector<128x64xf32>, vector<128x3xf32>
    }
    %c12_i32_51 = arith.constant 12 : i32
    return
  }
  func.func @transform_0(%arg0: i32) -> (i32, i32, i32) {
    %c0_i32 = arith.constant 0 : i32
    %c0_i32_0 = arith.constant 0 : i32
    %c0_i32_1 = arith.constant 0 : i32
    return %arg0, %c0_i32, %c0_i32_0 : i32, i32, i32
  }
  func.func @transform_1(%arg0: i32) -> (i32, i32, i32) {
    %c0_i32 = arith.constant 0 : i32
    %c0_i32_0 = arith.constant 0 : i32
    %c0_i32_1 = arith.constant 0 : i32
    return %arg0, %c0_i32, %c0_i32_0 : i32, i32, i32
  }
  func.func @transform_2(%arg0: i32) -> (i32, i32) {
    %c0_i32 = arith.constant 0 : i32
    %c0_i32_0 = arith.constant 0 : i32
    %c0_i32_1 = arith.constant 0 : i32
    return %c0_i32, %c0_i32_0 : i32, i32
  }
  func.func @transform_3(%arg0: i32) -> (i32, i32) {
    %c0_i32 = arith.constant 0 : i32
    %c0_i32_0 = arith.constant 0 : i32
    %c0_i32_1 = arith.constant 0 : i32
    return %c0_i32, %c0_i32_0 : i32, i32
  }
  func.func @transform_4(%arg0: i32) -> (i32, i32) {
    %c0_i32 = arith.constant 0 : i32
    %c0_i32_0 = arith.constant 0 : i32
    %c0_i32_1 = arith.constant 0 : i32
    return %c0_i32, %c0_i32_0 : i32, i32
  }
  func.func @transform_5(%arg0: i32) -> (i32, i32) {
    %c0_i32 = arith.constant 0 : i32
    %c0_i32_0 = arith.constant 0 : i32
    %c0_i32_1 = arith.constant 0 : i32
    return %c0_i32, %c0_i32_0 : i32, i32
  }
  func.func @transform_6(%arg0: i32) -> (i32, i32) {
    %c0_i32 = arith.constant 0 : i32
    %c0_i32_0 = arith.constant 0 : i32
    %c0_i32_1 = arith.constant 0 : i32
    return %c0_i32, %c0_i32_0 : i32, i32
  }
  func.func @transform_7(%arg0: i32) -> (i32, i32) {
    %c0_i32 = arith.constant 0 : i32
    %c0_i32_0 = arith.constant 0 : i32
    %c0_i32_1 = arith.constant 0 : i32
    return %c0_i32, %c0_i32_0 : i32, i32
  }
  func.func @transform_8(%arg0: i32) -> (i32, i32) {
    %c0_i32 = arith.constant 0 : i32
    %c0_i32_0 = arith.constant 0 : i32
    %c0_i32_1 = arith.constant 0 : i32
    return %c0_i32, %c0_i32_0 : i32, i32
  }
  func.func @transform_9(%arg0: i32) -> (i32, i32) {
    %c0_i32 = arith.constant 0 : i32
    %c0_i32_0 = arith.constant 0 : i32
    %c0_i32_1 = arith.constant 0 : i32
    return %c0_i32, %c0_i32_0 : i32, i32
  }
  func.func @transform_10(%arg0: i32) -> (i32, i32) {
    %c0_i32 = arith.constant 0 : i32
    %c0_i32_0 = arith.constant 0 : i32
    %c0_i32_1 = arith.constant 0 : i32
    return %c0_i32, %c0_i32_0 : i32, i32
  }
  func.func @transform_11(%arg0: i32) -> (i32, i32) {
    %c0_i32 = arith.constant 0 : i32
    %c0_i32_0 = arith.constant 0 : i32
    %c0_i32_1 = arith.constant 0 : i32
    return %c0_i32, %c0_i32_0 : i32, i32
  }
  func.func @transform_12(%arg0: i32) -> (i32, i32) {
    %c0_i32 = arith.constant 0 : i32
    %c0_i32_0 = arith.constant 0 : i32
    %c0_i32_1 = arith.constant 0 : i32
    return %c0_i32, %c0_i32_0 : i32, i32
  }
  func.func @transform_13(%arg0: i32) -> (i32, i32) {
    %c0_i32 = arith.constant 0 : i32
    %c0_i32_0 = arith.constant 0 : i32
    %c0_i32_1 = arith.constant 0 : i32
    return %c0_i32, %c0_i32_0 : i32, i32
  }
  func.func @transform_14(%arg0: i32) -> (i32, i32) {
    %c0_i32 = arith.constant 0 : i32
    %c0_i32_0 = arith.constant 0 : i32
    %c0_i32_1 = arith.constant 0 : i32
    return %c0_i32, %c0_i32_0 : i32, i32
  }
  func.func @transform_15(%arg0: i32) -> (i32, i32) {
    %c0_i32 = arith.constant 0 : i32
    %c0_i32_0 = arith.constant 0 : i32
    %c0_i32_1 = arith.constant 0 : i32
    return %c0_i32, %c0_i32_0 : i32, i32
  }
  func.func @transform_16(%arg0: i32) -> (i32, i32) {
    %c0_i32 = arith.constant 0 : i32
    %c0_i32_0 = arith.constant 0 : i32
    %c0_i32_1 = arith.constant 0 : i32
    return %c0_i32, %c0_i32_0 : i32, i32
  }
  func.func @transform_17(%arg0: i32) -> (i32, i32) {
    %c0_i32 = arith.constant 0 : i32
    %c0_i32_0 = arith.constant 0 : i32
    %c0_i32_1 = arith.constant 0 : i32
    return %c0_i32, %c0_i32_0 : i32, i32
  }
  func.func @transform_18(%arg0: i32) -> (i32, i32) {
    %c0_i32 = arith.constant 0 : i32
    %c0_i32_0 = arith.constant 0 : i32
    %c0_i32_1 = arith.constant 0 : i32
    return %c0_i32, %c0_i32_0 : i32, i32
  }
  func.func @transform_19(%arg0: i32) -> (i32, i32) {
    %c0_i32 = arith.constant 0 : i32
    %c0_i32_0 = arith.constant 0 : i32
    %c0_i32_1 = arith.constant 0 : i32
    return %c0_i32, %c0_i32_0 : i32, i32
  }
  func.func @transform_20(%arg0: i32) -> (i32, i32) {
    %c0_i32 = arith.constant 0 : i32
    %c0_i32_0 = arith.constant 0 : i32
    %c0_i32_1 = arith.constant 0 : i32
    return %c0_i32, %c0_i32_0 : i32, i32
  }
  func.func @transform_21(%arg0: i32) -> (i32, i32) {
    %c0_i32 = arith.constant 0 : i32
    %c0_i32_0 = arith.constant 0 : i32
    %c0_i32_1 = arith.constant 0 : i32
    return %c0_i32, %c0_i32_0 : i32, i32
  }
  func.func @transform_22(%arg0: i32) -> (i32, i32, i32, i32) {
    %c0_i32 = arith.constant 0 : i32
    %c0_i32_0 = arith.constant 0 : i32
    %c0_i32_1 = arith.constant 0 : i32
    %c0_i32_2 = arith.constant 0 : i32
    return %arg0, %c0_i32, %c0_i32_0, %c0_i32_1 : i32, i32, i32, i32
  }
}

</mosaic_0001>

<llo_original>
// kernel: pt_rsf_forward.1
$region0: #{pt_rsf_forward.1}
  #allocation0 [shape = 'u32[]', space=smem, size = 0x4, offset = 0x4, fixed_abs, tag = 'smem constant byte address 0x4 - core index']
  #allocation1 [shape = 'u32[72,128]{1,0:T(1,128)}', space=vmem, size = 0x9000, scoped, tag = 'internal scratch']
  #allocation2 [shape = 'f32[128,128]{1,0:T(8,128)}', space=vmem, size = 0x10000, scoped, tag = 'scratch operand']
  #allocation3 [shape = 'f32[128,192]{1,0:T(8,128)}', space=vmem, size = 0x20000, scoped, tag = 'scratch operand']
  %s0 = inlined_call_operand.vmem [shape: f32[2,128,3], index: 0, kind: input, shape index: {}]
  %s1 = inlined_call_operand.vmem [shape: f32[2,128,3], index: 1, kind: input, shape index: {}]
  %s2 = inlined_call_operand.hbm [shape: f32[3,64], index: 2, kind: input, shape index: {}]
  %s3 = inlined_call_operand.vmem [shape: f32[1,64], index: 3, kind: input, shape index: {}, may-alias: {3,5,7,12,19}]
  %s4 = inlined_call_operand.hbm [shape: bf16[64,64], index: 4, kind: input, shape index: {}]
  %s5 = inlined_call_operand.vmem [shape: f32[1,64], index: 5, kind: input, shape index: {}, may-alias: {3,5,7,12,19}]
  %s6 = inlined_call_operand.hbm [shape: f32[3,64], index: 6, kind: input, shape index: {}]
  %s7 = inlined_call_operand.vmem [shape: f32[1,64], index: 7, kind: input, shape index: {}, may-alias: {3,5,7,12,19}]
  %s8 = inlined_call_operand.hbm [shape: bf16[64,128], index: 8, kind: input, shape index: {}]
  %s9 = inlined_call_operand.vmem [shape: f32[1,128], index: 9, kind: input, shape index: {}]
  %s10 = inlined_call_operand.hbm [shape: f32[3,64], index: 10, kind: input, shape index: {}]
  %s11 = inlined_call_operand.hbm [shape: f32[3,64], index: 11, kind: input, shape index: {}]
  %s12 = inlined_call_operand.vmem [shape: f32[1,64], index: 12, kind: input, shape index: {}, may-alias: {3,5,7,12,19}]
  %s13 = inlined_call_operand.hbm [shape: bf16[64,192], index: 13, kind: input, shape index: {}]
  %s14 = inlined_call_operand.vmem [shape: f32[1,192], index: 14, kind: input, shape index: {}]
  %s15 = inlined_call_operand.hbm [shape: bf16[64,192], index: 15, kind: input, shape index: {}]
  %s16 = inlined_call_operand.hbm [shape: bf16[64,128], index: 16, kind: input, shape index: {}]
  %s17 = inlined_call_operand.hbm [shape: bf16[64,64], index: 17, kind: input, shape index: {}]
  %s18 = inlined_call_operand.hbm [shape: bf16[64,64], index: 18, kind: input, shape index: {}]
  %s19 = inlined_call_operand.vmem [shape: f32[1,64], index: 19, kind: input, shape index: {}, may-alias: {3,5,7,12,19}]
  %s20 = inlined_call_operand.hbm [shape: f32[64,3], index: 20, kind: input, shape index: {}]
  %s21 = inlined_call_operand.vmem [shape: f32[1,3], index: 21, kind: input, shape index: {}]
  %s22 = inlined_call_operand.vmem [shape: f32[2,12,128,3], index: 22, kind: output, shape index: {}]
  %s23 = sld [smem:[#allocation0]]
  $region176: #{pt_rsf_forward.1} parent=0
    _
  %s25 = ssub.s32 1, %s23
  %s26 = scalar_select 0, %s25, %s23
  $region1: #{pt_rsf_forward.1} parent=0
    #allocation4 [shape = 'u8[2048]{0}', space=vmem, size = 0x800, scoped, tag = 'input window, operand 2, single buffered']
    #allocation5 [shape = 's32[2]{0}', space=sflag, size = 0x8, scoped, tag = 'scoped memory for pt_rsf_forward.1']
    #allocation6 [shape = 'u8[16384]{0}', space=vmem, size = 0x4000, scoped, tag = 'input window, operand 4, single buffered']
    #allocation7 [shape = 's32[1]{0}', space=sflag, size = 0x4, scoped, tag = 'scoped memory for pt_rsf_forward.1']
    #allocation8 [shape = 'u8[2048]{0}', space=vmem, size = 0x800, scoped, tag = 'input window, operand 6, single buffered']
    #allocation9 [shape = 'u8[16384]{0}', space=vmem, size = 0x4000, scoped, tag = 'input window, operand 8, single buffered']
    #allocation10 [shape = 's32[1]{0}', space=sflag, size = 0x4, scoped, tag = 'scoped memory for pt_rsf_forward.1']
    #allocation11 [shape = 'u8[2048]{0}', space=vmem, size = 0x800, scoped, tag = 'input window, operand 10, single buffered']
    #allocation12 [shape = 'u8[2048]{0}', space=vmem, size = 0x800, scoped, tag = 'input window, operand 11, single buffered']
    #allocation13 [shape = 's32[1]{0}', space=sflag, size = 0x4, scoped, tag = 'scoped memory for pt_rsf_forward.1']
    #allocation14 [shape = 'u8[32768]{0}', space=vmem, size = 0x8000, scoped, tag = 'input window, operand 13, single buffered']
    #allocation15 [shape = 'u8[32768]{0}', space=vmem, size = 0x8000, scoped, tag = 'input window, operand 15, single buffered']
    #allocation16 [shape = 's32[1]{0}', space=sflag, size = 0x4, scoped, tag = 'scoped memory for pt_rsf_forward.1']
    #allocation17 [shape = 'u8[16384]{0}', space=vmem, size = 0x4000, scoped, tag = 'input window, operand 16, single buffered']
    #allocation18 [shape = 'u8[16384]{0}', space=vmem, size = 0x4000, scoped, tag = 'input window, operand 17, single buffered']
    #allocation19 [shape = 's32[1]{0}', space=sflag, size = 0x4, scoped, tag = 'scoped memory for pt_rsf_forward.1']
    #allocation20 [shape = 'u8[16384]{0}', space=vmem, size = 0x4000, scoped, tag = 'input window, operand 18, single buffered']
    #allocation21 [shape = 'u8[32768]{0}', space=vmem, size = 0x8000, scoped, tag = 'input window, operand 20, single buffered']
    #allocation22 [shape = 's32[1]{0}', space=sflag, size = 0x4, scoped, tag = 'scoped memory for pt_rsf_forward.1']
    %27 = vsyncpa [#allocation5], 0
    %28 = vsyncpa [#allocation7], 0
    %29 = vsyncpa [#allocation10], 0
    %30 = vsyncpa [#allocation13], 0
    %31 = vsyncpa [#allocation16], 0
    %32 = vsyncpa [#allocation19], 0
    %33 = vsyncpa [#allocation22], 0
    loop: start=0, step=1, limit=4
    $region2: #{pt_rsf_forward.1} parent=1 // loop_pre_header
      _
    $region3: #{pt_rsf_forward.1} parent=1 // loop_header
      %s35 = sphi 0, %s39
      %p36 = scmp.ge.s32.totalorder %s35, 4
      %s45 = sphi 0, %s47
      %s48 = sphi 0, %s45
      %s49 = sphi 0, %s48
      %s65 = sphi 0, %s49
      %s71 = sphi 0, %s73
      %s74 = sphi 0, %s71
      %s75 = sphi 0, %s74
      %s91 = sphi 0, %s75
      %s95 = sphi 0, %s95
      %s97 = sphi 0, %s95
      %s98 = sphi 0, %s97
      %s112 = sphi 0, %s98
      %s116 = sphi 0, %s116
      %s118 = sphi 0, %s116
      %s119 = sphi 0, %s118
      %s133 = sphi 0, %s119
      %s137 = sphi 0, %s137
      %s139 = sphi 0, %s137
      %s140 = sphi 0, %s139
      %s154 = sphi 0, %s140
      %s158 = sphi 0, %s158
      %s160 = sphi 0, %s158
      %s161 = sphi 0, %s160
      %s175 = sphi 0, %s161
      %s179 = sphi 0, %s179
      %s181 = sphi 0, %s179
      %s182 = sphi 0, %s181
      %s196 = sphi 0, %s182
      %s200 = sphi 0, %s200
      %s202 = sphi 0, %s200
      %s203 = sphi 0, %s202
      %s217 = sphi 0, %s203
      %s221 = sphi 0, %s221
      %s223 = sphi 0, %s221
      %s224 = sphi 0, %s223
      %s238 = sphi 0, %s224
      %s242 = sphi 0, %s242
      %s244 = sphi 0, %s242
      %s245 = sphi 0, %s244
      %s259 = sphi 0, %s245
      %s263 = sphi 0, %s263
      %s265 = sphi 0, %s263
      %s266 = sphi 0, %s265
      %s280 = sphi 0, %s266
      %s284 = sphi 0, %s284
      %s286 = sphi 0, %s284
      %s287 = sphi 0, %s286
      %s301 = sphi 0, %s287
      %s305 = sphi 0, %s305
      %s307 = sphi 0, %s305
      %s308 = sphi 0, %s307
      %s322 = sphi 0, %s308
      %s326 = sphi 0, %s326
      %s328 = sphi 0, %s326
      %s329 = sphi 0, %s328
      %s343 = sphi 0, %s329
      %s347 = sphi 0, %s347
      %s349 = sphi 0, %s347
      %s350 = sphi 0, %s349
      %s364 = sphi 0, %s350
      %s368 = sphi 0, %s368
      %s370 = sphi 0, %s368
      %s371 = sphi 0, %s370
      %s385 = sphi 0, %s371
      %s389 = sphi 0, %s389
      %s391 = sphi 0, %s389
      %s392 = sphi 0, %s391
      %s406 = sphi 0, %s392
      %s410 = sphi 0, %s410
      %s412 = sphi 0, %s410
      %s413 = sphi 0, %s412
      %s427 = sphi 0, %s413
      %s431 = sphi 0, %s431
      %s433 = sphi 0, %s431
      %s434 = sphi 0, %s433
      %s448 = sphi 0, %s434
      %s452 = sphi 0, %s452
      %s454 = sphi 0, %s452
      %s455 = sphi 0, %s454
      %s469 = sphi 0, %s455
      %s473 = sphi 0, %s473
      %s475 = sphi 0, %s473
      %s476 = sphi 0, %s475
      %s490 = sphi 0, %s476
      %s494 = sphi 0, %s494
      %s496 = sphi 0, %s494
      %s497 = sphi 0, %s496
      %s511 = sphi 0, %s497
      %s517 = sphi 0, %s519
      %s520 = sphi 0, %s517
      %s521 = sphi 0, %s520
      %s537 = sphi 0, %s521
    $region4: #{pt_rsf_forward.1} parent=1 // loop_header_branch
      %38 = sbr.rel (%p36) target = $region8
    $region5: #{pt_rsf_forward.1} parent=1 // loop_body
      %s40 = ssub.s32 %s35, 1
      %s41 = ssub.s32 %s35, 2
      %s42 = sadd.s32 %s35, 1
      %s43 = ssub.s32 %s35, %s42
      %p44 = scmp.eq.s32.totalorder %s43, 0
      %s46 = sadd.s32 %s45, 1
      %s47 = scalar_select %p44, %s45, %s46
      %p50 = pneg %p44
      %p51 = scmp.eq.s32.totalorder %s35, 1
      %p52 = por %p50, %p51
      %p53 = scmp.ne.s32.totalorder %s45, %s48
      %p54 = scmp.eq.s32.totalorder %s35, 0
      %p55 = por %p53, %p54
      %p56 = scmp.ne.s32.totalorder %s45, %s48
      %p57 = scmp.eq.s32.totalorder %s40, 1
      %p58 = por %p56, %p57
      %p59 = scmp.ne.s32.totalorder %s48, %s49
      %p60 = scmp.eq.s32.totalorder %s40, 0
      %p61 = por %p59, %p60
      %p62 = scmp.ne.s32.totalorder %s48, %s49
      %p63 = scmp.eq.s32.totalorder %s41, 1
      %p64 = por %p62, %p63
      %p66 = scmp.ne.s32.totalorder %s49, %s65
      %p67 = scmp.eq.s32.totalorder %s41, 0
      %p68 = por %p66, %p67
      %s69 = ssub.s32 %s35, %s42
      %p70 = scmp.eq.s32.totalorder %s69, 0
      %s72 = sadd.s32 %s71, 1
      %s73 = scalar_select %p70, %s71, %s72
      %p76 = pneg %p70
      %p77 = scmp.eq.s32.totalorder %s35, 1
      %p78 = por %p76, %p77
      %p79 = scmp.ne.s32.totalorder %s71, %s74
      %p80 = scmp.eq.s32.totalorder %s35, 0
      %p81 = por %p79, %p80
      %p82 = scmp.ne.s32.totalorder %s71, %s74
      %p83 = scmp.eq.s32.totalorder %s40, 1
      %p84 = por %p82, %p83
      %p85 = scmp.ne.s32.totalorder %s74, %s75
      %p86 = scmp.eq.s32.totalorder %s40, 0
      %p87 = por %p85, %p86
      %p88 = scmp.ne.s32.totalorder %s74, %s75
      %p89 = scmp.eq.s32.totalorder %s41, 1
      %p90 = por %p88, %p89
      %p92 = scmp.ne.s32.totalorder %s75, %s91
      %p93 = scmp.eq.s32.totalorder %s41, 0
      %p94 = por %p92, %p93
      %s96 = sadd.s32 %s95, 1
      %p99 = scmp.eq.s32.totalorder %s35, 1
      %p100 = scmp.ne.s32.totalorder %s95, %s97
      %p101 = scmp.eq.s32.totalorder %s35, 0
      %p102 = por %p100, %p101
      %p103 = scmp.ne.s32.totalorder %s95, %s97
      %p104 = scmp.eq.s32.totalorder %s40, 1
      %p105 = por %p103, %p104
      %p106 = scmp.ne.s32.totalorder %s97, %s98
      %p107 = scmp.eq.s32.totalorder %s40, 0
      %p108 = por %p106, %p107
      %p109 = scmp.ne.s32.totalorder %s97, %s98
      %p110 = scmp.eq.s32.totalorder %s41, 1
      %p111 = por %p109, %p110
      %p113 = scmp.ne.s32.totalorder %s98, %s112
      %p114 = scmp.eq.s32.totalorder %s41, 0
      %p115 = por %p113, %p114
      %s117 = sadd.s32 %s116, 1
      %p120 = scmp.eq.s32.totalorder %s35, 1
      %p121 = scmp.ne.s32.totalorder %s116, %s118
      %p122 = scmp.eq.s32.totalorder %s35, 0
      %p123 = por %p121, %p122
      %p124 = scmp.ne.s32.totalorder %s116, %s118
      %p125 = scmp.eq.s32.totalorder %s40, 1
      %p126 = por %p124, %p125
      %p127 = scmp.ne.s32.totalorder %s118, %s119
      %p128 = scmp.eq.s32.totalorder %s40, 0
      %p129 = por %p127, %p128
      %p130 = scmp.ne.s32.totalorder %s118, %s119
      %p131 = scmp.eq.s32.totalorder %s41, 1
      %p132 = por %p130, %p131
      %p134 = scmp.ne.s32.totalorder %s119, %s133
      %p135 = scmp.eq.s32.totalorder %s41, 0
      %p136 = por %p134, %p135
      %s138 = sadd.s32 %s137, 1
      %p141 = scmp.eq.s32.totalorder %s35, 1
      %p142 = scmp.ne.s32.totalorder %s137, %s139
      %p143 = scmp.eq.s32.totalorder %s35, 0
      %p144 = por %p142, %p143
      %p145 = scmp.ne.s32.totalorder %s137, %s139
      %p146 = scmp.eq.s32.totalorder %s40, 1
      %p147 = por %p145, %p146
      %p148 = scmp.ne.s32.totalorder %s139, %s140
      %p149 = scmp.eq.s32.totalorder %s40, 0
      %p150 = por %p148, %p149
      %p151 = scmp.ne.s32.totalorder %s139, %s140
      %p152 = scmp.eq.s32.totalorder %s41, 1
      %p153 = por %p151, %p152
      %p155 = scmp.ne.s32.totalorder %s140, %s154
      %p156 = scmp.eq.s32.totalorder %s41, 0
      %p157 = por %p155, %p156
      %s159 = sadd.s32 %s158, 1
      %p162 = scmp.eq.s32.totalorder %s35, 1
      %p163 = scmp.ne.s32.totalorder %s158, %s160
      %p164 = scmp.eq.s32.totalorder %s35, 0
      %p165 = por %p163, %p164
      %p166 = scmp.ne.s32.totalorder %s158, %s160
      %p167 = scmp.eq.s32.totalorder %s40, 1
      %p168 = por %p166, %p167
      %p169 = scmp.ne.s32.totalorder %s160, %s161
      %p170 = scmp.eq.s32.totalorder %s40, 0
      %p171 = por %p169, %p170
      %p172 = scmp.ne.s32.totalorder %s160, %s161
      %p173 = scmp.eq.s32.totalorder %s41, 1
      %p174 = por %p172, %p173
      %p176 = scmp.ne.s32.totalorder %s161, %s175
      %p177 = scmp.eq.s32.totalorder %s41, 0
      %p178 = por %p176, %p177
      %s180 = sadd.s32 %s179, 1
      %p183 = scmp.eq.s32.totalorder %s35, 1
      %p184 = scmp.ne.s32.totalorder %s179, %s181
      %p185 = scmp.eq.s32.totalorder %s35, 0
      %p186 = por %p184, %p185
      %p187 = scmp.ne.s32.totalorder %s179, %s181
      %p188 = scmp.eq.s32.totalorder %s40, 1
      %p189 = por %p187, %p188
      %p190 = scmp.ne.s32.totalorder %s181, %s182
      %p191 = scmp.eq.s32.totalorder %s40, 0
      %p192 = por %p190, %p191
      %p193 = scmp.ne.s32.totalorder %s181, %s182
      %p194 = scmp.eq.s32.totalorder %s41, 1
      %p195 = por %p193, %p194
      %p197 = scmp.ne.s32.totalorder %s182, %s196
      %p198 = scmp.eq.s32.totalorder %s41, 0
      %p199 = por %p197, %p198
      %s201 = sadd.s32 %s200, 1
      %p204 = scmp.eq.s32.totalorder %s35, 1
      %p205 = scmp.ne.s32.totalorder %s200, %s202
      %p206 = scmp.eq.s32.totalorder %s35, 0
      %p207 = por %p205, %p206
      %p208 = scmp.ne.s32.totalorder %s200, %s202
      %p209 = scmp.eq.s32.totalorder %s40, 1
      %p210 = por %p208, %p209
      %p211 = scmp.ne.s32.totalorder %s202, %s203
      %p212 = scmp.eq.s32.totalorder %s40, 0
      %p213 = por %p211, %p212
      %p214 = scmp.ne.s32.totalorder %s202, %s203
      %p215 = scmp.eq.s32.totalorder %s41, 1
      %p216 = por %p214, %p215
      %p218 = scmp.ne.s32.totalorder %s203, %s217
      %p219 = scmp.eq.s32.totalorder %s41, 0
      %p220 = por %p218, %p219
      %s222 = sadd.s32 %s221, 1
      %p225 = scmp.eq.s32.totalorder %s35, 1
      %p226 = scmp.ne.s32.totalorder %s221, %s223
      %p227 = scmp.eq.s32.totalorder %s35, 0
      %p228 = por %p226, %p227
      %p229 = scmp.ne.s32.totalorder %s221, %s223
      %p230 = scmp.eq.s32.totalorder %s40, 1
      %p231 = por %p229, %p230
      %p232 = scmp.ne.s32.totalorder %s223, %s224
      %p233 = scmp.eq.s32.totalorder %s40, 0
      %p234 = por %p232, %p233
      %p235 = scmp.ne.s32.totalorder %s223, %s224
      %p236 = scmp.eq.s32.totalorder %s41, 1
      %p237 = por %p235, %p236
      %p239 = scmp.ne.s32.totalorder %s224, %s238
      %p240 = scmp.eq.s32.totalorder %s41, 0
      %p241 = por %p239, %p240
      %s243 = sadd.s32 %s242, 1
      %p246 = scmp.eq.s32.totalorder %s35, 1
      %p247 = scmp.ne.s32.totalorder %s242, %s244
      %p248 = scmp.eq.s32.totalorder %s35, 0
      %p249 = por %p247, %p248
      %p250 = scmp.ne.s32.totalorder %s242, %s244
      %p251 = scmp.eq.s32.totalorder %s40, 1
      %p252 = por %p250, %p251
      %p253 = scmp.ne.s32.totalorder %s244, %s245
      %p254 = scmp.eq.s32.totalorder %s40, 0
      %p255 = por %p253, %p254
      %p256 = scmp.ne.s32.totalorder %s244, %s245
      %p257 = scmp.eq.s32.totalorder %s41, 1
      %p258 = por %p256, %p257
      %p260 = scmp.ne.s32.totalorder %s245, %s259
      %p261 = scmp.eq.s32.totalorder %s41, 0
      %p262 = por %p260, %p261
      %s264 = sadd.s32 %s263, 1
      %p267 = scmp.eq.s32.totalorder %s35, 1
      %p268 = scmp.ne.s32.totalorder %s263, %s265
      %p269 = scmp.eq.s32.totalorder %s35, 0
      %p270 = por %p268, %p269
      %p271 = scmp.ne.s32.totalorder %s263, %s265
      %p272 = scmp.eq.s32.totalorder %s40, 1
      %p273 = por %p271, %p272
      %p274 = scmp.ne.s32.totalorder %s265, %s266
      %p275 = scmp.eq.s32.totalorder %s40, 0
      %p276 = por %p274, %p275
      %p277 = scmp.ne.s32.totalorder %s265, %s266
      %p278 = scmp.eq.s32.totalorder %s41, 1
      %p279 = por %p277, %p278
      %p281 = scmp.ne.s32.totalorder %s266, %s280
      %p282 = scmp.eq.s32.totalorder %s41, 0
      %p283 = por %p281, %p282
      %s285 = sadd.s32 %s284, 1
      %p288 = scmp.eq.s32.totalorder %s35, 1
      %p289 = scmp.ne.s32.totalorder %s284, %s286
      %p290 = scmp.eq.s32.totalorder %s35, 0
      %p291 = por %p289, %p290
      %p292 = scmp.ne.s32.totalorder %s284, %s286
      %p293 = scmp.eq.s32.totalorder %s40, 1
      %p294 = por %p292, %p293
      %p295 = scmp.ne.s32.totalorder %s286, %s287
      %p296 = scmp.eq.s32.totalorder %s40, 0
      %p297 = por %p295, %p296
      %p298 = scmp.ne.s32.totalorder %s286, %s287
      %p299 = scmp.eq.s32.totalorder %s41, 1
      %p300 = por %p298, %p299
      %p302 = scmp.ne.s32.totalorder %s287, %s301
      %p303 = scmp.eq.s32.totalorder %s41, 0
      %p304 = por %p302, %p303
      %s306 = sadd.s32 %s305, 1
      %p309 = scmp.eq.s32.totalorder %s35, 1
      %p310 = scmp.ne.s32.totalorder %s305, %s307
      %p311 = scmp.eq.s32.totalorder %s35, 0
      %p312 = por %p310, %p311
      %p313 = scmp.ne.s32.totalorder %s305, %s307
      %p314 = scmp.eq.s32.totalorder %s40, 1
      %p315 = por %p313, %p314
      %p316 = scmp.ne.s32.totalorder %s307, %s308
      %p317 = scmp.eq.s32.totalorder %s40, 0
      %p318 = por %p316, %p317
      %p319 = scmp.ne.s32.totalorder %s307, %s308
      %p320 = scmp.eq.s32.totalorder %s41, 1
      %p321 = por %p319, %p320
      %p323 = scmp.ne.s32.totalorder %s308, %s322
      %p324 = scmp.eq.s32.totalorder %s41, 0
      %p325 = por %p323, %p324
      %s327 = sadd.s32 %s326, 1
      %p330 = scmp.eq.s32.totalorder %s35, 1
      %p331 = scmp.ne.s32.totalorder %s326, %s328
      %p332 = scmp.eq.s32.totalorder %s35, 0
      %p333 = por %p331, %p332
      %p334 = scmp.ne.s32.totalorder %s326, %s328
      %p335 = scmp.eq.s32.totalorder %s40, 1
      %p336 = por %p334, %p335
      %p337 = scmp.ne.s32.totalorder %s328, %s329
      %p338 = scmp.eq.s32.totalorder %s40, 0
      %p339 = por %p337, %p338
      %p340 = scmp.ne.s32.totalorder %s328, %s329
      %p341 = scmp.eq.s32.totalorder %s41, 1
      %p342 = por %p340, %p341
      %p344 = scmp.ne.s32.totalorder %s329, %s343
      %p345 = scmp.eq.s32.totalorder %s41, 0
      %p346 = por %p344, %p345
      %s348 = sadd.s32 %s347, 1
      %p351 = scmp.eq.s32.totalorder %s35, 1
      %p352 = scmp.ne.s32.totalorder %s347, %s349
      %p353 = scmp.eq.s32.totalorder %s35, 0
      %p354 = por %p352, %p353
      %p355 = scmp.ne.s32.totalorder %s347, %s349
      %p356 = scmp.eq.s32.totalorder %s40, 1
      %p357 = por %p355, %p356
      %p358 = scmp.ne.s32.totalorder %s349, %s350
      %p359 = scmp.eq.s32.totalorder %s40, 0
      %p360 = por %p358, %p359
      %p361 = scmp.ne.s32.totalorder %s349, %s350
      %p362 = scmp.eq.s32.totalorder %s41, 1
      %p363 = por %p361, %p362
      %p365 = scmp.ne.s32.totalorder %s350, %s364
      %p366 = scmp.eq.s32.totalorder %s41, 0
      %p367 = por %p365, %p366
      %s369 = sadd.s32 %s368, 1
      %p372 = scmp.eq.s32.totalorder %s35, 1
      %p373 = scmp.ne.s32.totalorder %s368, %s370
      %p374 = scmp.eq.s32.totalorder %s35, 0
      %p375 = por %p373, %p374
      %p376 = scmp.ne.s32.totalorder %s368, %s370
      %p377 = scmp.eq.s32.totalorder %s40, 1
      %p378 = por %p376, %p377
      %p379 = scmp.ne.s32.totalorder %s370, %s371
      %p380 = scmp.eq.s32.totalorder %s40, 0
      %p381 = por %p379, %p380
      %p382 = scmp.ne.s32.totalorder %s370, %s371
      %p383 = scmp.eq.s32.totalorder %s41, 1
      %p384 = por %p382, %p383
      %p386 = scmp.ne.s32.totalorder %s371, %s385
      %p387 = scmp.eq.s32.totalorder %s41, 0
      %p388 = por %p386, %p387
      %s390 = sadd.s32 %s389, 1
      %p393 = scmp.eq.s32.totalorder %s35, 1
      %p394 = scmp.ne.s32.totalorder %s389, %s391
      %p395 = scmp.eq.s32.totalorder %s35, 0
      %p396 = por %p394, %p395
      %p397 = scmp.ne.s32.totalorder %s389, %s391
      %p398 = scmp.eq.s32.totalorder %s40, 1
      %p399 = por %p397, %p398
      %p400 = scmp.ne.s32.totalorder %s391, %s392
      %p401 = scmp.eq.s32.totalorder %s40, 0
      %p402 = por %p400, %p401
      %p403 = scmp.ne.s32.totalorder %s391, %s392
      %p404 = scmp.eq.s32.totalorder %s41, 1
      %p405 = por %p403, %p404
      %p407 = scmp.ne.s32.totalorder %s392, %s406
      %p408 = scmp.eq.s32.totalorder %s41, 0
      %p409 = por %p407, %p408
      %s411 = sadd.s32 %s410, 1
      %p414 = scmp.eq.s32.totalorder %s35, 1
      %p415 = scmp.ne.s32.totalorder %s410, %s412
      %p416 = scmp.eq.s32.totalorder %s35, 0
      %p417 = por %p415, %p416
      %p418 = scmp.ne.s32.totalorder %s410, %s412
      %p419 = scmp.eq.s32.totalorder %s40, 1
      %p420 = por %p418, %p419
      %p421 = scmp.ne.s32.totalorder %s412, %s413
      %p422 = scmp.eq.s32.totalorder %s40, 0
      %p423 = por %p421, %p422
      %p424 = scmp.ne.s32.totalorder %s412, %s413
      %p425 = scmp.eq.s32.totalorder %s41, 1
      %p426 = por %p424, %p425
      %p428 = scmp.ne.s32.totalorder %s413, %s427
      %p429 = scmp.eq.s32.totalorder %s41, 0
      %p430 = por %p428, %p429
      %s432 = sadd.s32 %s431, 1
      %p435 = scmp.eq.s32.totalorder %s35, 1
      %p436 = scmp.ne.s32.totalorder %s431, %s433
      %p437 = scmp.eq.s32.totalorder %s35, 0
      %p438 = por %p436, %p437
      %p439 = scmp.ne.s32.totalorder %s431, %s433
      %p440 = scmp.eq.s32.totalorder %s40, 1
      %p441 = por %p439, %p440
      %p442 = scmp.ne.s32.totalorder %s433, %s434
      %p443 = scmp.eq.s32.totalorder %s40, 0
      %p444 = por %p442, %p443
      %p445 = scmp.ne.s32.totalorder %s433, %s434
      %p446 = scmp.eq.s32.totalorder %s41, 1
      %p447 = por %p445, %p446
      %p449 = scmp.ne.s32.totalorder %s434, %s448
      %p450 = scmp.eq.s32.totalorder %s41, 0
      %p451 = por %p449, %p450
      %s453 = sadd.s32 %s452, 1
      %p456 = scmp.eq.s32.totalorder %s35, 1
      %p457 = scmp.ne.s32.totalorder %s452, %s454
      %p458 = scmp.eq.s32.totalorder %s35, 0
      %p459 = por %p457, %p458
      %p460 = scmp.ne.s32.totalorder %s452, %s454
      %p461 = scmp.eq.s32.totalorder %s40, 1
      %p462 = por %p460, %p461
      %p463 = scmp.ne.s32.totalorder %s454, %s455
      %p464 = scmp.eq.s32.totalorder %s40, 0
      %p465 = por %p463, %p464
      %p466 = scmp.ne.s32.totalorder %s454, %s455
      %p467 = scmp.eq.s32.totalorder %s41, 1
      %p468 = por %p466, %p467
      %p470 = scmp.ne.s32.totalorder %s455, %s469
      %p471 = scmp.eq.s32.totalorder %s41, 0
      %p472 = por %p470, %p471
      %s474 = sadd.s32 %s473, 1
      %p477 = scmp.eq.s32.totalorder %s35, 1
      %p478 = scmp.ne.s32.totalorder %s473, %s475
      %p479 = scmp.eq.s32.totalorder %s35, 0
      %p480 = por %p478, %p479
      %p481 = scmp.ne.s32.totalorder %s473, %s475
      %p482 = scmp.eq.s32.totalorder %s40, 1
      %p483 = por %p481, %p482
      %p484 = scmp.ne.s32.totalorder %s475, %s476
      %p485 = scmp.eq.s32.totalorder %s40, 0
      %p486 = por %p484, %p485
      %p487 = scmp.ne.s32.totalorder %s475, %s476
      %p488 = scmp.eq.s32.totalorder %s41, 1
      %p489 = por %p487, %p488
      %p491 = scmp.ne.s32.totalorder %s476, %s490
      %p492 = scmp.eq.s32.totalorder %s41, 0
      %p493 = por %p491, %p492
      %s495 = sadd.s32 %s494, 1
      %p498 = scmp.eq.s32.totalorder %s35, 1
      %p499 = scmp.ne.s32.totalorder %s494, %s496
      %p500 = scmp.eq.s32.totalorder %s35, 0
      %p501 = por %p499, %p500
      %p502 = scmp.ne.s32.totalorder %s494, %s496
      %p503 = scmp.eq.s32.totalorder %s40, 1
      %p504 = por %p502, %p503
      %p505 = scmp.ne.s32.totalorder %s496, %s497
      %p506 = scmp.eq.s32.totalorder %s40, 0
      %p507 = por %p505, %p506
      %p508 = scmp.ne.s32.totalorder %s496, %s497
      %p509 = scmp.eq.s32.totalorder %s41, 1
      %p510 = por %p508, %p509
      %p512 = scmp.ne.s32.totalorder %s497, %s511
      %p513 = scmp.eq.s32.totalorder %s41, 0
      %p514 = por %p512, %p513
      %s515 = ssub.s32 %s35, %s42
      %p516 = scmp.eq.s32.totalorder %s515, 0
      %s518 = sadd.s32 %s517, 1
      %s519 = scalar_select %p516, %s517, %s518
      %p522 = pneg %p516
      %p523 = scmp.eq.s32.totalorder %s35, 1
      %p524 = por %p522, %p523
      %p525 = scmp.ne.s32.totalorder %s517, %s520
      %p526 = scmp.eq.s32.totalorder %s35, 0
      %p527 = por %p525, %p526
      %p528 = scmp.ne.s32.totalorder %s517, %s520
      %p529 = scmp.eq.s32.totalorder %s40, 1
      %p530 = por %p528, %p529
      %p531 = scmp.ne.s32.totalorder %s520, %s521
      %p532 = scmp.eq.s32.totalorder %s40, 0
      %p533 = por %p531, %p532
      %p534 = scmp.ne.s32.totalorder %s520, %s521
      %p535 = scmp.eq.s32.totalorder %s41, 1
      %p536 = por %p534, %p535
      %p538 = scmp.ne.s32.totalorder %s521, %s537
      %p539 = scmp.eq.s32.totalorder %s41, 0
      %p540 = por %p538, %p539
      %p541 = scmp.le.s32.totalorder 1, %s35
      %p542 = scmp.lt.s32.totalorder %s35, 3
      %p543 = pnand %p541, %p542
      %p544 = pneg %p543
      // Predicated region
      $region9: #{pt_rsf_forward.1} parent=5 // pred_check
        _
      $region10: #{pt_rsf_forward.1} parent=5 // pred_check_branch
        %546 = sbr.rel (%p543) target = $region12
      $region11: #{pt_rsf_forward.1} parent=5 // pred_region
        %s547 = ssub.s32 %s35, 1
        // Predicated region
        $region13: #{pt_rsf_forward.1} parent=11 // pred_check
          %p548 = pneg %p108
        $region14: #{pt_rsf_forward.1} parent=11 // pred_check_branch
          %550 = sbr.rel (%p548) target = $region16
        $region15: #{pt_rsf_forward.1} parent=11 // pred_region
          %552 = vsyncadd [#allocation5], 0
          %s554 = sshll.u32 %s2, 4
          %s555 = int_to_ptr.hbm [resolvable:$true] %s554
          %s556 = sshll.u32 [#allocation4], 4
          %s557 = int_to_ptr.vmem [resolvable:$true] %s556
          %559 = dma.hbm_to_vmem [thread:$0]  %s555, 64, %s557, [#allocation5]
        $region16: #{pt_rsf_forward.1} parent=11 // pred_fallthru
          _
        // Predicated region
        $region17: #{pt_rsf_forward.1} parent=11 // pred_check
          %p560 = pneg %p129
        $region18: #{pt_rsf_forward.1} parent=11 // pred_check_branch
          %562 = sbr.rel (%p560) target = $region20
        $region19: #{pt_rsf_forward.1} parent=11 // pred_region
          _
        $region20: #{pt_rsf_forward.1} parent=11 // pred_fallthru
          _
        // Predicated region
        $region21: #{pt_rsf_forward.1} parent=11 // pred_check
          %p563 = pneg %p150
        $region22: #{pt_rsf_forward.1} parent=11 // pred_check_branch
          %565 = sbr.rel (%p563) target = $region24
        $region23: #{pt_rsf_forward.1} parent=11 // pred_region
          %567 = vsyncadd [#allocation7], 0
          %s568 = sshll.u32 %s4, 4
          %s569 = int_to_ptr.hbm [resolvable:$true] %s568
          %s570 = sshll.u32 [#allocation6], 4
          %s571 = int_to_ptr.vmem [resolvable:$true] %s570
          %576 = dma.hbm_to_vmem [thread:$0]  %s569, 512, %s571, [#allocation7], 64, 64, 4
        $region24: #{pt_rsf_forward.1} parent=11 // pred_fallthru
          _
        // Predicated region
        $region25: #{pt_rsf_forward.1} parent=11 // pred_check
          %p577 = pneg %p171
        $region26: #{pt_rsf_forward.1} parent=11 // pred_check_branch
          %579 = sbr.rel (%p577) target = $region28
        $region27: #{pt_rsf_forward.1} parent=11 // pred_region
          _
        $region28: #{pt_rsf_forward.1} parent=11 // pred_fallthru
          _
        // Predicated region
        $region29: #{pt_rsf_forward.1} parent=11 // pred_check
          %p580 = pneg %p192
        $region30: #{pt_rsf_forward.1} parent=11 // pred_check_branch
          %582 = sbr.rel (%p580) target = $region32
        $region31: #{pt_rsf_forward.1} parent=11 // pred_region
          %584 = vsyncadd [#allocation7], 0
          %s586 = sshll.u32 %s6, 4
          %s587 = int_to_ptr.hbm [resolvable:$true] %s586
          %s588 = sshll.u32 [#allocation8], 4
          %s589 = int_to_ptr.vmem [resolvable:$true] %s588
          %591 = dma.hbm_to_vmem [thread:$0]  %s587, 64, %s589, [#allocation7]
        $region32: #{pt_rsf_forward.1} parent=11 // pred_fallthru
          _
        // Predicated region
        $region33: #{pt_rsf_forward.1} parent=11 // pred_check
          %p592 = pneg %p213
        $region34: #{pt_rsf_forward.1} parent=11 // pred_check_branch
          %594 = sbr.rel (%p592) target = $region36
        $region35: #{pt_rsf_forward.1} parent=11 // pred_region
          _
        $region36: #{pt_rsf_forward.1} parent=11 // pred_fallthru
          _
        // Predicated region
        $region37: #{pt_rsf_forward.1} parent=11 // pred_check
          %p595 = pneg %p234
        $region38: #{pt_rsf_forward.1} parent=11 // pred_check_branch
          %597 = sbr.rel (%p595) target = $region40
        $region39: #{pt_rsf_forward.1} parent=11 // pred_region
          %599 = vsyncadd [#allocation10], 0
          %s600 = sshll.u32 %s8, 4
          %s601 = int_to_ptr.hbm [resolvable:$true] %s600
          %s602 = sshll.u32 [#allocation9], 4
          %s603 = int_to_ptr.vmem [resolvable:$true] %s602
          %608 = dma.hbm_to_vmem [thread:$0]  %s601, 512, %s603, [#allocation10], 64, 64, 4
        $region40: #{pt_rsf_forward.1} parent=11 // pred_fallthru
          _
        // Predicated region
        $region41: #{pt_rsf_forward.1} parent=11 // pred_check
          %p609 = pneg %p255
        $region42: #{pt_rsf_forward.1} parent=11 // pred_check_branch
          %611 = sbr.rel (%p609) target = $region44
        $region43: #{pt_rsf_forward.1} parent=11 // pred_region
          _
        $region44: #{pt_rsf_forward.1} parent=11 // pred_fallthru
          _
        // Predicated region
        $region45: #{pt_rsf_forward.1} parent=11 // pred_check
          %p612 = pneg %p276
        $region46: #{pt_rsf_forward.1} parent=11 // pred_check_branch
          %614 = sbr.rel (%p612) target = $region48
        $region47: #{pt_rsf_forward.1} parent=11 // pred_region
          %616 = vsyncadd [#allocation10], 0
          %s618 = sshll.u32 %s10, 4
          %s619 = int_to_ptr.hbm [resolvable:$true] %s618
          %s620 = sshll.u32 [#allocation11], 4
          %s621 = int_to_ptr.vmem [resolvable:$true] %s620
          %623 = dma.hbm_to_vmem [thread:$0]  %s619, 64, %s621, [#allocation10]
        $region48: #{pt_rsf_forward.1} parent=11 // pred_fallthru
          _
        // Predicated region
        $region49: #{pt_rsf_forward.1} parent=11 // pred_check
          %p624 = pneg %p297
        $region50: #{pt_rsf_forward.1} parent=11 // pred_check_branch
          %626 = sbr.rel (%p624) target = $region52
        $region51: #{pt_rsf_forward.1} parent=11 // pred_region
          %628 = vsyncadd [#allocation13], 0
          %s630 = sshll.u32 %s11, 4
          %s631 = int_to_ptr.hbm [resolvable:$true] %s630
          %s632 = sshll.u32 [#allocation12], 4
          %s633 = int_to_ptr.vmem [resolvable:$true] %s632
          %635 = dma.hbm_to_vmem [thread:$0]  %s631, 64, %s633, [#allocation13]
        $region52: #{pt_rsf_forward.1} parent=11 // pred_fallthru
          _
        // Predicated region
        $region53: #{pt_rsf_forward.1} parent=11 // pred_check
          %p636 = pneg %p318
        $region54: #{pt_rsf_forward.1} parent=11 // pred_check_branch
          %638 = sbr.rel (%p636) target = $region56
        $region55: #{pt_rsf_forward.1} parent=11 // pred_region
          _
        $region56: #{pt_rsf_forward.1} parent=11 // pred_fallthru
          _
        // Predicated region
        $region57: #{pt_rsf_forward.1} parent=11 // pred_check
          %p639 = pneg %p339
        $region58: #{pt_rsf_forward.1} parent=11 // pred_check_branch
          %641 = sbr.rel (%p639) target = $region60
        $region59: #{pt_rsf_forward.1} parent=11 // pred_region
          %643 = vsyncadd [#allocation13], 0
          %s644 = sshll.u32 %s13, 4
          %s645 = int_to_ptr.hbm [resolvable:$true] %s644
          %s646 = sshll.u32 [#allocation14], 4
          %s647 = int_to_ptr.vmem [resolvable:$true] %s646
          %652 = dma.hbm_to_vmem [thread:$0]  %s645, 1024, %s647, [#allocation13], 128, 128, 8
        $region60: #{pt_rsf_forward.1} parent=11 // pred_fallthru
          _
        // Predicated region
        $region61: #{pt_rsf_forward.1} parent=11 // pred_check
          %p653 = pneg %p360
        $region62: #{pt_rsf_forward.1} parent=11 // pred_check_branch
          %655 = sbr.rel (%p653) target = $region64
        $region63: #{pt_rsf_forward.1} parent=11 // pred_region
          _
        $region64: #{pt_rsf_forward.1} parent=11 // pred_fallthru
          _
        // Predicated region
        $region65: #{pt_rsf_forward.1} parent=11 // pred_check
          %p656 = pneg %p381
        $region66: #{pt_rsf_forward.1} parent=11 // pred_check_branch
          %658 = sbr.rel (%p656) target = $region68
        $region67: #{pt_rsf_forward.1} parent=11 // pred_region
          %660 = vsyncadd [#allocation16], 0
          %s661 = sshll.u32 %s15, 4
          %s662 = int_to_ptr.hbm [resolvable:$true] %s661
          %s663 = sshll.u32 [#allocation15], 4
          %s664 = int_to_ptr.vmem [resolvable:$true] %s663
          %669 = dma.hbm_to_vmem [thread:$0]  %s662, 1024, %s664, [#allocation16], 128, 128, 8
        $region68: #{pt_rsf_forward.1} parent=11 // pred_fallthru
          _
        // Predicated region
        $region69: #{pt_rsf_forward.1} parent=11 // pred_check
          %p670 = pneg %p402
        $region70: #{pt_rsf_forward.1} parent=11 // pred_check_branch
          %672 = sbr.rel (%p670) target = $region72
        $region71: #{pt_rsf_forward.1} parent=11 // pred_region
          %674 = vsyncadd [#allocation16], 0
          %s675 = sshll.u32 %s16, 4
          %s676 = int_to_ptr.hbm [resolvable:$true] %s675
          %s677 = sshll.u32 [#allocation17], 4
          %s678 = int_to_ptr.vmem [resolvable:$true] %s677
          %683 = dma.hbm_to_vmem [thread:$0]  %s676, 512, %s678, [#allocation16], 64, 64, 4
        $region72: #{pt_rsf_forward.1} parent=11 // pred_fallthru
          _
        // Predicated region
        $region73: #{pt_rsf_forward.1} parent=11 // pred_check
          %p684 = pneg %p423
        $region74: #{pt_rsf_forward.1} parent=11 // pred_check_branch
          %686 = sbr.rel (%p684) target = $region76
        $region75: #{pt_rsf_forward.1} parent=11 // pred_region
          %688 = vsyncadd [#allocation19], 0
          %s689 = sshll.u32 %s17, 4
          %s690 = int_to_ptr.hbm [resolvable:$true] %s689
          %s691 = sshll.u32 [#allocation18], 4
          %s692 = int_to_ptr.vmem [resolvable:$true] %s691
          %697 = dma.hbm_to_vmem [thread:$0]  %s690, 512, %s692, [#allocation19], 64, 64, 4
        $region76: #{pt_rsf_forward.1} parent=11 // pred_fallthru
          _
        // Predicated region
        $region77: #{pt_rsf_forward.1} parent=11 // pred_check
          %p698 = pneg %p444
        $region78: #{pt_rsf_forward.1} parent=11 // pred_check_branch
          %700 = sbr.rel (%p698) target = $region80
        $region79: #{pt_rsf_forward.1} parent=11 // pred_region
          %702 = vsyncadd [#allocation19], 0
          %s703 = sshll.u32 %s18, 4
          %s704 = int_to_ptr.hbm [resolvable:$true] %s703
          %s705 = sshll.u32 [#allocation20], 4
          %s706 = int_to_ptr.vmem [resolvable:$true] %s705
          %711 = dma.hbm_to_vmem [thread:$0]  %s704, 512, %s706, [#allocation19], 64, 64, 4
        $region80: #{pt_rsf_forward.1} parent=11 // pred_fallthru
          _
        // Predicated region
        $region81: #{pt_rsf_forward.1} parent=11 // pred_check
          %p712 = pneg %p465
        $region82: #{pt_rsf_forward.1} parent=11 // pred_check_branch
          %714 = sbr.rel (%p712) target = $region84
        $region83: #{pt_rsf_forward.1} parent=11 // pred_region
          _
        $region84: #{pt_rsf_forward.1} parent=11 // pred_fallthru
          _
        // Predicated region
        $region85: #{pt_rsf_forward.1} parent=11 // pred_check
          %p715 = pneg %p486
        $region86: #{pt_rsf_forward.1} parent=11 // pred_check_branch
          %717 = sbr.rel (%p715) target = $region88
        $region87: #{pt_rsf_forward.1} parent=11 // pred_region
          %719 = vsyncadd [#allocation22], 0
          %s720 = sshll.u32 %s20, 4
          %s721 = int_to_ptr.hbm [resolvable:$true] %s720
          %s722 = sshll.u32 [#allocation21], 4
          %s723 = int_to_ptr.vmem [resolvable:$true] %s722
          %728 = dma.hbm_to_vmem [thread:$0]  %s721, 1024, %s723, [#allocation22], 128, 128, 8
        $region88: #{pt_rsf_forward.1} parent=11 // pred_fallthru
          _
        // Predicated region
        $region89: #{pt_rsf_forward.1} parent=11 // pred_check
          %p729 = pneg %p507
        $region90: #{pt_rsf_forward.1} parent=11 // pred_check_branch
          %731 = sbr.rel (%p729) target = $region92
        $region91: #{pt_rsf_forward.1} parent=11 // pred_region
          _
        $region92: #{pt_rsf_forward.1} parent=11 // pred_fallthru
          _
      $region12: #{pt_rsf_forward.1} parent=5 // pred_fallthru
        _
      %p732 = scmp.lt.s32.totalorder %s35, 2
      // Predicated region
      $region93: #{pt_rsf_forward.1} parent=5 // pred_check
        %p733 = pneg %p732
      $region94: #{pt_rsf_forward.1} parent=5 // pred_check_branch
        %735 = sbr.rel (%p733) target = $region96
      $region95: #{pt_rsf_forward.1} parent=5 // pred_region
        // Predicated region
        $region97: #{pt_rsf_forward.1} parent=95 // pred_check
          %p736 = pneg %p55
        $region98: #{pt_rsf_forward.1} parent=95 // pred_check_branch
          %738 = sbr.rel (%p736) target = $region100
        $region99: #{pt_rsf_forward.1} parent=95 // pred_region
          %p739 = scmp.lt.s32.totalorder %s35, 1
          %s740 = scalar_select %p739, %s35, 1
          %s741 = smul.addr %s740, 16
          %s742 = smul.addr %s741, 8
          %s743 = scalar_lea.vmem %s0, %s742
        $region100: #{pt_rsf_forward.1} parent=95 // pred_fallthru
          _
        // Predicated region
        $region101: #{pt_rsf_forward.1} parent=95 // pred_check
          %p744 = pneg %p81
        $region102: #{pt_rsf_forward.1} parent=95 // pred_check_branch
          %746 = sbr.rel (%p744) target = $region104
        $region103: #{pt_rsf_forward.1} parent=95 // pred_region
          %p747 = scmp.lt.s32.totalorder %s35, 1
          %s748 = scalar_select %p747, %s35, 1
          %s749 = smul.addr %s748, 16
          %s750 = smul.addr %s749, 8
          %s751 = scalar_lea.vmem %s1, %s750
        $region104: #{pt_rsf_forward.1} parent=95 // pred_fallthru
          _
      $region96: #{pt_rsf_forward.1} parent=5 // pred_fallthru
        _
      %p752 = scmp.le.s32.totalorder 1, %s35
      %p753 = scmp.lt.s32.totalorder %s35, 3
      %p754 = pnand %p752, %p753
      %p755 = pneg %p754
      // Predicated region
      $region105: #{pt_rsf_forward.1} parent=5 // pred_check
        _
      $region106: #{pt_rsf_forward.1} parent=5 // pred_check_branch
        %757 = sbr.rel (%p754) target = $region108
      $region107: #{pt_rsf_forward.1} parent=5 // pred_region
        %s758 = ssub.s32 %s35, 1
        // Predicated region
        $region109: #{pt_rsf_forward.1} parent=107 // pred_check
          %p759 = pneg %p108
        $region110: #{pt_rsf_forward.1} parent=107 // pred_check_branch
          %761 = sbr.rel (%p759) target = $region112
        $region111: #{pt_rsf_forward.1} parent=107 // pred_region
          %763 = dma.done [#allocation5], 64
        $region112: #{pt_rsf_forward.1} parent=107 // pred_fallthru
          _
        // Predicated region
        $region113: #{pt_rsf_forward.1} parent=107 // pred_check
          %p764 = pneg %p150
        $region114: #{pt_rsf_forward.1} parent=107 // pred_check_branch
          %766 = sbr.rel (%p764) target = $region116
        $region115: #{pt_rsf_forward.1} parent=107 // pred_region
          %768 = dma.done [#allocation7], 512
        $region116: #{pt_rsf_forward.1} parent=107 // pred_fallthru
          _
        // Predicated region
        $region117: #{pt_rsf_forward.1} parent=107 // pred_check
          %p769 = pneg %p192
        $region118: #{pt_rsf_forward.1} parent=107 // pred_check_branch
          %771 = sbr.rel (%p769) target = $region120
        $region119: #{pt_rsf_forward.1} parent=107 // pred_region
          %773 = dma.done [#allocation7], 64
        $region120: #{pt_rsf_forward.1} parent=107 // pred_fallthru
          _
        // Predicated region
        $region121: #{pt_rsf_forward.1} parent=107 // pred_check
          %p774 = pneg %p234
        $region122: #{pt_rsf_forward.1} parent=107 // pred_check_branch
          %776 = sbr.rel (%p774) target = $region124
        $region123: #{pt_rsf_forward.1} parent=107 // pred_region
          %778 = dma.done [#allocation10], 512
        $region124: #{pt_rsf_forward.1} parent=107 // pred_fallthru
          _
        // Predicated region
        $region125: #{pt_rsf_forward.1} parent=107 // pred_check
          %p779 = pneg %p276
        $region126: #{pt_rsf_forward.1} parent=107 // pred_check_branch
          %781 = sbr.rel (%p779) target = $region128
        $region127: #{pt_rsf_forward.1} parent=107 // pred_region
          %783 = dma.done [#allocation10], 64
        $region128: #{pt_rsf_forward.1} parent=107 // pred_fallthru
          _
        // Predicated region
        $region129: #{pt_rsf_forward.1} parent=107 // pred_check
          %p784 = pneg %p297
        $region130: #{pt_rsf_forward.1} parent=107 // pred_check_branch
          %786 = sbr.rel (%p784) target = $region132
        $region131: #{pt_rsf_forward.1} parent=107 // pred_region
          %788 = dma.done [#allocation13], 64
        $region132: #{pt_rsf_forward.1} parent=107 // pred_fallthru
          _
        // Predicated region
        $region133: #{pt_rsf_forward.1} parent=107 // pred_check
          %p789 = pneg %p339
        $region134: #{pt_rsf_forward.1} parent=107 // pred_check_branch
          %791 = sbr.rel (%p789) target = $region136
        $region135: #{pt_rsf_forward.1} parent=107 // pred_region
          %793 = dma.done [#allocation13], 1024
        $region136: #{pt_rsf_forward.1} parent=107 // pred_fallthru
          _
        // Predicated region
        $region137: #{pt_rsf_forward.1} parent=107 // pred_check
          %p794 = pneg %p381
        $region138: #{pt_rsf_forward.1} parent=107 // pred_check_branch
          %796 = sbr.rel (%p794) target = $region140
        $region139: #{pt_rsf_forward.1} parent=107 // pred_region
          %798 = dma.done [#allocation16], 1024
        $region140: #{pt_rsf_forward.1} parent=107 // pred_fallthru
          _
        // Predicated region
        $region141: #{pt_rsf_forward.1} parent=107 // pred_check
          %p799 = pneg %p402
        $region142: #{pt_rsf_forward.1} parent=107 // pred_check_branch
          %801 = sbr.rel (%p799) target = $region144
        $region143: #{pt_rsf_forward.1} parent=107 // pred_region
          %803 = dma.done [#allocation16], 512
        $region144: #{pt_rsf_forward.1} parent=107 // pred_fallthru
          _
        // Predicated region
        $region145: #{pt_rsf_forward.1} parent=107 // pred_check
          %p804 = pneg %p423
        $region146: #{pt_rsf_forward.1} parent=107 // pred_check_branch
          %806 = sbr.rel (%p804) target = $region148
        $region147: #{pt_rsf_forward.1} parent=107 // pred_region
          %808 = dma.done [#allocation19], 512
        $region148: #{pt_rsf_forward.1} parent=107 // pred_fallthru
          _
        // Predicated region
        $region149: #{pt_rsf_forward.1} parent=107 // pred_check
          %p809 = pneg %p444
        $region150: #{pt_rsf_forward.1} parent=107 // pred_check_branch
          %811 = sbr.rel (%p809) target = $region152
        $region151: #{pt_rsf_forward.1} parent=107 // pred_region
          %813 = dma.done [#allocation19], 512
        $region152: #{pt_rsf_forward.1} parent=107 // pred_fallthru
          _
        // Predicated region
        $region153: #{pt_rsf_forward.1} parent=107 // pred_check
          %p814 = pneg %p486
        $region154: #{pt_rsf_forward.1} parent=107 // pred_check_branch
          %816 = sbr.rel (%p814) target = $region156
        $region155: #{pt_rsf_forward.1} parent=107 // pred_region
          %818 = dma.done [#allocation22], 1024
        $region156: #{pt_rsf_forward.1} parent=107 // pred_fallthru
          _
        %p819 = scmp.lt.s32.totalorder %s40, 1
        %s820 = scalar_select %p819, %s40, 1
        %s821 = smul.addr %s820, 16
        %s822 = smul.addr %s821, 8
        %s823 = scalar_lea.vmem %s0, %s822
        %p824 = pneg %p61
        %p825 = pneg %p58
        %p826 = scmp.lt.s32.totalorder %s40, 1
        %s827 = scalar_select %p826, %s40, 1
        %s828 = smul.addr %s827, 16
        %s829 = smul.addr %s828, 8
        %s830 = scalar_lea.vmem %s1, %s829
        %p831 = pneg %p87
        %p832 = pneg %p84
        %p833 = pneg %p108
        %p834 = pneg %p105
        %p835 = pneg %p129
        %p836 = pneg %p126
        %p837 = pneg %p150
        %p838 = pneg %p147
        %p839 = pneg %p171
        %p840 = pneg %p168
        %p841 = pneg %p192
        %p842 = pneg %p189
        %p843 = pneg %p213
        %p844 = pneg %p210
        %p845 = pneg %p234
        %p846 = pneg %p231
        %p847 = pneg %p255
        %p848 = pneg %p252
        %p849 = pneg %p276
        %p850 = pneg %p273
        %p851 = pneg %p297
        %p852 = pneg %p294
        %p853 = pneg %p318
        %p854 = pneg %p315
        %p855 = pneg %p339
        %p856 = pneg %p336
        %p857 = pneg %p360
        %p858 = pneg %p357
        %p859 = pneg %p381
        %p860 = pneg %p378
        %p861 = pneg %p402
        %p862 = pneg %p399
        %p863 = pneg %p423
        %p864 = pneg %p420
        %p865 = pneg %p444
        %p866 = pneg %p441
        %p867 = pneg %p465
        %p868 = pneg %p462
        %p869 = pneg %p486
        %p870 = pneg %p483
        %p871 = pneg %p507
        %p872 = pneg %p504
        %p873 = pneg %p533
        %p874 = pneg %p530
        %p875 = scmp.lt.s32.totalorder %s40, 1
        %s876 = scalar_select %p875, %s40, 1
        %s877 = smul.addr %s876, 192
        %s878 = smul.addr %s877, 8
        %s879 = scalar_lea.vmem %s22, %s878
        %p880 = scmp.lt.s32.totalorder %s40, 1
        %s881 = scalar_select %p880, %s40, 1
        %s882 = smul.addr %s881, 16
        %s883 = smul.addr %s882, 8
        %s884 = scalar_lea.vmem %s0, %s883
        %p885 = scmp.lt.s32.totalorder %s40, 1
        %s886 = scalar_select %p885, %s40, 1
        %s887 = smul.addr %s886, 16
        %s888 = smul.addr %s887, 8
        %s889 = scalar_lea.vmem %s1, %s888
        %p890 = scmp.lt.s32.totalorder %s40, 1
        %s891 = scalar_select %p890, %s40, 1
        %s892 = smul.addr %s891, 192
        %s893 = smul.addr %s892, 8
        %s894 = scalar_lea.vmem %s22, %s893
        %v896 = vld [vmem:[%s884] sm:$0xff]
        %v897 = vld [vmem:[%s884 + $0x8] sm:$0xff]
        %v898 = vld [vmem:[%s884 + $0x10] sm:$0xff]
        %v899 = vld [vmem:[%s884 + $0x18] sm:$0xff]
        %v900 = vld [vmem:[%s884 + $0x20] sm:$0xff]
        %v901 = vld [vmem:[%s884 + $0x28] sm:$0xff]
        %v902 = vld [vmem:[%s884 + $0x30] sm:$0xff]
        %v903 = vld [vmem:[%s884 + $0x38] sm:$0xff]
        %v904 = vld [vmem:[%s884 + $0x40] sm:$0xff]
        %v905 = vld [vmem:[%s884 + $0x48] sm:$0xff]
        %v906 = vld [vmem:[%s884 + $0x50] sm:$0xff]
        %v907 = vld [vmem:[%s884 + $0x58] sm:$0xff]
        %v908 = vld [vmem:[%s884 + $0x60] sm:$0xff]
        %v909 = vld [vmem:[%s884 + $0x68] sm:$0xff]
        %v910 = vld [vmem:[%s884 + $0x70] sm:$0xff]
        %v911 = vld [vmem:[%s884 + $0x78] sm:$0xff]
        %v912 = vld [vmem:[%s889] sm:$0xff]
        %v913 = vld [vmem:[%s889 + $0x8] sm:$0xff]
        %v914 = vld [vmem:[%s889 + $0x10] sm:$0xff]
        %v915 = vld [vmem:[%s889 + $0x18] sm:$0xff]
        %v916 = vld [vmem:[%s889 + $0x20] sm:$0xff]
        %v917 = vld [vmem:[%s889 + $0x28] sm:$0xff]
        %v918 = vld [vmem:[%s889 + $0x30] sm:$0xff]
        %v919 = vld [vmem:[%s889 + $0x38] sm:$0xff]
        %v920 = vld [vmem:[%s889 + $0x40] sm:$0xff]
        %v921 = vld [vmem:[%s889 + $0x48] sm:$0xff]
        %v922 = vld [vmem:[%s889 + $0x50] sm:$0xff]
        %v923 = vld [vmem:[%s889 + $0x58] sm:$0xff]
        %v924 = vld [vmem:[%s889 + $0x60] sm:$0xff]
        %v925 = vld [vmem:[%s889 + $0x68] sm:$0xff]
        %v926 = vld [vmem:[%s889 + $0x70] sm:$0xff]
        %v927 = vld [vmem:[%s889 + $0x78] sm:$0xff]
        %v928 = vld [vmem:[#allocation4] sm:$0x7]
        %v929 = vld [vmem:[%s3] sm:$0x1]
        %v931 = vperm.slane %v929, 0
        %vm933 = vcmask 23552
        %v935 = vsel %vm933, %v896, 0
        %v938 = vsel %vm933, %v897, 0
        %v941 = vsel %vm933, %v898, 0
        %v944 = vsel %vm933, %v899, 0
        %v947 = vsel %vm933, %v900, 0
        %v950 = vsel %vm933, %v901, 0
        %v953 = vsel %vm933, %v902, 0
        %v956 = vsel %vm933, %v903, 0
        %v959 = vsel %vm933, %v904, 0
        %v962 = vsel %vm933, %v905, 0
        %v965 = vsel %vm933, %v906, 0
        %v968 = vsel %vm933, %v907, 0
        %v971 = vsel %vm933, %v908, 0
        %v974 = vsel %vm933, %v909, 0
        %v977 = vsel %vm933, %v910, 0
        %v980 = vsel %vm933, %v911, 0
        %vm982 = vcmask 1042432
        %v984 = vsel %vm982, %v928, 0
        %986 = vmatpush.msra.mxu0 0.0
        %987 = vmatpush.msra.mxu0 0.0
        %988 = vmatpush.msra.mxu0 0.0
        %989 = vmatpush.msra.mxu0 0.0
        %990 = vmatpush.msra.mxu0 0.0
        %991 = vmatpush.msra.mxu0 0.0
        %992 = vmatpush.msra.mxu0 0.0
        %993 = vmatpush.msra.mxu0 0.0
        %994 = vmatpush.msra.mxu0 0.0
        %995 = vmatpush.msra.mxu0 0.0
        %996 = vmatpush.msra.mxu0 0.0
        %997 = vmatpush.msra.mxu0 0.0
        %998 = vmatpush.msra.mxu0 0.0
        %999 = vmatpush.msra.mxu0 0.0
        %1000 = vmatpush.msra.mxu0 0.0
        %1001 = vmatpush.msra.mxu0 %v984
        %1002 = vmatmul.f32.gmra.mxu0 %v935
        %v1003 = vpop.f32.mrf.mxu0
        %v1004 = vadd.f32 %v931, %v1003
        %1005 = vmatmul.f32.gmra.mxu0 %v938
        %v1006 = vpop.f32.mrf.mxu0
        %v1007 = vadd.f32 %v931, %v1006
        %1008 = vmatmul.f32.gmra.mxu0 %v941
        %v1009 = vpop.f32.mrf.mxu0
        %v1010 = vadd.f32 %v931, %v1009
        %1011 = vmatmul.f32.gmra.mxu0 %v944
        %v1012 = vpop.f32.mrf.mxu0
        %v1013 = vadd.f32 %v931, %v1012
        %1014 = vmatmul.f32.gmra.mxu0 %v947
        %v1015 = vpop.f32.mrf.mxu0
        %v1016 = vadd.f32 %v931, %v1015
        %1017 = vmatmul.f32.gmra.mxu0 %v950
        %v1018 = vpop.f32.mrf.mxu0
        %v1019 = vadd.f32 %v931, %v1018
        %1020 = vmatmul.f32.gmra.mxu0 %v953
        %v1021 = vpop.f32.mrf.mxu0
        %v1022 = vadd.f32 %v931, %v1021
        %1023 = vmatmul.f32.gmra.mxu0 %v956
        %v1024 = vpop.f32.mrf.mxu0
        %v1025 = vadd.f32 %v931, %v1024
        %1026 = vmatmul.f32.gmra.mxu0 %v959
        %v1027 = vpop.f32.mrf.mxu0
        %v1028 = vadd.f32 %v931, %v1027
        %1029 = vmatmul.f32.gmra.mxu0 %v962
        %v1030 = vpop.f32.mrf.mxu0
        %v1031 = vadd.f32 %v931, %v1030
        %1032 = vmatmul.f32.gmra.mxu0 %v965
        %v1033 = vpop.f32.mrf.mxu0
        %v1034 = vadd.f32 %v931, %v1033
        %1035 = vmatmul.f32.gmra.mxu0 %v968
        %v1036 = vpop.f32.mrf.mxu0
        %v1037 = vadd.f32 %v931, %v1036
        %1038 = vmatmul.f32.gmra.mxu0 %v971
        %v1039 = vpop.f32.mrf.mxu0
        %v1040 = vadd.f32 %v931, %v1039
        %1041 = vmatmul.f32.gmra.mxu0 %v974
        %v1042 = vpop.f32.mrf.mxu0
        %v1043 = vadd.f32 %v931, %v1042
        %1044 = vmatmul.f32.gmra.mxu0 %v977
        %v1045 = vpop.f32.mrf.mxu0
        %v1046 = vadd.f32 %v931, %v1045
        %1047 = vmatmul.f32.gmra.mxu0 %v980
        %v1048 = vpop.f32.mrf.mxu0
        %v1049 = vadd.f32 %v931, %v1048
        %1050 = vdwg.mxu0
        %v1051 = vmax.f32 %v1004, 0.0
        %v1052 = vmax.f32 %v1007, 0.0
        %v1053 = vmax.f32 %v1010, 0.0
        %v1054 = vmax.f32 %v1013, 0.0
        %v1055 = vmax.f32 %v1016, 0.0
        %v1056 = vmax.f32 %v1019, 0.0
        %v1057 = vmax.f32 %v1022, 0.0
        %v1058 = vmax.f32 %v1025, 0.0
        %v1059 = vmax.f32 %v1028, 0.0
        %v1060 = vmax.f32 %v1031, 0.0
        %v1061 = vmax.f32 %v1034, 0.0
        %v1062 = vmax.f32 %v1037, 0.0
        %v1063 = vmax.f32 %v1040, 0.0
        %v1064 = vmax.f32 %v1043, 0.0
        %v1065 = vmax.f32 %v1046, 0.0
        %v1066 = vmax.f32 %v1049, 0.0
        %v1067 = vpack.c.bf16 %v1052, %v1051
        %v1068 = vpack.c.bf16 %v1054, %v1053
        %v1069 = vpack.c.bf16 %v1056, %v1055
        %v1070 = vpack.c.bf16 %v1058, %v1057
        %v1071 = vpack.c.bf16 %v1060, %v1059
        %v1072 = vpack.c.bf16 %v1062, %v1061
        %v1073 = vpack.c.bf16 %v1064, %v1063
        %v1074 = vpack.c.bf16 %v1066, %v1065
        %v1075 = vld [vmem:[#allocation6] sm:$0xf]
        %v1076 = vld [vmem:[#allocation6 + $0x4] sm:$0xf]
        %v1077 = vld [vmem:[#allocation6 + $0x8] sm:$0xf]
        %v1078 = vld [vmem:[#allocation6 + $0xc] sm:$0xf]
        %v1079 = vld [vmem:[#allocation6 + $0x10] sm:$0xf]
        %v1080 = vld [vmem:[#allocation6 + $0x14] sm:$0xf]
        %v1081 = vld [vmem:[#allocation6 + $0x18] sm:$0xf]
        %v1082 = vld [vmem:[#allocation6 + $0x1c] sm:$0xf]
        %v1083 = vld [vmem:[%s5] sm:$0x1]
        %v1085 = vperm.slane %v1083, 0
        %v1095 = vunpack.c.l.b16 %v1075
        %v1096 = vunpack.c.l.b16 %v1076
        %v1097 = vunpack.c.l.b16 %v1077
        %v1098 = vunpack.c.l.b16 %v1078
        %v1099 = vunpack.c.l.b16 %v1079
        %v1100 = vunpack.c.l.b16 %v1080
        %v1101 = vunpack.c.l.b16 %v1081
        %v1102 = vunpack.c.l.b16 %v1082
        %v1103 = vpack.c.b16 %v1096, %v1095
        %v1104 = vpack.c.b16 %v1098, %v1097
        %v1105 = vpack.c.b16 %v1100, %v1099
        %v1106 = vpack.c.b16 %v1102, %v1101
        %vm1111 = vcmask 523264
        %v1113 = vsel %vm1111, %v1067, 0
        %v1116 = vsel %vm1111, %v1068, 0
        %v1119 = vsel %vm1111, %v1069, 0
        %v1122 = vsel %vm1111, %v1070, 0
        %v1125 = vsel %vm1111, %v1071, 0
        %v1128 = vsel %vm1111, %v1072, 0
        %v1131 = vsel %vm1111, %v1073, 0
        %v1134 = vsel %vm1111, %v1074, 0
        %1136 = vmatpush.bf16.msra.mxu0 0
        %1137 = vmatpush.bf16.msra.mxu0 0
        %1138 = vmatpush.bf16.msra.mxu0 0
        %1139 = vmatpush.bf16.msra.mxu0 0
        %1140 = vmatpush.bf16.msra.mxu0 %v1106
        %1141 = vmatpush.bf16.msra.mxu0 %v1105
        %1142 = vmatpush.bf16.msra.mxu0 %v1104
        %1143 = vmatpush.bf16.msra.mxu0 %v1103
        %1144 = vmatmul.bf16.gmra.mxu0 %v1113
        %v1145 = vpop.f32.mrf.mxu0
        %v1146 = vadd.f32 %v1085, %v1145
        %v1147 = vpop.f32.mrf.mxu0
        %v1148 = vadd.f32 %v1085, %v1147
        %1149 = vmatmul.bf16.gmra.mxu0 %v1116
        %v1150 = vpop.f32.mrf.mxu0
        %v1151 = vadd.f32 %v1085, %v1150
        %v1152 = vpop.f32.mrf.mxu0
        %v1153 = vadd.f32 %v1085, %v1152
        %1154 = vmatmul.bf16.gmra.mxu0 %v1119
        %v1155 = vpop.f32.mrf.mxu0
        %v1156 = vadd.f32 %v1085, %v1155
        %v1157 = vpop.f32.mrf.mxu0
        %v1158 = vadd.f32 %v1085, %v1157
        %1159 = vmatmul.bf16.gmra.mxu0 %v1122
        %v1160 = vpop.f32.mrf.mxu0
        %v1161 = vadd.f32 %v1085, %v1160
        %v1162 = vpop.f32.mrf.mxu0
        %v1163 = vadd.f32 %v1085, %v1162
        %1164 = vmatmul.bf16.gmra.mxu0 %v1125
        %v1165 = vpop.f32.mrf.mxu0
        %v1166 = vadd.f32 %v1085, %v1165
        %v1167 = vpop.f32.mrf.mxu0
        %v1168 = vadd.f32 %v1085, %v1167
        %1169 = vmatmul.bf16.gmra.mxu0 %v1128
        %v1170 = vpop.f32.mrf.mxu0
        %v1171 = vadd.f32 %v1085, %v1170
        %v1172 = vpop.f32.mrf.mxu0
        %v1173 = vadd.f32 %v1085, %v1172
        %1174 = vmatmul.bf16.gmra.mxu0 %v1131
        %v1175 = vpop.f32.mrf.mxu0
        %v1176 = vadd.f32 %v1085, %v1175
        %v1177 = vpop.f32.mrf.mxu0
        %v1178 = vadd.f32 %v1085, %v1177
        %1179 = vmatmul.bf16.gmra.mxu0 %v1134
        %v1180 = vpop.f32.mrf.mxu0
        %v1181 = vadd.f32 %v1085, %v1180
        %v1182 = vpop.f32.mrf.mxu0
        %v1183 = vadd.f32 %v1085, %v1182
        %1184 = vdwg.mxu0
        %v1186 = vsel %vm933, %v912, 0
        %v1189 = vsel %vm933, %v913, 0
        %v1192 = vsel %vm933, %v914, 0
        %v1195 = vsel %vm933, %v915, 0
        %v1198 = vsel %vm933, %v916, 0
        %v1201 = vsel %vm933, %v917, 0
        %v1204 = vsel %vm933, %v918, 0
        %v1207 = vsel %vm933, %v919, 0
        %v1210 = vsel %vm933, %v920, 0
        %v1213 = vsel %vm933, %v921, 0
        %v1216 = vsel %vm933, %v922, 0
        %v1219 = vsel %vm933, %v923, 0
        %v1222 = vsel %vm933, %v924, 0
        %v1225 = vsel %vm933, %v925, 0
        %v1228 = vsel %vm933, %v926, 0
        %v1231 = vsel %vm933, %v927, 0
        %1233 = vmatpush.msra.mxu0 0.0
        %1234 = vmatpush.msra.mxu0 0.0
        %1235 = vmatpush.msra.mxu0 0.0
        %1236 = vmatpush.msra.mxu0 0.0
        %1237 = vmatpush.msra.mxu0 0.0
        %1238 = vmatpush.msra.mxu0 0.0
        %1239 = vmatpush.msra.mxu0 0.0
        %1240 = vmatpush.msra.mxu0 0.0
        %1241 = vmatpush.msra.mxu0 0.0
        %1242 = vmatpush.msra.mxu0 0.0
        %1243 = vmatpush.msra.mxu0 0.0
        %1244 = vmatpush.msra.mxu0 0.0
        %1245 = vmatpush.msra.mxu0 0.0
        %1246 = vmatpush.msra.mxu0 0.0
        %1247 = vmatpush.msra.mxu0 0.0
        %1248 = vmatpush.msra.mxu0 %v984
        %1249 = vmatmul.f32.gmra.mxu0 %v1186
        %v1250 = vpop.f32.mrf.mxu0
        %v1251 = vadd.f32 %v931, %v1250
        %1252 = vmatmul.f32.gmra.mxu0 %v1189
        %v1253 = vpop.f32.mrf.mxu0
        %v1254 = vadd.f32 %v931, %v1253
        %1255 = vmatmul.f32.gmra.mxu0 %v1192
        %v1256 = vpop.f32.mrf.mxu0
        %v1257 = vadd.f32 %v931, %v1256
        %1258 = vmatmul.f32.gmra.mxu0 %v1195
        %v1259 = vpop.f32.mrf.mxu0
        %v1260 = vadd.f32 %v931, %v1259
        %1261 = vmatmul.f32.gmra.mxu0 %v1198
        %v1262 = vpop.f32.mrf.mxu0
        %v1263 = vadd.f32 %v931, %v1262
        %1264 = vmatmul.f32.gmra.mxu0 %v1201
        %v1265 = vpop.f32.mrf.mxu0
        %v1266 = vadd.f32 %v931, %v1265
        %1267 = vmatmul.f32.gmra.mxu0 %v1204
        %v1268 = vpop.f32.mrf.mxu0
        %v1269 = vadd.f32 %v931, %v1268
        %1270 = vmatmul.f32.gmra.mxu0 %v1207
        %v1271 = vpop.f32.mrf.mxu0
        %v1272 = vadd.f32 %v931, %v1271
        %1273 = vmatmul.f32.gmra.mxu0 %v1210
        %v1274 = vpop.f32.mrf.mxu0
        %v1275 = vadd.f32 %v931, %v1274
        %1276 = vmatmul.f32.gmra.mxu0 %v1213
        %v1277 = vpop.f32.mrf.mxu0
        %v1278 = vadd.f32 %v931, %v1277
        %1279 = vmatmul.f32.gmra.mxu0 %v1216
        %v1280 = vpop.f32.mrf.mxu0
        %v1281 = vadd.f32 %v931, %v1280
        %1282 = vmatmul.f32.gmra.mxu0 %v1219
        %v1283 = vpop.f32.mrf.mxu0
        %v1284 = vadd.f32 %v931, %v1283
        %1285 = vmatmul.f32.gmra.mxu0 %v1222
        %v1286 = vpop.f32.mrf.mxu0
        %v1287 = vadd.f32 %v931, %v1286
        %1288 = vmatmul.f32.gmra.mxu0 %v1225
        %v1289 = vpop.f32.mrf.mxu0
        %v1290 = vadd.f32 %v931, %v1289
        %1291 = vmatmul.f32.gmra.mxu0 %v1228
        %v1292 = vpop.f32.mrf.mxu0
        %v1293 = vadd.f32 %v931, %v1292
        %1294 = vmatmul.f32.gmra.mxu0 %v1231
        %v1295 = vpop.f32.mrf.mxu0
        %v1296 = vadd.f32 %v931, %v1295
        %1297 = vdwg.mxu0
        %v1298 = vmax.f32 %v1251, 0.0
        %v1299 = vmax.f32 %v1254, 0.0
        %v1300 = vmax.f32 %v1257, 0.0
        %v1301 = vmax.f32 %v1260, 0.0
        %v1302 = vmax.f32 %v1263, 0.0
        %v1303 = vmax.f32 %v1266, 0.0
        %v1304 = vmax.f32 %v1269, 0.0
        %v1305 = vmax.f32 %v1272, 0.0
        %v1306 = vmax.f32 %v1275, 0.0
        %v1307 = vmax.f32 %v1278, 0.0
        %v1308 = vmax.f32 %v1281, 0.0
        %v1309 = vmax.f32 %v1284, 0.0
        %v1310 = vmax.f32 %v1287, 0.0
        %v1311 = vmax.f32 %v1290, 0.0
        %v1312 = vmax.f32 %v1293, 0.0
        %v1313 = vmax.f32 %v1296, 0.0
        %v1314 = vpack.c.bf16 %v1299, %v1298
        %v1315 = vpack.c.bf16 %v1301, %v1300
        %v1316 = vpack.c.bf16 %v1303, %v1302
        %v1317 = vpack.c.bf16 %v1305, %v1304
        %v1318 = vpack.c.bf16 %v1307, %v1306
        %v1319 = vpack.c.bf16 %v1309, %v1308
        %v1320 = vpack.c.bf16 %v1311, %v1310
        %v1321 = vpack.c.bf16 %v1313, %v1312
        %v1323 = vsel %vm1111, %v1314, 0
        %v1326 = vsel %vm1111, %v1315, 0
        %v1329 = vsel %vm1111, %v1316, 0
        %v1332 = vsel %vm1111, %v1317, 0
        %v1335 = vsel %vm1111, %v1318, 0
        %v1338 = vsel %vm1111, %v1319, 0
        %v1341 = vsel %vm1111, %v1320, 0
        %v1344 = vsel %vm1111, %v1321, 0
        %1346 = vmatpush.bf16.msra.mxu0 0
        %1347 = vmatpush.bf16.msra.mxu0 0
        %1348 = vmatpush.bf16.msra.mxu0 0
        %1349 = vmatpush.bf16.msra.mxu0 0
        %1350 = vmatpush.bf16.msra.mxu0 %v1106
        %1351 = vmatpush.bf16.msra.mxu0 %v1105
        %1352 = vmatpush.bf16.msra.mxu0 %v1104
        %1353 = vmatpush.bf16.msra.mxu0 %v1103
        %1354 = vmatmul.bf16.gmra.mxu0 %v1323
        %v1355 = vpop.f32.mrf.mxu0
        %v1356 = vadd.f32 %v1085, %v1355
        %v1357 = vpop.f32.mrf.mxu0
        %v1358 = vadd.f32 %v1085, %v1357
        %1359 = vmatmul.bf16.gmra.mxu0 %v1326
        %v1360 = vpop.f32.mrf.mxu0
        %v1361 = vadd.f32 %v1085, %v1360
        %v1362 = vpop.f32.mrf.mxu0
        %v1363 = vadd.f32 %v1085, %v1362
        %1364 = vmatmul.bf16.gmra.mxu0 %v1329
        %v1365 = vpop.f32.mrf.mxu0
        %v1366 = vadd.f32 %v1085, %v1365
        %v1367 = vpop.f32.mrf.mxu0
        %v1368 = vadd.f32 %v1085, %v1367
        %1369 = vmatmul.bf16.gmra.mxu0 %v1332
        %v1370 = vpop.f32.mrf.mxu0
        %v1371 = vadd.f32 %v1085, %v1370
        %v1372 = vpop.f32.mrf.mxu0
        %v1373 = vadd.f32 %v1085, %v1372
        %1374 = vmatmul.bf16.gmra.mxu0 %v1335
        %v1375 = vpop.f32.mrf.mxu0
        %v1376 = vadd.f32 %v1085, %v1375
        %v1377 = vpop.f32.mrf.mxu0
        %v1378 = vadd.f32 %v1085, %v1377
        %1379 = vmatmul.bf16.gmra.mxu0 %v1338
        %v1380 = vpop.f32.mrf.mxu0
        %v1381 = vadd.f32 %v1085, %v1380
        %v1382 = vpop.f32.mrf.mxu0
        %v1383 = vadd.f32 %v1085, %v1382
        %1384 = vmatmul.bf16.gmra.mxu0 %v1341
        %v1385 = vpop.f32.mrf.mxu0
        %v1386 = vadd.f32 %v1085, %v1385
        %v1387 = vpop.f32.mrf.mxu0
        %v1388 = vadd.f32 %v1085, %v1387
        %1389 = vmatmul.bf16.gmra.mxu0 %v1344
        %v1390 = vpop.f32.mrf.mxu0
        %v1391 = vadd.f32 %v1085, %v1390
        %v1392 = vpop.f32.mrf.mxu0
        %v1393 = vadd.f32 %v1085, %v1392
        %1394 = vdwg.mxu0
        %v1395 = vpack.c.bf16 %v1148, %v1146
        %v1396 = vpack.c.bf16 %v1153, %v1151
        %v1397 = vpack.c.bf16 %v1158, %v1156
        %v1398 = vpack.c.bf16 %v1163, %v1161
        %v1399 = vpack.c.bf16 %v1168, %v1166
        %v1400 = vpack.c.bf16 %v1173, %v1171
        %v1401 = vpack.c.bf16 %v1178, %v1176
        %v1402 = vpack.c.bf16 %v1183, %v1181
        %v1403 = vpack.c.bf16 %v1358, %v1356
        %v1404 = vpack.c.bf16 %v1363, %v1361
        %v1405 = vpack.c.bf16 %v1368, %v1366
        %v1406 = vpack.c.bf16 %v1373, %v1371
        %v1407 = vpack.c.bf16 %v1378, %v1376
        %v1408 = vpack.c.bf16 %v1383, %v1381
        %v1409 = vpack.c.bf16 %v1388, %v1386
        %v1410 = vpack.c.bf16 %v1393, %v1391
        %v1412 = vsel %vm1111, %v1395, 0
        %v1415 = vsel %vm1111, %v1396, 0
        %v1418 = vsel %vm1111, %v1397, 0
        %v1421 = vsel %vm1111, %v1398, 0
        %v1424 = vsel %vm1111, %v1399, 0
        %v1427 = vsel %vm1111, %v1400, 0
        %v1430 = vsel %vm1111, %v1401, 0
        %v1433 = vsel %vm1111, %v1402, 0
        %v1436 = vsel %vm1111, %v1403, 0
        %v1439 = vsel %vm1111, %v1404, 0
        %v1442 = vsel %vm1111, %v1405, 0
        %v1445 = vsel %vm1111, %v1406, 0
        %v1448 = vsel %vm1111, %v1407, 0
        %v1451 = vsel %vm1111, %v1408, 0
        %v1454 = vsel %vm1111, %v1409, 0
        %v1457 = vsel %vm1111, %v1410, 0
        %1459 = vmatpush.bf16.xpose.msra.mxu0 %v1457
        %1460 = vmatpush.bf16.xpose.msra.mxu0 %v1454
        %1461 = vmatpush.bf16.xpose.msra.mxu0 %v1451
        %1462 = vmatpush.bf16.xpose.msra.mxu0 %v1448
        %1463 = vmatpush.bf16.xpose.msra.mxu0 %v1445
        %1464 = vmatpush.bf16.xpose.msra.mxu0 %v1442
        %1465 = vmatpush.bf16.xpose.msra.mxu0 %v1439
        %1466 = vmatpush.bf16.xpose.msra.mxu0 %v1436
        %1467 = vmatmul.bf16.gmra.mxu0 %v1412
        %v1468 = vpop.f32.mrf.mxu0
        %v1469 = vadd.f32 0.0, %v1468
        %v1470 = vpop.f32.mrf.mxu0
        %v1471 = vadd.f32 0.0, %v1470
        %1472 = vmatmul.bf16.gmra.mxu0 %v1415
        %v1473 = vpop.f32.mrf.mxu0
        %v1474 = vadd.f32 0.0, %v1473
        %v1475 = vpop.f32.mrf.mxu0
        %v1476 = vadd.f32 0.0, %v1475
        %1477 = vmatmul.bf16.gmra.mxu0 %v1418
        %v1478 = vpop.f32.mrf.mxu0
        %v1479 = vadd.f32 0.0, %v1478
        %v1480 = vpop.f32.mrf.mxu0
        %v1481 = vadd.f32 0.0, %v1480
        %1482 = vmatmul.bf16.gmra.mxu0 %v1421
        %v1483 = vpop.f32.mrf.mxu0
        %v1484 = vadd.f32 0.0, %v1483
        %v1485 = vpop.f32.mrf.mxu0
        %v1486 = vadd.f32 0.0, %v1485
        %1487 = vmatmul.bf16.gmra.mxu0 %v1424
        %v1488 = vpop.f32.mrf.mxu0
        %v1489 = vadd.f32 0.0, %v1488
        %v1490 = vpop.f32.mrf.mxu0
        %v1491 = vadd.f32 0.0, %v1490
        %1492 = vmatmul.bf16.gmra.mxu0 %v1427
        %v1493 = vpop.f32.mrf.mxu0
        %v1494 = vadd.f32 0.0, %v1493
        %v1495 = vpop.f32.mrf.mxu0
        %v1496 = vadd.f32 0.0, %v1495
        %1497 = vmatmul.bf16.gmra.mxu0 %v1430
        %v1498 = vpop.f32.mrf.mxu0
        %v1499 = vadd.f32 0.0, %v1498
        %v1500 = vpop.f32.mrf.mxu0
        %v1501 = vadd.f32 0.0, %v1500
        %1502 = vmatmul.bf16.gmra.mxu0 %v1433
        %v1503 = vpop.f32.mrf.mxu0
        %v1504 = vadd.f32 0.0, %v1503
        %v1505 = vpop.f32.mrf.mxu0
        %v1506 = vadd.f32 0.0, %v1505
        %1507 = vdwg.mxu0
        %v1508 = vmul.f32 %v1469, 0.125
        %v1509 = vmul.f32 %v1471, 0.125
        %v1510 = vmul.f32 %v1474, 0.125
        %v1511 = vmul.f32 %v1476, 0.125
        %v1512 = vmul.f32 %v1479, 0.125
        %v1513 = vmul.f32 %v1481, 0.125
        %v1514 = vmul.f32 %v1484, 0.125
        %v1515 = vmul.f32 %v1486, 0.125
        %v1516 = vmul.f32 %v1489, 0.125
        %v1517 = vmul.f32 %v1491, 0.125
        %v1518 = vmul.f32 %v1494, 0.125
        %v1519 = vmul.f32 %v1496, 0.125
        %v1520 = vmul.f32 %v1499, 0.125
        %v1521 = vmul.f32 %v1501, 0.125
        %v1522 = vmul.f32 %v1504, 0.125
        %v1523 = vmul.f32 %v1506, 0.125
        %1524 = vst [vmem:[#allocation2] sm:$0xff] %v1508
        %1525 = vst [vmem:[#allocation2 + $0x8] sm:$0xff] %v1509
        %1526 = vst [vmem:[#allocation2 + $0x10] sm:$0xff] %v1510
        %1527 = vst [vmem:[#allocation2 + $0x18] sm:$0xff] %v1511
        %1528 = vst [vmem:[#allocation2 + $0x20] sm:$0xff] %v1512
        %1529 = vst [vmem:[#allocation2 + $0x28] sm:$0xff] %v1513
        %1530 = vst [vmem:[#allocation2 + $0x30] sm:$0xff] %v1514
        %1531 = vst [vmem:[#allocation2 + $0x38] sm:$0xff] %v1515
        %1532 = vst [vmem:[#allocation2 + $0x40] sm:$0xff] %v1516
        %1533 = vst [vmem:[#allocation2 + $0x48] sm:$0xff] %v1517
        %1534 = vst [vmem:[#allocation2 + $0x50] sm:$0xff] %v1518
        %1535 = vst [vmem:[#allocation2 + $0x58] sm:$0xff] %v1519
        %1536 = vst [vmem:[#allocation2 + $0x60] sm:$0xff] %v1520
        %1537 = vst [vmem:[#allocation2 + $0x68] sm:$0xff] %v1521
        %1538 = vst [vmem:[#allocation2 + $0x70] sm:$0xff] %v1522
        %1539 = vst [vmem:[#allocation2 + $0x78] sm:$0xff] %v1523
        %v1540 = vmul.f32 %v912, %v912
        %v1541 = vmul.f32 %v913, %v913
        %v1542 = vmul.f32 %v914, %v914
        %v1543 = vmul.f32 %v915, %v915
        %v1544 = vmul.f32 %v916, %v916
        %v1545 = vmul.f32 %v917, %v917
        %v1546 = vmul.f32 %v918, %v918
        %v1547 = vmul.f32 %v919, %v919
        %v1548 = vmul.f32 %v920, %v920
        %v1549 = vmul.f32 %v921, %v921
        %v1550 = vmul.f32 %v922, %v922
        %v1551 = vmul.f32 %v923, %v923
        %v1552 = vmul.f32 %v924, %v924
        %v1553 = vmul.f32 %v925, %v925
        %v1554 = vmul.f32 %v926, %v926
        %v1555 = vmul.f32 %v927, %v927
        %v1557 = vsel %vm933, 1.0, 0
        %v1560 = vsel %vm933, %v1540, 0
        %v1563 = vsel %vm933, %v1541, 0
        %v1566 = vsel %vm933, %v1542, 0
        %v1569 = vsel %vm933, %v1543, 0
        %v1572 = vsel %vm933, %v1544, 0
        %v1575 = vsel %vm933, %v1545, 0
        %v1578 = vsel %vm933, %v1546, 0
        %v1581 = vsel %vm933, %v1547, 0
        %v1584 = vsel %vm933, %v1548, 0
        %v1587 = vsel %vm933, %v1549, 0
        %v1590 = vsel %vm933, %v1550, 0
        %v1593 = vsel %vm933, %v1551, 0
        %v1596 = vsel %vm933, %v1552, 0
        %v1599 = vsel %vm933, %v1553, 0
        %v1602 = vsel %vm933, %v1554, 0
        %v1605 = vsel %vm933, %v1555, 0
        %1607 = vmatpush.xpose.msra.mxu0 %v1605
        %1608 = vmatpush.xpose.msra.mxu0 %v1602
        %1609 = vmatpush.xpose.msra.mxu0 %v1599
        %1610 = vmatpush.xpose.msra.mxu0 %v1596
        %1611 = vmatpush.xpose.msra.mxu0 %v1593
        %1612 = vmatpush.xpose.msra.mxu0 %v1590
        %1613 = vmatpush.xpose.msra.mxu0 %v1587
        %1614 = vmatpush.xpose.msra.mxu0 %v1584
        %1615 = vmatpush.xpose.msra.mxu0 %v1581
        %1616 = vmatpush.xpose.msra.mxu0 %v1578
        %1617 = vmatpush.xpose.msra.mxu0 %v1575
        %1618 = vmatpush.xpose.msra.mxu0 %v1572
        %1619 = vmatpush.xpose.msra.mxu0 %v1569
        %1620 = vmatpush.xpose.msra.mxu0 %v1566
        %1621 = vmatpush.xpose.msra.mxu0 %v1563
        %1622 = vmatpush.xpose.msra.mxu0 %v1560
        %1623 = vmatmul.f32.gmra.mxu0 %v1557
        %v1624 = vpop.f32.mrf.mxu0
        %v1625 = vadd.f32 0.0, %v1624
        %1626 = vdwg.mxu0
        %v1627 = vld [vmem:[#allocation8] sm:$0x7]
        %v1628 = vld [vmem:[%s7] sm:$0x1]
        %v1630 = vperm.slane %v1628, 0
        %v1633 = vsel %vm982, %v1627, 0
        %1635 = vmatpush.msra.mxu0 0.0
        %1636 = vmatpush.msra.mxu0 0.0
        %1637 = vmatpush.msra.mxu0 0.0
        %1638 = vmatpush.msra.mxu0 0.0
        %1639 = vmatpush.msra.mxu0 0.0
        %1640 = vmatpush.msra.mxu0 0.0
        %1641 = vmatpush.msra.mxu0 0.0
        %1642 = vmatpush.msra.mxu0 0.0
        %1643 = vmatpush.msra.mxu0 0.0
        %1644 = vmatpush.msra.mxu0 0.0
        %1645 = vmatpush.msra.mxu0 0.0
        %1646 = vmatpush.msra.mxu0 0.0
        %1647 = vmatpush.msra.mxu0 0.0
        %1648 = vmatpush.msra.mxu0 0.0
        %1649 = vmatpush.msra.mxu0 0.0
        %1650 = vmatpush.msra.mxu0 %v1633
        %1651 = vmatmul.f32.gmra.mxu0 %v935
        %v1652 = vpop.f32.mrf.mxu0
        %v1653 = vadd.f32 %v1630, %v1652
        %1654 = vmatmul.f32.gmra.mxu0 %v938
        %v1655 = vpop.f32.mrf.mxu0
        %v1656 = vadd.f32 %v1630, %v1655
        %1657 = vmatmul.f32.gmra.mxu0 %v941
        %v1658 = vpop.f32.mrf.mxu0
        %v1659 = vadd.f32 %v1630, %v1658
        %1660 = vmatmul.f32.gmra.mxu0 %v944
        %v1661 = vpop.f32.mrf.mxu0
        %v1662 = vadd.f32 %v1630, %v1661
        %1663 = vmatmul.f32.gmra.mxu0 %v947
        %v1664 = vpop.f32.mrf.mxu0
        %v1665 = vadd.f32 %v1630, %v1664
        %1666 = vmatmul.f32.gmra.mxu0 %v950
        %v1667 = vpop.f32.mrf.mxu0
        %v1668 = vadd.f32 %v1630, %v1667
        %1669 = vmatmul.f32.gmra.mxu0 %v953
        %v1670 = vpop.f32.mrf.mxu0
        %v1671 = vadd.f32 %v1630, %v1670
        %1672 = vmatmul.f32.gmra.mxu0 %v956
        %v1673 = vpop.f32.mrf.mxu0
        %v1674 = vadd.f32 %v1630, %v1673
        %1675 = vmatmul.f32.gmra.mxu0 %v959
        %v1676 = vpop.f32.mrf.mxu0
        %v1677 = vadd.f32 %v1630, %v1676
        %1678 = vmatmul.f32.gmra.mxu0 %v962
        %v1679 = vpop.f32.mrf.mxu0
        %v1680 = vadd.f32 %v1630, %v1679
        %1681 = vmatmul.f32.gmra.mxu0 %v965
        %v1682 = vpop.f32.mrf.mxu0
        %v1683 = vadd.f32 %v1630, %v1682
        %1684 = vmatmul.f32.gmra.mxu0 %v968
        %v1685 = vpop.f32.mrf.mxu0
        %v1686 = vadd.f32 %v1630, %v1685
        %1687 = vmatmul.f32.gmra.mxu0 %v971
        %v1688 = vpop.f32.mrf.mxu0
        %v1689 = vadd.f32 %v1630, %v1688
        %1690 = vmatmul.f32.gmra.mxu0 %v974
        %v1691 = vpop.f32.mrf.mxu0
        %v1692 = vadd.f32 %v1630, %v1691
        %1693 = vmatmul.f32.gmra.mxu0 %v977
        %v1694 = vpop.f32.mrf.mxu0
        %v1695 = vadd.f32 %v1630, %v1694
        %1696 = vmatmul.f32.gmra.mxu0 %v980
        %v1697 = vpop.f32.mrf.mxu0
        %v1698 = vadd.f32 %v1630, %v1697
        %1699 = vdwg.mxu0
        %v1700 = vmax.f32 %v1653, 0.0
        %v1701 = vmax.f32 %v1656, 0.0
        %v1702 = vmax.f32 %v1659, 0.0
        %v1703 = vmax.f32 %v1662, 0.0
        %v1704 = vmax.f32 %v1665, 0.0
        %v1705 = vmax.f32 %v1668, 0.0
        %v1706 = vmax.f32 %v1671, 0.0
        %v1707 = vmax.f32 %v1674, 0.0
        %v1708 = vmax.f32 %v1677, 0.0
        %v1709 = vmax.f32 %v1680, 0.0
        %v1710 = vmax.f32 %v1683, 0.0
        %v1711 = vmax.f32 %v1686, 0.0
        %v1712 = vmax.f32 %v1689, 0.0
        %v1713 = vmax.f32 %v1692, 0.0
        %v1714 = vmax.f32 %v1695, 0.0
        %v1715 = vmax.f32 %v1698, 0.0
        %v1716 = vpack.c.bf16 %v1701, %v1700
        %v1717 = vpack.c.bf16 %v1703, %v1702
        %v1718 = vpack.c.bf16 %v1705, %v1704
        %v1719 = vpack.c.bf16 %v1707, %v1706
        %v1720 = vpack.c.bf16 %v1709, %v1708
        %v1721 = vpack.c.bf16 %v1711, %v1710
        %v1722 = vpack.c.bf16 %v1713, %v1712
        %v1723 = vpack.c.bf16 %v1715, %v1714
        %v1724 = vld [vmem:[#allocation9] sm:$0xf]
        %v1725 = vld [vmem:[#allocation9 + $0x4] sm:$0xf]
        %v1726 = vld [vmem:[#allocation9 + $0x8] sm:$0xf]
        %v1727 = vld [vmem:[#allocation9 + $0xc] sm:$0xf]
        %v1728 = vld [vmem:[#allocation9 + $0x10] sm:$0xf]
        %v1729 = vld [vmem:[#allocation9 + $0x14] sm:$0xf]
        %v1730 = vld [vmem:[#allocation9 + $0x18] sm:$0xf]
        %v1731 = vld [vmem:[#allocation9 + $0x1c] sm:$0xf]
        %v1732 = vld [vmem:[%s9] sm:$0x1]
        %v1734 = vperm.slane %v1732, 0
        %v1744 = vunpack.c.l.b16 %v1724
        %v1745 = vunpack.c.l.b16 %v1725
        %v1746 = vunpack.c.l.b16 %v1726
        %v1747 = vunpack.c.l.b16 %v1727
        %v1748 = vunpack.c.l.b16 %v1728
        %v1749 = vunpack.c.l.b16 %v1729
        %v1750 = vunpack.c.l.b16 %v1730
        %v1751 = vunpack.c.l.b16 %v1731
        %v1752 = vpack.c.b16 %v1745, %v1744
        %v1753 = vpack.c.b16 %v1747, %v1746
        %v1754 = vpack.c.b16 %v1749, %v1748
        %v1755 = vpack.c.b16 %v1751, %v1750
        %v1761 = vsel %vm1111, %v1716, 0
        %v1764 = vsel %vm1111, %v1717, 0
        %v1767 = vsel %vm1111, %v1718, 0
        %v1770 = vsel %vm1111, %v1719, 0
        %v1773 = vsel %vm1111, %v1720, 0
        %v1776 = vsel %vm1111, %v1721, 0
        %v1779 = vsel %vm1111, %v1722, 0
        %v1782 = vsel %vm1111, %v1723, 0
        %1784 = vmatpush.bf16.msra.mxu0 0
        %1785 = vmatpush.bf16.msra.mxu0 0
        %1786 = vmatpush.bf16.msra.mxu0 0
        %1787 = vmatpush.bf16.msra.mxu0 0
        %1788 = vmatpush.bf16.msra.mxu0 %v1755
        %1789 = vmatpush.bf16.msra.mxu0 %v1754
        %1790 = vmatpush.bf16.msra.mxu0 %v1753
        %1791 = vmatpush.bf16.msra.mxu0 %v1752
        %1792 = vmatmul.bf16.gmra.mxu0 %v1761
        %v1793 = vpop.f32.mrf.mxu0
        %v1794 = vadd.f32 %v1734, %v1793
        %v1795 = vpop.f32.mrf.mxu0
        %v1796 = vadd.f32 %v1734, %v1795
        %1797 = vmatmul.bf16.gmra.mxu0 %v1764
        %v1798 = vpop.f32.mrf.mxu0
        %v1799 = vadd.f32 %v1734, %v1798
        %v1800 = vpop.f32.mrf.mxu0
        %v1801 = vadd.f32 %v1734, %v1800
        %1802 = vmatmul.bf16.gmra.mxu0 %v1767
        %v1803 = vpop.f32.mrf.mxu0
        %v1804 = vadd.f32 %v1734, %v1803
        %v1805 = vpop.f32.mrf.mxu0
        %v1806 = vadd.f32 %v1734, %v1805
        %1807 = vmatmul.bf16.gmra.mxu0 %v1770
        %v1808 = vpop.f32.mrf.mxu0
        %v1809 = vadd.f32 %v1734, %v1808
        %v1810 = vpop.f32.mrf.mxu0
        %v1811 = vadd.f32 %v1734, %v1810
        %1812 = vmatmul.bf16.gmra.mxu0 %v1773
        %v1813 = vpop.f32.mrf.mxu0
        %v1814 = vadd.f32 %v1734, %v1813
        %v1815 = vpop.f32.mrf.mxu0
        %v1816 = vadd.f32 %v1734, %v1815
        %1817 = vmatmul.bf16.gmra.mxu0 %v1776
        %v1818 = vpop.f32.mrf.mxu0
        %v1819 = vadd.f32 %v1734, %v1818
        %v1820 = vpop.f32.mrf.mxu0
        %v1821 = vadd.f32 %v1734, %v1820
        %1822 = vmatmul.bf16.gmra.mxu0 %v1779
        %v1823 = vpop.f32.mrf.mxu0
        %v1824 = vadd.f32 %v1734, %v1823
        %v1825 = vpop.f32.mrf.mxu0
        %v1826 = vadd.f32 %v1734, %v1825
        %1827 = vmatmul.bf16.gmra.mxu0 %v1782
        %v1828 = vpop.f32.mrf.mxu0
        %v1829 = vadd.f32 %v1734, %v1828
        %v1830 = vpop.f32.mrf.mxu0
        %v1831 = vadd.f32 %v1734, %v1830
        %1832 = vdwg.mxu0
        %v1833 = vtanh.pop %v1794
        %v1834 = vtanh.pop %v1796
        %v1835 = vtanh.pop %v1799
        %v1836 = vtanh.pop %v1801
        %v1837 = vtanh.pop %v1804
        %v1838 = vtanh.pop %v1806
        %v1839 = vtanh.pop %v1809
        %v1840 = vtanh.pop %v1811
        %v1841 = vtanh.pop %v1814
        %v1842 = vtanh.pop %v1816
        %v1843 = vtanh.pop %v1819
        %v1844 = vtanh.pop %v1821
        %v1845 = vtanh.pop %v1824
        %v1846 = vtanh.pop %v1826
        %v1847 = vtanh.pop %v1829
        %v1848 = vtanh.pop %v1831
        %v1849 = vmax.f32 %v1794, 0.0
        %v1850 = vmax.f32 %v1796, 0.0
        %v1851 = vmax.f32 %v1799, 0.0
        %v1852 = vmax.f32 %v1801, 0.0
        %v1853 = vmax.f32 %v1804, 0.0
        %v1854 = vmax.f32 %v1806, 0.0
        %v1855 = vmax.f32 %v1809, 0.0
        %v1856 = vmax.f32 %v1811, 0.0
        %v1857 = vmax.f32 %v1814, 0.0
        %v1858 = vmax.f32 %v1816, 0.0
        %v1859 = vmax.f32 %v1819, 0.0
        %v1860 = vmax.f32 %v1821, 0.0
        %v1861 = vmax.f32 %v1824, 0.0
        %v1862 = vmax.f32 %v1826, 0.0
        %v1863 = vmax.f32 %v1829, 0.0
        %v1864 = vmax.f32 %v1831, 0.0
        %v1865 = vpack.c.bf16 %v1850, %v1849
        %v1866 = vpack.c.bf16 %v1852, %v1851
        %v1867 = vpack.c.bf16 %v1854, %v1853
        %v1868 = vpack.c.bf16 %v1856, %v1855
        %v1869 = vpack.c.bf16 %v1858, %v1857
        %v1870 = vpack.c.bf16 %v1860, %v1859
        %v1871 = vpack.c.bf16 %v1862, %v1861
        %v1872 = vpack.c.bf16 %v1864, %v1863
        %v1873 = vld [vmem:[#allocation14] sm:$0xff]
        %v1874 = vld [vmem:[#allocation14 + $0x8] sm:$0xff]
        %v1875 = vld [vmem:[#allocation14 + $0x10] sm:$0xff]
        %v1876 = vld [vmem:[#allocation14 + $0x18] sm:$0xff]
        %v1877 = vld [vmem:[#allocation14 + $0x20] sm:$0xff]
        %v1878 = vld [vmem:[#allocation14 + $0x28] sm:$0xff]
        %v1879 = vld [vmem:[#allocation14 + $0x30] sm:$0xff]
        %v1880 = vld [vmem:[#allocation14 + $0x38] sm:$0xff]
        %v1881 = vld [vmem:[%s14] sm:$0x3]
        %v1883 = vperm.slane %v1881, 0
        %v1884 = vperm.slane %v1881, 1
        %1895 = vrot.lane.b32.xlu0 %v1865, 64
        %v1896 = vpop.permute.xlu0 %1895
        %1897 = vrot.lane.b32.xlu0 %v1866, 64
        %v1898 = vpop.permute.xlu0 %1897
        %1899 = vrot.lane.b32.xlu0 %v1867, 64
        %v1900 = vpop.permute.xlu0 %1899
        %1901 = vrot.lane.b32.xlu0 %v1868, 64
        %v1902 = vpop.permute.xlu0 %1901
        %1903 = vrot.lane.b32.xlu0 %v1869, 64
        %v1904 = vpop.permute.xlu0 %1903
        %1905 = vrot.lane.b32.xlu0 %v1870, 64
        %v1906 = vpop.permute.xlu0 %1905
        %1907 = vrot.lane.b32.xlu0 %v1871, 64
        %v1908 = vpop.permute.xlu0 %1907
        %1909 = vrot.lane.b32.xlu0 %v1872, 64
        %v1910 = vpop.permute.xlu0 %1909
        %v1919 = vunpack.c.l.b16 %v1873
        %v1920 = vunpack.c.h.b16 %v1873
        %v1921 = vunpack.c.l.b16 %v1874
        %v1922 = vunpack.c.h.b16 %v1874
        %v1923 = vunpack.c.l.b16 %v1875
        %v1924 = vunpack.c.h.b16 %v1875
        %v1925 = vunpack.c.l.b16 %v1876
        %v1926 = vunpack.c.h.b16 %v1876
        %v1927 = vunpack.c.l.b16 %v1877
        %v1928 = vunpack.c.h.b16 %v1877
        %v1929 = vunpack.c.l.b16 %v1878
        %v1930 = vunpack.c.h.b16 %v1878
        %v1931 = vunpack.c.l.b16 %v1879
        %v1932 = vunpack.c.h.b16 %v1879
        %v1933 = vunpack.c.l.b16 %v1880
        %v1934 = vunpack.c.h.b16 %v1880
        %v1935 = vpack.c.b16 %v1921, %v1919
        %v1936 = vpack.c.b16 %v1922, %v1920
        %v1937 = vpack.c.b16 %v1925, %v1923
        %v1938 = vpack.c.b16 %v1926, %v1924
        %v1939 = vpack.c.b16 %v1929, %v1927
        %v1940 = vpack.c.b16 %v1930, %v1928
        %v1941 = vpack.c.b16 %v1933, %v1931
        %v1942 = vpack.c.b16 %v1934, %v1932
        %v1952 = vsel %vm1111, %v1896, 0
        %v1955 = vsel %vm1111, %v1898, 0
        %v1958 = vsel %vm1111, %v1900, 0
        %v1961 = vsel %vm1111, %v1902, 0
        %v1964 = vsel %vm1111, %v1904, 0
        %v1967 = vsel %vm1111, %v1906, 0
        %v1970 = vsel %vm1111, %v1908, 0
        %v1973 = vsel %vm1111, %v1910, 0
        %1975 = vmatpush.bf16.msra.mxu0 0
        %1976 = vmatpush.bf16.msra.mxu0 0
        %1977 = vmatpush.bf16.msra.mxu0 0
        %1978 = vmatpush.bf16.msra.mxu0 0
        %1979 = vmatpush.bf16.msra.mxu0 %v1941
        %1980 = vmatpush.bf16.msra.mxu0 %v1939
        %1981 = vmatpush.bf16.msra.mxu0 %v1937
        %1982 = vmatpush.bf16.msra.mxu0 %v1935
        %1983 = vmatmul.bf16.gmra.mxu0 %v1952
        %v1984 = vpop.f32.mrf.mxu0
        %v1985 = vadd.f32 %v1883, %v1984
        %v1986 = vpop.f32.mrf.mxu0
        %v1987 = vadd.f32 %v1883, %v1986
        %1988 = vmatmul.bf16.gmra.mxu0 %v1955
        %v1989 = vpop.f32.mrf.mxu0
        %v1990 = vadd.f32 %v1883, %v1989
        %v1991 = vpop.f32.mrf.mxu0
        %v1992 = vadd.f32 %v1883, %v1991
        %1993 = vmatmul.bf16.gmra.mxu0 %v1958
        %v1994 = vpop.f32.mrf.mxu0
        %v1995 = vadd.f32 %v1883, %v1994
        %v1996 = vpop.f32.mrf.mxu0
        %v1997 = vadd.f32 %v1883, %v1996
        %1998 = vmatmul.bf16.gmra.mxu0 %v1961
        %v1999 = vpop.f32.mrf.mxu0
        %v2000 = vadd.f32 %v1883, %v1999
        %v2001 = vpop.f32.mrf.mxu0
        %v2002 = vadd.f32 %v1883, %v2001
        %2003 = vmatmul.bf16.gmra.mxu0 %v1964
        %v2004 = vpop.f32.mrf.mxu0
        %v2005 = vadd.f32 %v1883, %v2004
        %v2006 = vpop.f32.mrf.mxu0
        %v2007 = vadd.f32 %v1883, %v2006
        %2008 = vmatmul.bf16.gmra.mxu0 %v1967
        %v2009 = vpop.f32.mrf.mxu0
        %v2010 = vadd.f32 %v1883, %v2009
        %v2011 = vpop.f32.mrf.mxu0
        %v2012 = vadd.f32 %v1883, %v2011
        %2013 = vmatmul.bf16.gmra.mxu0 %v1970
        %v2014 = vpop.f32.mrf.mxu0
        %v2015 = vadd.f32 %v1883, %v2014
        %v2016 = vpop.f32.mrf.mxu0
        %v2017 = vadd.f32 %v1883, %v2016
        %2018 = vmatmul.bf16.gmra.mxu0 %v1973
        %v2019 = vpop.f32.mrf.mxu0
        %v2020 = vadd.f32 %v1883, %v2019
        %v2021 = vpop.f32.mrf.mxu0
        %v2022 = vadd.f32 %v1883, %v2021
        %2023 = vdwg.mxu0
        %2024 = vmatpush.bf16.msra.mxu0 0
        %2025 = vmatpush.bf16.msra.mxu0 0
        %2026 = vmatpush.bf16.msra.mxu0 0
        %2027 = vmatpush.bf16.msra.mxu0 0
        %2028 = vmatpush.bf16.msra.mxu0 %v1942
        %2029 = vmatpush.bf16.msra.mxu0 %v1940
        %2030 = vmatpush.bf16.msra.mxu0 %v1938
        %2031 = vmatpush.bf16.msra.mxu0 %v1936
        %2032 = vmatmul.bf16.gmra.mxu0 %v1952
        %v2033 = vpop.f32.mrf.mxu0
        %v2034 = vadd.f32 %v1884, %v2033
        %v2035 = vpop.f32.mrf.mxu0
        %v2036 = vadd.f32 %v1884, %v2035
        %2037 = vmatmul.bf16.gmra.mxu0 %v1955
        %v2038 = vpop.f32.mrf.mxu0
        %v2039 = vadd.f32 %v1884, %v2038
        %v2040 = vpop.f32.mrf.mxu0
        %v2041 = vadd.f32 %v1884, %v2040
        %2042 = vmatmul.bf16.gmra.mxu0 %v1958
        %v2043 = vpop.f32.mrf.mxu0
        %v2044 = vadd.f32 %v1884, %v2043
        %v2045 = vpop.f32.mrf.mxu0
        %v2046 = vadd.f32 %v1884, %v2045
        %2047 = vmatmul.bf16.gmra.mxu0 %v1961
        %v2048 = vpop.f32.mrf.mxu0
        %v2049 = vadd.f32 %v1884, %v2048
        %v2050 = vpop.f32.mrf.mxu0
        %v2051 = vadd.f32 %v1884, %v2050
        %2052 = vmatmul.bf16.gmra.mxu0 %v1964
        %v2053 = vpop.f32.mrf.mxu0
        %v2054 = vadd.f32 %v1884, %v2053
        %v2055 = vpop.f32.mrf.mxu0
        %v2056 = vadd.f32 %v1884, %v2055
        %2057 = vmatmul.bf16.gmra.mxu0 %v1967
        %v2058 = vpop.f32.mrf.mxu0
        %v2059 = vadd.f32 %v1884, %v2058
        %v2060 = vpop.f32.mrf.mxu0
        %v2061 = vadd.f32 %v1884, %v2060
        %2062 = vmatmul.bf16.gmra.mxu0 %v1970
        %v2063 = vpop.f32.mrf.mxu0
        %v2064 = vadd.f32 %v1884, %v2063
        %v2065 = vpop.f32.mrf.mxu0
        %v2066 = vadd.f32 %v1884, %v2065
        %2067 = vmatmul.bf16.gmra.mxu0 %v1973
        %v2068 = vpop.f32.mrf.mxu0
        %v2069 = vadd.f32 %v1884, %v2068
        %v2070 = vpop.f32.mrf.mxu0
        %v2071 = vadd.f32 %v1884, %v2070
        %2072 = vdwg.mxu0
        %2073 = vst [vmem:[#allocation3] sm:$0xff] %v1985
        %2074 = vst.msk [vmem:[#allocation3 + $0x8] sm:$0xff] %vm1111, %v2034
        %2075 = vst [vmem:[#allocation3 + $0x10] sm:$0xff] %v1987
        %2076 = vst.msk [vmem:[#allocation3 + $0x18] sm:$0xff] %vm1111, %v2036
        %2077 = vst [vmem:[#allocation3 + $0x20] sm:$0xff] %v1990
        %2078 = vst.msk [vmem:[#allocation3 + $0x28] sm:$0xff] %vm1111, %v2039
        %2079 = vst [vmem:[#allocation3 + $0x30] sm:$0xff] %v1992
        %2080 = vst.msk [vmem:[#allocation3 + $0x38] sm:$0xff] %vm1111, %v2041
        %2081 = vst [vmem:[#allocation3 + $0x40] sm:$0xff] %v1995
        %2082 = vst.msk [vmem:[#allocation3 + $0x48] sm:$0xff] %vm1111, %v2044
        %2083 = vst [vmem:[#allocation3 + $0x50] sm:$0xff] %v1997
        %2084 = vst.msk [vmem:[#allocation3 + $0x58] sm:$0xff] %vm1111, %v2046
        %2085 = vst [vmem:[#allocation3 + $0x60] sm:$0xff] %v2000
        %2086 = vst.msk [vmem:[#allocation3 + $0x68] sm:$0xff] %vm1111, %v2049
        %2087 = vst [vmem:[#allocation3 + $0x70] sm:$0xff] %v2002
        %2088 = vst.msk [vmem:[#allocation3 + $0x78] sm:$0xff] %vm1111, %v2051
        %2089 = vst [vmem:[#allocation3 + $0x80] sm:$0xff] %v2005
        %2090 = vst.msk [vmem:[#allocation3 + $0x88] sm:$0xff] %vm1111, %v2054
        %2091 = vst [vmem:[#allocation3 + $0x90] sm:$0xff] %v2007
        %2092 = vst.msk [vmem:[#allocation3 + $0x98] sm:$0xff] %vm1111, %v2056
        %2093 = vst [vmem:[#allocation3 + $0xa0] sm:$0xff] %v2010
        %2094 = vst.msk [vmem:[#allocation3 + $0xa8] sm:$0xff] %vm1111, %v2059
        %2095 = vst [vmem:[#allocation3 + $0xb0] sm:$0xff] %v2012
        %2096 = vst.msk [vmem:[#allocation3 + $0xb8] sm:$0xff] %vm1111, %v2061
        %2097 = vst [vmem:[#allocation3 + $0xc0] sm:$0xff] %v2015
        %2098 = vst.msk [vmem:[#allocation3 + $0xc8] sm:$0xff] %vm1111, %v2064
        %2099 = vst [vmem:[#allocation3 + $0xd0] sm:$0xff] %v2017
        %2100 = vst.msk [vmem:[#allocation3 + $0xd8] sm:$0xff] %vm1111, %v2066
        %2101 = vst [vmem:[#allocation3 + $0xe0] sm:$0xff] %v2020
        %2102 = vst.msk [vmem:[#allocation3 + $0xe8] sm:$0xff] %vm1111, %v2069
        %2103 = vst [vmem:[#allocation3 + $0xf0] sm:$0xff] %v2022
        %2104 = vst.msk [vmem:[#allocation3 + $0xf8] sm:$0xff] %vm1111, %v2071
        loop: start=0, step=1, limit=12
        $region157: #{pt_rsf_forward.1} parent=107 // loop_pre_header
          _
        $region158: #{pt_rsf_forward.1} parent=107 // loop_header
          %s2106 = sphi 0, %s2110
          %p2107 = scmp.ge.s32.totalorder %s2106, 12
          %v2111 = vphi %v1833, %v4140
          %v2112 = vphi %v1834, %v4141
          %v2113 = vphi %v1835, %v4142
          %v2114 = vphi %v1836, %v4143
          %v2115 = vphi %v1837, %v4144
          %v2116 = vphi %v1838, %v4145
          %v2117 = vphi %v1839, %v4146
          %v2118 = vphi %v1840, %v4147
          %v2119 = vphi %v1841, %v4148
          %v2120 = vphi %v1842, %v4149
          %v2121 = vphi %v1843, %v4150
          %v2122 = vphi %v1844, %v4151
          %v2123 = vphi %v1845, %v4152
          %v2124 = vphi %v1846, %v4153
          %v2125 = vphi %v1847, %v4154
          %v2126 = vphi %v1848, %v4155
          %v2127 = vphi %v896, %v4414
          %v2128 = vphi %v897, %v4415
          %v2129 = vphi %v898, %v4416
          %v2130 = vphi %v899, %v4417
          %v2131 = vphi %v900, %v4418
          %v2132 = vphi %v901, %v4419
          %v2133 = vphi %v902, %v4420
          %v2134 = vphi %v903, %v4421
          %v2135 = vphi %v904, %v4422
          %v2136 = vphi %v905, %v4423
          %v2137 = vphi %v906, %v4424
          %v2138 = vphi %v907, %v4425
          %v2139 = vphi %v908, %v4426
          %v2140 = vphi %v909, %v4427
          %v2141 = vphi %v910, %v4428
          %v2142 = vphi %v911, %v4429
        $region159: #{pt_rsf_forward.1} parent=107 // loop_header_branch
          %2109 = sbr.rel (%p2107) target = $region163
        $region160: #{pt_rsf_forward.1} parent=107 // loop_body
          %v2143 = vld [vmem:[%s884] sm:$0xff]
          %v2144 = vld [vmem:[%s884 + $0x8] sm:$0xff]
          %v2145 = vld [vmem:[%s884 + $0x10] sm:$0xff]
          %v2146 = vld [vmem:[%s884 + $0x18] sm:$0xff]
          %v2147 = vld [vmem:[%s884 + $0x20] sm:$0xff]
          %v2148 = vld [vmem:[%s884 + $0x28] sm:$0xff]
          %v2149 = vld [vmem:[%s884 + $0x30] sm:$0xff]
          %v2150 = vld [vmem:[%s884 + $0x38] sm:$0xff]
          %v2151 = vld [vmem:[%s884 + $0x40] sm:$0xff]
          %v2152 = vld [vmem:[%s884 + $0x48] sm:$0xff]
          %v2153 = vld [vmem:[%s884 + $0x50] sm:$0xff]
          %v2154 = vld [vmem:[%s884 + $0x58] sm:$0xff]
          %v2155 = vld [vmem:[%s884 + $0x60] sm:$0xff]
          %v2156 = vld [vmem:[%s884 + $0x68] sm:$0xff]
          %v2157 = vld [vmem:[%s884 + $0x70] sm:$0xff]
          %v2158 = vld [vmem:[%s884 + $0x78] sm:$0xff]
          %v2159 = vsub.f32 %v2127, %v2143
          %v2160 = vsub.f32 %v2128, %v2144
          %v2161 = vsub.f32 %v2129, %v2145
          %v2162 = vsub.f32 %v2130, %v2146
          %v2163 = vsub.f32 %v2131, %v2147
          %v2164 = vsub.f32 %v2132, %v2148
          %v2165 = vsub.f32 %v2133, %v2149
          %v2166 = vsub.f32 %v2134, %v2150
          %v2167 = vsub.f32 %v2135, %v2151
          %v2168 = vsub.f32 %v2136, %v2152
          %v2169 = vsub.f32 %v2137, %v2153
          %v2170 = vsub.f32 %v2138, %v2154
          %v2171 = vsub.f32 %v2139, %v2155
          %v2172 = vsub.f32 %v2140, %v2156
          %v2173 = vsub.f32 %v2141, %v2157
          %v2174 = vsub.f32 %v2142, %v2158
          %v2175 = vld [vmem:[#allocation2] sm:$0xff]
          %v2176 = vld [vmem:[#allocation2 + $0x8] sm:$0xff]
          %v2177 = vld [vmem:[#allocation2 + $0x10] sm:$0xff]
          %v2178 = vld [vmem:[#allocation2 + $0x18] sm:$0xff]
          %v2179 = vld [vmem:[#allocation2 + $0x20] sm:$0xff]
          %v2180 = vld [vmem:[#allocation2 + $0x28] sm:$0xff]
          %v2181 = vld [vmem:[#allocation2 + $0x30] sm:$0xff]
          %v2182 = vld [vmem:[#allocation2 + $0x38] sm:$0xff]
          %v2183 = vld [vmem:[#allocation2 + $0x40] sm:$0xff]
          %v2184 = vld [vmem:[#allocation2 + $0x48] sm:$0xff]
          %v2185 = vld [vmem:[#allocation2 + $0x50] sm:$0xff]
          %v2186 = vld [vmem:[#allocation2 + $0x58] sm:$0xff]
          %v2187 = vld [vmem:[#allocation2 + $0x60] sm:$0xff]
          %v2188 = vld [vmem:[#allocation2 + $0x68] sm:$0xff]
          %v2189 = vld [vmem:[#allocation2 + $0x70] sm:$0xff]
          %v2190 = vld [vmem:[#allocation2 + $0x78] sm:$0xff]
          %v2191 = vld [vmem:[%s889] sm:$0xff]
          %v2192 = vld [vmem:[%s889 + $0x8] sm:$0xff]
          %v2193 = vld [vmem:[%s889 + $0x10] sm:$0xff]
          %v2194 = vld [vmem:[%s889 + $0x18] sm:$0xff]
          %v2195 = vld [vmem:[%s889 + $0x20] sm:$0xff]
          %v2196 = vld [vmem:[%s889 + $0x28] sm:$0xff]
          %v2197 = vld [vmem:[%s889 + $0x30] sm:$0xff]
          %v2198 = vld [vmem:[%s889 + $0x38] sm:$0xff]
          %v2199 = vld [vmem:[%s889 + $0x40] sm:$0xff]
          %v2200 = vld [vmem:[%s889 + $0x48] sm:$0xff]
          %v2201 = vld [vmem:[%s889 + $0x50] sm:$0xff]
          %v2202 = vld [vmem:[%s889 + $0x58] sm:$0xff]
          %v2203 = vld [vmem:[%s889 + $0x60] sm:$0xff]
          %v2204 = vld [vmem:[%s889 + $0x68] sm:$0xff]
          %v2205 = vld [vmem:[%s889 + $0x70] sm:$0xff]
          %v2206 = vld [vmem:[%s889 + $0x78] sm:$0xff]
          %v2208 = vsel %vm933, %v2127, 0
          %v2211 = vsel %vm933, %v2128, 0
          %v2214 = vsel %vm933, %v2129, 0
          %v2217 = vsel %vm933, %v2130, 0
          %v2220 = vsel %vm933, %v2131, 0
          %v2223 = vsel %vm933, %v2132, 0
          %v2226 = vsel %vm933, %v2133, 0
          %v2229 = vsel %vm933, %v2134, 0
          %v2232 = vsel %vm933, %v2135, 0
          %v2235 = vsel %vm933, %v2136, 0
          %v2238 = vsel %vm933, %v2137, 0
          %v2241 = vsel %vm933, %v2138, 0
          %v2244 = vsel %vm933, %v2139, 0
          %v2247 = vsel %vm933, %v2140, 0
          %v2250 = vsel %vm933, %v2141, 0
          %v2253 = vsel %vm933, %v2142, 0
          %v2256 = vsel %vm933, %v2191, 0
          %v2259 = vsel %vm933, %v2192, 0
          %v2262 = vsel %vm933, %v2193, 0
          %v2265 = vsel %vm933, %v2194, 0
          %v2268 = vsel %vm933, %v2195, 0
          %v2271 = vsel %vm933, %v2196, 0
          %v2274 = vsel %vm933, %v2197, 0
          %v2277 = vsel %vm933, %v2198, 0
          %v2280 = vsel %vm933, %v2199, 0
          %v2283 = vsel %vm933, %v2200, 0
          %v2286 = vsel %vm933, %v2201, 0
          %v2289 = vsel %vm933, %v2202, 0
          %v2292 = vsel %vm933, %v2203, 0
          %v2295 = vsel %vm933, %v2204, 0
          %v2298 = vsel %vm933, %v2205, 0
          %v2301 = vsel %vm933, %v2206, 0
          %2303 = vmatpush.xpose.msra.mxu0 %v2301
          %2304 = vmatpush.xpose.msra.mxu0 %v2298
          %2305 = vmatpush.xpose.msra.mxu0 %v2295
          %2306 = vmatpush.xpose.msra.mxu0 %v2292
          %2307 = vmatpush.xpose.msra.mxu0 %v2289
          %2308 = vmatpush.xpose.msra.mxu0 %v2286
          %2309 = vmatpush.xpose.msra.mxu0 %v2283
          %2310 = vmatpush.xpose.msra.mxu0 %v2280
          %2311 = vmatpush.xpose.msra.mxu0 %v2277
          %2312 = vmatpush.xpose.msra.mxu0 %v2274
          %2313 = vmatpush.xpose.msra.mxu0 %v2271
          %2314 = vmatpush.xpose.msra.mxu0 %v2268
          %2315 = vmatpush.xpose.msra.mxu0 %v2265
          %2316 = vmatpush.xpose.msra.mxu0 %v2262
          %2317 = vmatpush.xpose.msra.mxu0 %v2259
          %2318 = vmatpush.xpose.msra.mxu0 %v2256
          %2319 = vmatmul.f32.gmra.mxu0 %v2208
          %v2320 = vpop.f32.mrf.mxu0
          %v2321 = vadd.f32 0.0, %v2320
          %2322 = vmatmul.f32.gmra.mxu0 %v2211
          %v2323 = vpop.f32.mrf.mxu0
          %v2324 = vadd.f32 0.0, %v2323
          %2325 = vmatmul.f32.gmra.mxu0 %v2214
          %v2326 = vpop.f32.mrf.mxu0
          %v2327 = vadd.f32 0.0, %v2326
          %2328 = vmatmul.f32.gmra.mxu0 %v2217
          %v2329 = vpop.f32.mrf.mxu0
          %v2330 = vadd.f32 0.0, %v2329
          %2331 = vmatmul.f32.gmra.mxu0 %v2220
          %v2332 = vpop.f32.mrf.mxu0
          %v2333 = vadd.f32 0.0, %v2332
          %2334 = vmatmul.f32.gmra.mxu0 %v2223
          %v2335 = vpop.f32.mrf.mxu0
          %v2336 = vadd.f32 0.0, %v2335
          %2337 = vmatmul.f32.gmra.mxu0 %v2226
          %v2338 = vpop.f32.mrf.mxu0
          %v2339 = vadd.f32 0.0, %v2338
          %2340 = vmatmul.f32.gmra.mxu0 %v2229
          %v2341 = vpop.f32.mrf.mxu0
          %v2342 = vadd.f32 0.0, %v2341
          %2343 = vmatmul.f32.gmra.mxu0 %v2232
          %v2344 = vpop.f32.mrf.mxu0
          %v2345 = vadd.f32 0.0, %v2344
          %2346 = vmatmul.f32.gmra.mxu0 %v2235
          %v2347 = vpop.f32.mrf.mxu0
          %v2348 = vadd.f32 0.0, %v2347
          %2349 = vmatmul.f32.gmra.mxu0 %v2238
          %v2350 = vpop.f32.mrf.mxu0
          %v2351 = vadd.f32 0.0, %v2350
          %2352 = vmatmul.f32.gmra.mxu0 %v2241
          %v2353 = vpop.f32.mrf.mxu0
          %v2354 = vadd.f32 0.0, %v2353
          %2355 = vmatmul.f32.gmra.mxu0 %v2244
          %v2356 = vpop.f32.mrf.mxu0
          %v2357 = vadd.f32 0.0, %v2356
          %2358 = vmatmul.f32.gmra.mxu0 %v2247
          %v2359 = vpop.f32.mrf.mxu0
          %v2360 = vadd.f32 0.0, %v2359
          %2361 = vmatmul.f32.gmra.mxu0 %v2250
          %v2362 = vpop.f32.mrf.mxu0
          %v2363 = vadd.f32 0.0, %v2362
          %2364 = vmatmul.f32.gmra.mxu0 %v2253
          %v2365 = vpop.f32.mrf.mxu0
          %v2366 = vadd.f32 0.0, %v2365
          %2367 = vdwg.mxu0
          %v2368 = vmul.f32 %v2321, 2.0
          %v2369 = vmul.f32 %v2324, 2.0
          %v2370 = vmul.f32 %v2327, 2.0
          %v2371 = vmul.f32 %v2330, 2.0
          %v2372 = vmul.f32 %v2333, 2.0
          %v2373 = vmul.f32 %v2336, 2.0
          %v2374 = vmul.f32 %v2339, 2.0
          %v2375 = vmul.f32 %v2342, 2.0
          %v2376 = vmul.f32 %v2345, 2.0
          %v2377 = vmul.f32 %v2348, 2.0
          %v2378 = vmul.f32 %v2351, 2.0
          %v2379 = vmul.f32 %v2354, 2.0
          %v2380 = vmul.f32 %v2357, 2.0
          %v2381 = vmul.f32 %v2360, 2.0
          %v2382 = vmul.f32 %v2363, 2.0
          %v2383 = vmul.f32 %v2366, 2.0
          %v2384 = vperm.slane %v1625, 0
          %v2385 = vsub.f32 %v2384, %v2368
          %v2386 = vsub.f32 %v2384, %v2369
          %v2387 = vsub.f32 %v2384, %v2370
          %v2388 = vsub.f32 %v2384, %v2371
          %v2389 = vsub.f32 %v2384, %v2372
          %v2390 = vsub.f32 %v2384, %v2373
          %v2391 = vsub.f32 %v2384, %v2374
          %v2392 = vsub.f32 %v2384, %v2375
          %v2393 = vsub.f32 %v2384, %v2376
          %v2394 = vsub.f32 %v2384, %v2377
          %v2395 = vsub.f32 %v2384, %v2378
          %v2396 = vsub.f32 %v2384, %v2379
          %v2397 = vsub.f32 %v2384, %v2380
          %v2398 = vsub.f32 %v2384, %v2381
          %v2399 = vsub.f32 %v2384, %v2382
          %v2400 = vsub.f32 %v2384, %v2383
          %2401 = vmin.xlane.f32.xlu0 %v2385
          %v2402 = vpop.xlane.xlu0 %2401
          %2403 = vmin.xlane.f32.xlu0 %v2386
          %v2404 = vpop.xlane.xlu0 %2403
          %2405 = vmin.xlane.f32.xlu0 %v2387
          %v2406 = vpop.xlane.xlu0 %2405
          %2407 = vmin.xlane.f32.xlu0 %v2388
          %v2408 = vpop.xlane.xlu0 %2407
          %2409 = vmin.xlane.f32.xlu0 %v2389
          %v2410 = vpop.xlane.xlu0 %2409
          %2411 = vmin.xlane.f32.xlu0 %v2390
          %v2412 = vpop.xlane.xlu0 %2411
          %2413 = vmin.xlane.f32.xlu0 %v2391
          %v2414 = vpop.xlane.xlu0 %2413
          %2415 = vmin.xlane.f32.xlu0 %v2392
          %v2416 = vpop.xlane.xlu0 %2415
          %2417 = vmin.xlane.f32.xlu0 %v2393
          %v2418 = vpop.xlane.xlu0 %2417
          %2419 = vmin.xlane.f32.xlu0 %v2394
          %v2420 = vpop.xlane.xlu0 %2419
          %2421 = vmin.xlane.f32.xlu0 %v2395
          %v2422 = vpop.xlane.xlu0 %2421
          %2423 = vmin.xlane.f32.xlu0 %v2396
          %v2424 = vpop.xlane.xlu0 %2423
          %2425 = vmin.xlane.f32.xlu0 %v2397
          %v2426 = vpop.xlane.xlu0 %2425
          %2427 = vmin.xlane.f32.xlu0 %v2398
          %v2428 = vpop.xlane.xlu0 %2427
          %2429 = vmin.xlane.f32.xlu0 %v2399
          %v2430 = vpop.xlane.xlu0 %2429
          %2431 = vmin.xlane.f32.xlu0 %v2400
          %v2432 = vpop.xlane.xlu0 %2431
          %v2433 = vsub.f32 %v2385, %v2402
          %v2434 = vsub.f32 %v2386, %v2404
          %v2435 = vsub.f32 %v2387, %v2406
          %v2436 = vsub.f32 %v2388, %v2408
          %v2437 = vsub.f32 %v2389, %v2410
          %v2438 = vsub.f32 %v2390, %v2412
          %v2439 = vsub.f32 %v2391, %v2414
          %v2440 = vsub.f32 %v2392, %v2416
          %v2441 = vsub.f32 %v2393, %v2418
          %v2442 = vsub.f32 %v2394, %v2420
          %v2443 = vsub.f32 %v2395, %v2422
          %v2444 = vsub.f32 %v2396, %v2424
          %v2445 = vsub.f32 %v2397, %v2426
          %v2446 = vsub.f32 %v2398, %v2428
          %v2447 = vsub.f32 %v2399, %v2430
          %v2448 = vsub.f32 %v2400, %v2432
          %v2449 = vld [vmem:[#allocation11] sm:$0x7]
          %v2450 = vld [vmem:[%s12] sm:$0x1]
          %v2452 = vperm.slane %v2450, 0
          %v2455 = vsel %vm933, %v2159, 0
          %v2458 = vsel %vm933, %v2160, 0
          %v2461 = vsel %vm933, %v2161, 0
          %v2464 = vsel %vm933, %v2162, 0
          %v2467 = vsel %vm933, %v2163, 0
          %v2470 = vsel %vm933, %v2164, 0
          %v2473 = vsel %vm933, %v2165, 0
          %v2476 = vsel %vm933, %v2166, 0
          %v2479 = vsel %vm933, %v2167, 0
          %v2482 = vsel %vm933, %v2168, 0
          %v2485 = vsel %vm933, %v2169, 0
          %v2488 = vsel %vm933, %v2170, 0
          %v2491 = vsel %vm933, %v2171, 0
          %v2494 = vsel %vm933, %v2172, 0
          %v2497 = vsel %vm933, %v2173, 0
          %v2500 = vsel %vm933, %v2174, 0
          %v2503 = vsel %vm982, %v2449, 0
          %2505 = vmatpush.msra.mxu0 0.0
          %2506 = vmatpush.msra.mxu0 0.0
          %2507 = vmatpush.msra.mxu0 0.0
          %2508 = vmatpush.msra.mxu0 0.0
          %2509 = vmatpush.msra.mxu0 0.0
          %2510 = vmatpush.msra.mxu0 0.0
          %2511 = vmatpush.msra.mxu0 0.0
          %2512 = vmatpush.msra.mxu0 0.0
          %2513 = vmatpush.msra.mxu0 0.0
          %2514 = vmatpush.msra.mxu0 0.0
          %2515 = vmatpush.msra.mxu0 0.0
          %2516 = vmatpush.msra.mxu0 0.0
          %2517 = vmatpush.msra.mxu0 0.0
          %2518 = vmatpush.msra.mxu0 0.0
          %2519 = vmatpush.msra.mxu0 0.0
          %2520 = vmatpush.msra.mxu0 %v2503
          %2521 = vmatmul.f32.gmra.mxu0 %v2455
          %v2522 = vpop.f32.mrf.mxu0
          %v2523 = vadd.f32 %v2452, %v2522
          %2524 = vmatmul.f32.gmra.mxu0 %v2458
          %v2525 = vpop.f32.mrf.mxu0
          %v2526 = vadd.f32 %v2452, %v2525
          %2527 = vmatmul.f32.gmra.mxu0 %v2461
          %v2528 = vpop.f32.mrf.mxu0
          %v2529 = vadd.f32 %v2452, %v2528
          %2530 = vmatmul.f32.gmra.mxu0 %v2464
          %v2531 = vpop.f32.mrf.mxu0
          %v2532 = vadd.f32 %v2452, %v2531
          %2533 = vmatmul.f32.gmra.mxu0 %v2467
          %v2534 = vpop.f32.mrf.mxu0
          %v2535 = vadd.f32 %v2452, %v2534
          %2536 = vmatmul.f32.gmra.mxu0 %v2470
          %v2537 = vpop.f32.mrf.mxu0
          %v2538 = vadd.f32 %v2452, %v2537
          %2539 = vmatmul.f32.gmra.mxu0 %v2473
          %v2540 = vpop.f32.mrf.mxu0
          %v2541 = vadd.f32 %v2452, %v2540
          %2542 = vmatmul.f32.gmra.mxu0 %v2476
          %v2543 = vpop.f32.mrf.mxu0
          %v2544 = vadd.f32 %v2452, %v2543
          %2545 = vmatmul.f32.gmra.mxu0 %v2479
          %v2546 = vpop.f32.mrf.mxu0
          %v2547 = vadd.f32 %v2452, %v2546
          %2548 = vmatmul.f32.gmra.mxu0 %v2482
          %v2549 = vpop.f32.mrf.mxu0
          %v2550 = vadd.f32 %v2452, %v2549
          %2551 = vmatmul.f32.gmra.mxu0 %v2485
          %v2552 = vpop.f32.mrf.mxu0
          %v2553 = vadd.f32 %v2452, %v2552
          %2554 = vmatmul.f32.gmra.mxu0 %v2488
          %v2555 = vpop.f32.mrf.mxu0
          %v2556 = vadd.f32 %v2452, %v2555
          %2557 = vmatmul.f32.gmra.mxu0 %v2491
          %v2558 = vpop.f32.mrf.mxu0
          %v2559 = vadd.f32 %v2452, %v2558
          %2560 = vmatmul.f32.gmra.mxu0 %v2494
          %v2561 = vpop.f32.mrf.mxu0
          %v2562 = vadd.f32 %v2452, %v2561
          %2563 = vmatmul.f32.gmra.mxu0 %v2497
          %v2564 = vpop.f32.mrf.mxu0
          %v2565 = vadd.f32 %v2452, %v2564
          %2566 = vmatmul.f32.gmra.mxu0 %v2500
          %v2567 = vpop.f32.mrf.mxu0
          %v2568 = vadd.f32 %v2452, %v2567
          %2569 = vdwg.mxu0
          %v2570 = vmul.f32 %v2433, -4.0
          %v2571 = vmul.f32 %v2434, -4.0
          %v2572 = vmul.f32 %v2435, -4.0
          %v2573 = vmul.f32 %v2436, -4.0
          %v2574 = vmul.f32 %v2437, -4.0
          %v2575 = vmul.f32 %v2438, -4.0
          %v2576 = vmul.f32 %v2439, -4.0
          %v2577 = vmul.f32 %v2440, -4.0
          %v2578 = vmul.f32 %v2441, -4.0
          %v2579 = vmul.f32 %v2442, -4.0
          %v2580 = vmul.f32 %v2443, -4.0
          %v2581 = vmul.f32 %v2444, -4.0
          %v2582 = vmul.f32 %v2445, -4.0
          %v2583 = vmul.f32 %v2446, -4.0
          %v2584 = vmul.f32 %v2447, -4.0
          %v2585 = vmul.f32 %v2448, -4.0
          %v2586 = vmul.f32 %v2570, 1.442695
          %v2587 = vpow.pop %v2586
          %v2588 = vmul.f32 %v2571, 1.442695
          %v2589 = vpow.pop %v2588
          %v2590 = vmul.f32 %v2572, 1.442695
          %v2591 = vpow.pop %v2590
          %v2592 = vmul.f32 %v2573, 1.442695
          %v2593 = vpow.pop %v2592
          %v2594 = vmul.f32 %v2574, 1.442695
          %v2595 = vpow.pop %v2594
          %v2596 = vmul.f32 %v2575, 1.442695
          %v2597 = vpow.pop %v2596
          %v2598 = vmul.f32 %v2576, 1.442695
          %v2599 = vpow.pop %v2598
          %v2600 = vmul.f32 %v2577, 1.442695
          %v2601 = vpow.pop %v2600
          %v2602 = vmul.f32 %v2578, 1.442695
          %v2603 = vpow.pop %v2602
          %v2604 = vmul.f32 %v2579, 1.442695
          %v2605 = vpow.pop %v2604
          %v2606 = vmul.f32 %v2580, 1.442695
          %v2607 = vpow.pop %v2606
          %v2608 = vmul.f32 %v2581, 1.442695
          %v2609 = vpow.pop %v2608
          %v2610 = vmul.f32 %v2582, 1.442695
          %v2611 = vpow.pop %v2610
          %v2612 = vmul.f32 %v2583, 1.442695
          %v2613 = vpow.pop %v2612
          %v2614 = vmul.f32 %v2584, 1.442695
          %v2615 = vpow.pop %v2614
          %v2616 = vmul.f32 %v2585, 1.442695
          %v2617 = vpow.pop %v2616
          %v2618 = vmul.f32 %v2587, %v2175
          %v2619 = vmul.f32 %v2589, %v2176
          %v2620 = vmul.f32 %v2591, %v2177
          %v2621 = vmul.f32 %v2593, %v2178
          %v2622 = vmul.f32 %v2595, %v2179
          %v2623 = vmul.f32 %v2597, %v2180
          %v2624 = vmul.f32 %v2599, %v2181
          %v2625 = vmul.f32 %v2601, %v2182
          %v2626 = vmul.f32 %v2603, %v2183
          %v2627 = vmul.f32 %v2605, %v2184
          %v2628 = vmul.f32 %v2607, %v2185
          %v2629 = vmul.f32 %v2609, %v2186
          %v2630 = vmul.f32 %v2611, %v2187
          %v2631 = vmul.f32 %v2613, %v2188
          %v2632 = vmul.f32 %v2615, %v2189
          %v2633 = vmul.f32 %v2617, %v2190
          %2634 = vadd.xlane.f32.xlu0 %v2618
          %v2635 = vpop.xlane.xlu0 %2634
          %2636 = vadd.xlane.f32.xlu0 %v2619
          %v2637 = vpop.xlane.xlu0 %2636
          %2638 = vadd.xlane.f32.xlu0 %v2620
          %v2639 = vpop.xlane.xlu0 %2638
          %2640 = vadd.xlane.f32.xlu0 %v2621
          %v2641 = vpop.xlane.xlu0 %2640
          %2642 = vadd.xlane.f32.xlu0 %v2622
          %v2643 = vpop.xlane.xlu0 %2642
          %2644 = vadd.xlane.f32.xlu0 %v2623
          %v2645 = vpop.xlane.xlu0 %2644
          %2646 = vadd.xlane.f32.xlu0 %v2624
          %v2647 = vpop.xlane.xlu0 %2646
          %2648 = vadd.xlane.f32.xlu0 %v2625
          %v2649 = vpop.xlane.xlu0 %2648
          %2650 = vadd.xlane.f32.xlu0 %v2626
          %v2651 = vpop.xlane.xlu0 %2650
          %2652 = vadd.xlane.f32.xlu0 %v2627
          %v2653 = vpop.xlane.xlu0 %2652
          %2654 = vadd.xlane.f32.xlu0 %v2628
          %v2655 = vpop.xlane.xlu0 %2654
          %2656 = vadd.xlane.f32.xlu0 %v2629
          %v2657 = vpop.xlane.xlu0 %2656
          %2658 = vadd.xlane.f32.xlu0 %v2630
          %v2659 = vpop.xlane.xlu0 %2658
          %2660 = vadd.xlane.f32.xlu0 %v2631
          %v2661 = vpop.xlane.xlu0 %2660
          %2662 = vadd.xlane.f32.xlu0 %v2632
          %v2663 = vpop.xlane.xlu0 %2662
          %2664 = vadd.xlane.f32.xlu0 %v2633
          %v2665 = vpop.xlane.xlu0 %2664
          %2666 = vadd.xlane.f32.xlu0 %v2587
          %v2667 = vpop.xlane.xlu0 %2666
          %2668 = vadd.xlane.f32.xlu0 %v2589
          %v2669 = vpop.xlane.xlu0 %2668
          %2670 = vadd.xlane.f32.xlu0 %v2591
          %v2671 = vpop.xlane.xlu0 %2670
          %2672 = vadd.xlane.f32.xlu0 %v2593
          %v2673 = vpop.xlane.xlu0 %2672
          %2674 = vadd.xlane.f32.xlu0 %v2595
          %v2675 = vpop.xlane.xlu0 %2674
          %2676 = vadd.xlane.f32.xlu0 %v2597
          %v2677 = vpop.xlane.xlu0 %2676
          %2678 = vadd.xlane.f32.xlu0 %v2599
          %v2679 = vpop.xlane.xlu0 %2678
          %2680 = vadd.xlane.f32.xlu0 %v2601
          %v2681 = vpop.xlane.xlu0 %2680
          %2682 = vadd.xlane.f32.xlu0 %v2603
          %v2683 = vpop.xlane.xlu0 %2682
          %2684 = vadd.xlane.f32.xlu0 %v2605
          %v2685 = vpop.xlane.xlu0 %2684
          %2686 = vadd.xlane.f32.xlu0 %v2607
          %v2687 = vpop.xlane.xlu0 %2686
          %2688 = vadd.xlane.f32.xlu0 %v2609
          %v2689 = vpop.xlane.xlu0 %2688
          %2690 = vadd.xlane.f32.xlu0 %v2611
          %v2691 = vpop.xlane.xlu0 %2690
          %2692 = vadd.xlane.f32.xlu0 %v2613
          %v2693 = vpop.xlane.xlu0 %2692
          %2694 = vadd.xlane.f32.xlu0 %v2615
          %v2695 = vpop.xlane.xlu0 %2694
          %2696 = vadd.xlane.f32.xlu0 %v2617
          %v2697 = vpop.xlane.xlu0 %2696
          %v2698 = vrcp.pop %v2667
          %v2699 = vrcp.pop %v2669
          %v2700 = vrcp.pop %v2671
          %v2701 = vrcp.pop %v2673
          %v2702 = vrcp.pop %v2675
          %v2703 = vrcp.pop %v2677
          %v2704 = vrcp.pop %v2679
          %v2705 = vrcp.pop %v2681
          %v2706 = vrcp.pop %v2683
          %v2707 = vrcp.pop %v2685
          %v2708 = vrcp.pop %v2687
          %v2709 = vrcp.pop %v2689
          %v2710 = vrcp.pop %v2691
          %v2711 = vrcp.pop %v2693
          %v2712 = vrcp.pop %v2695
          %v2713 = vrcp.pop %v2697
          %v2714 = vmul.f32 %v2635, %v2698
          %v2715 = vmul.f32 %v2637, %v2699
          %v2716 = vmul.f32 %v2639, %v2700
          %v2717 = vmul.f32 %v2641, %v2701
          %v2718 = vmul.f32 %v2643, %v2702
          %v2719 = vmul.f32 %v2645, %v2703
          %v2720 = vmul.f32 %v2647, %v2704
          %v2721 = vmul.f32 %v2649, %v2705
          %v2722 = vmul.f32 %v2651, %v2706
          %v2723 = vmul.f32 %v2653, %v2707
          %v2724 = vmul.f32 %v2655, %v2708
          %v2725 = vmul.f32 %v2657, %v2709
          %v2726 = vmul.f32 %v2659, %v2710
          %v2727 = vmul.f32 %v2661, %v2711
          %v2728 = vmul.f32 %v2663, %v2712
          %v2729 = vmul.f32 %v2665, %v2713
          %v2730 = vld [vmem:[#allocation12] sm:$0x1]
          %v2731 = vperm.slane %v2730, 0
          %v2732 = vmul.f32 %v2714, %v2731
          %v2733 = vmul.f32 %v2715, %v2731
          %v2734 = vmul.f32 %v2716, %v2731
          %v2735 = vmul.f32 %v2717, %v2731
          %v2736 = vmul.f32 %v2718, %v2731
          %v2737 = vmul.f32 %v2719, %v2731
          %v2738 = vmul.f32 %v2720, %v2731
          %v2739 = vmul.f32 %v2721, %v2731
          %v2740 = vmul.f32 %v2722, %v2731
          %v2741 = vmul.f32 %v2723, %v2731
          %v2742 = vmul.f32 %v2724, %v2731
          %v2743 = vmul.f32 %v2725, %v2731
          %v2744 = vmul.f32 %v2726, %v2731
          %v2745 = vmul.f32 %v2727, %v2731
          %v2746 = vmul.f32 %v2728, %v2731
          %v2747 = vmul.f32 %v2729, %v2731
          %v2748 = vadd.f32 %v2523, %v2732
          %v2749 = vadd.f32 %v2526, %v2733
          %v2750 = vadd.f32 %v2529, %v2734
          %v2751 = vadd.f32 %v2532, %v2735
          %v2752 = vadd.f32 %v2535, %v2736
          %v2753 = vadd.f32 %v2538, %v2737
          %v2754 = vadd.f32 %v2541, %v2738
          %v2755 = vadd.f32 %v2544, %v2739
          %v2756 = vadd.f32 %v2547, %v2740
          %v2757 = vadd.f32 %v2550, %v2741
          %v2758 = vadd.f32 %v2553, %v2742
          %v2759 = vadd.f32 %v2556, %v2743
          %v2760 = vadd.f32 %v2559, %v2744
          %v2761 = vadd.f32 %v2562, %v2745
          %v2762 = vadd.f32 %v2565, %v2746
          %v2763 = vadd.f32 %v2568, %v2747
          %v2764 = vmul.f32 %v2433, -1.0
          %v2765 = vmul.f32 %v2434, -1.0
          %v2766 = vmul.f32 %v2435, -1.0
          %v2767 = vmul.f32 %v2436, -1.0
          %v2768 = vmul.f32 %v2437, -1.0
          %v2769 = vmul.f32 %v2438, -1.0
          %v2770 = vmul.f32 %v2439, -1.0
          %v2771 = vmul.f32 %v2440, -1.0
          %v2772 = vmul.f32 %v2441, -1.0
          %v2773 = vmul.f32 %v2442, -1.0
          %v2774 = vmul.f32 %v2443, -1.0
          %v2775 = vmul.f32 %v2444, -1.0
          %v2776 = vmul.f32 %v2445, -1.0
          %v2777 = vmul.f32 %v2446, -1.0
          %v2778 = vmul.f32 %v2447, -1.0
          %v2779 = vmul.f32 %v2448, -1.0
          %v2780 = vmul.f32 %v2764, 1.442695
          %v2781 = vpow.pop %v2780
          %v2782 = vmul.f32 %v2765, 1.442695
          %v2783 = vpow.pop %v2782
          %v2784 = vmul.f32 %v2766, 1.442695
          %v2785 = vpow.pop %v2784
          %v2786 = vmul.f32 %v2767, 1.442695
          %v2787 = vpow.pop %v2786
          %v2788 = vmul.f32 %v2768, 1.442695
          %v2789 = vpow.pop %v2788
          %v2790 = vmul.f32 %v2769, 1.442695
          %v2791 = vpow.pop %v2790
          %v2792 = vmul.f32 %v2770, 1.442695
          %v2793 = vpow.pop %v2792
          %v2794 = vmul.f32 %v2771, 1.442695
          %v2795 = vpow.pop %v2794
          %v2796 = vmul.f32 %v2772, 1.442695
          %v2797 = vpow.pop %v2796
          %v2798 = vmul.f32 %v2773, 1.442695
          %v2799 = vpow.pop %v2798
          %v2800 = vmul.f32 %v2774, 1.442695
          %v2801 = vpow.pop %v2800
          %v2802 = vmul.f32 %v2775, 1.442695
          %v2803 = vpow.pop %v2802
          %v2804 = vmul.f32 %v2776, 1.442695
          %v2805 = vpow.pop %v2804
          %v2806 = vmul.f32 %v2777, 1.442695
          %v2807 = vpow.pop %v2806
          %v2808 = vmul.f32 %v2778, 1.442695
          %v2809 = vpow.pop %v2808
          %v2810 = vmul.f32 %v2779, 1.442695
          %v2811 = vpow.pop %v2810
          %v2812 = vmul.f32 %v2781, %v2175
          %v2813 = vmul.f32 %v2783, %v2176
          %v2814 = vmul.f32 %v2785, %v2177
          %v2815 = vmul.f32 %v2787, %v2178
          %v2816 = vmul.f32 %v2789, %v2179
          %v2817 = vmul.f32 %v2791, %v2180
          %v2818 = vmul.f32 %v2793, %v2181
          %v2819 = vmul.f32 %v2795, %v2182
          %v2820 = vmul.f32 %v2797, %v2183
          %v2821 = vmul.f32 %v2799, %v2184
          %v2822 = vmul.f32 %v2801, %v2185
          %v2823 = vmul.f32 %v2803, %v2186
          %v2824 = vmul.f32 %v2805, %v2187
          %v2825 = vmul.f32 %v2807, %v2188
          %v2826 = vmul.f32 %v2809, %v2189
          %v2827 = vmul.f32 %v2811, %v2190
          %2828 = vadd.xlane.f32.xlu0 %v2812
          %v2829 = vpop.xlane.xlu0 %2828
          %2830 = vadd.xlane.f32.xlu0 %v2813
          %v2831 = vpop.xlane.xlu0 %2830
          %2832 = vadd.xlane.f32.xlu0 %v2814
          %v2833 = vpop.xlane.xlu0 %2832
          %2834 = vadd.xlane.f32.xlu0 %v2815
          %v2835 = vpop.xlane.xlu0 %2834
          %2836 = vadd.xlane.f32.xlu0 %v2816
          %v2837 = vpop.xlane.xlu0 %2836
          %2838 = vadd.xlane.f32.xlu0 %v2817
          %v2839 = vpop.xlane.xlu0 %2838
          %2840 = vadd.xlane.f32.xlu0 %v2818
          %v2841 = vpop.xlane.xlu0 %2840
          %2842 = vadd.xlane.f32.xlu0 %v2819
          %v2843 = vpop.xlane.xlu0 %2842
          %2844 = vadd.xlane.f32.xlu0 %v2820
          %v2845 = vpop.xlane.xlu0 %2844
          %2846 = vadd.xlane.f32.xlu0 %v2821
          %v2847 = vpop.xlane.xlu0 %2846
          %2848 = vadd.xlane.f32.xlu0 %v2822
          %v2849 = vpop.xlane.xlu0 %2848
          %2850 = vadd.xlane.f32.xlu0 %v2823
          %v2851 = vpop.xlane.xlu0 %2850
          %2852 = vadd.xlane.f32.xlu0 %v2824
          %v2853 = vpop.xlane.xlu0 %2852
          %2854 = vadd.xlane.f32.xlu0 %v2825
          %v2855 = vpop.xlane.xlu0 %2854
          %2856 = vadd.xlane.f32.xlu0 %v2826
          %v2857 = vpop.xlane.xlu0 %2856
          %2858 = vadd.xlane.f32.xlu0 %v2827
          %v2859 = vpop.xlane.xlu0 %2858
          %2860 = vadd.xlane.f32.xlu0 %v2781
          %v2861 = vpop.xlane.xlu0 %2860
          %2862 = vadd.xlane.f32.xlu0 %v2783
          %v2863 = vpop.xlane.xlu0 %2862
          %2864 = vadd.xlane.f32.xlu0 %v2785
          %v2865 = vpop.xlane.xlu0 %2864
          %2866 = vadd.xlane.f32.xlu0 %v2787
          %v2867 = vpop.xlane.xlu0 %2866
          %2868 = vadd.xlane.f32.xlu0 %v2789
          %v2869 = vpop.xlane.xlu0 %2868
          %2870 = vadd.xlane.f32.xlu0 %v2791
          %v2871 = vpop.xlane.xlu0 %2870
          %2872 = vadd.xlane.f32.xlu0 %v2793
          %v2873 = vpop.xlane.xlu0 %2872
          %2874 = vadd.xlane.f32.xlu0 %v2795
          %v2875 = vpop.xlane.xlu0 %2874
          %2876 = vadd.xlane.f32.xlu0 %v2797
          %v2877 = vpop.xlane.xlu0 %2876
          %2878 = vadd.xlane.f32.xlu0 %v2799
          %v2879 = vpop.xlane.xlu0 %2878
          %2880 = vadd.xlane.f32.xlu0 %v2801
          %v2881 = vpop.xlane.xlu0 %2880
          %2882 = vadd.xlane.f32.xlu0 %v2803
          %v2883 = vpop.xlane.xlu0 %2882
          %2884 = vadd.xlane.f32.xlu0 %v2805
          %v2885 = vpop.xlane.xlu0 %2884
          %2886 = vadd.xlane.f32.xlu0 %v2807
          %v2887 = vpop.xlane.xlu0 %2886
          %2888 = vadd.xlane.f32.xlu0 %v2809
          %v2889 = vpop.xlane.xlu0 %2888
          %2890 = vadd.xlane.f32.xlu0 %v2811
          %v2891 = vpop.xlane.xlu0 %2890
          %v2892 = vrcp.pop %v2861
          %v2893 = vrcp.pop %v2863
          %v2894 = vrcp.pop %v2865
          %v2895 = vrcp.pop %v2867
          %v2896 = vrcp.pop %v2869
          %v2897 = vrcp.pop %v2871
          %v2898 = vrcp.pop %v2873
          %v2899 = vrcp.pop %v2875
          %v2900 = vrcp.pop %v2877
          %v2901 = vrcp.pop %v2879
          %v2902 = vrcp.pop %v2881
          %v2903 = vrcp.pop %v2883
          %v2904 = vrcp.pop %v2885
          %v2905 = vrcp.pop %v2887
          %v2906 = vrcp.pop %v2889
          %v2907 = vrcp.pop %v2891
          %v2908 = vmul.f32 %v2829, %v2892
          %v2909 = vmul.f32 %v2831, %v2893
          %v2910 = vmul.f32 %v2833, %v2894
          %v2911 = vmul.f32 %v2835, %v2895
          %v2912 = vmul.f32 %v2837, %v2896
          %v2913 = vmul.f32 %v2839, %v2897
          %v2914 = vmul.f32 %v2841, %v2898
          %v2915 = vmul.f32 %v2843, %v2899
          %v2916 = vmul.f32 %v2845, %v2900
          %v2917 = vmul.f32 %v2847, %v2901
          %v2918 = vmul.f32 %v2849, %v2902
          %v2919 = vmul.f32 %v2851, %v2903
          %v2920 = vmul.f32 %v2853, %v2904
          %v2921 = vmul.f32 %v2855, %v2905
          %v2922 = vmul.f32 %v2857, %v2906
          %v2923 = vmul.f32 %v2859, %v2907
          %v2924 = vld [vmem:[#allocation12 + $0x1] sm:$0x1]
          %v2925 = vperm.slane %v2924, 0
          %v2926 = vmul.f32 %v2908, %v2925
          %v2927 = vmul.f32 %v2909, %v2925
          %v2928 = vmul.f32 %v2910, %v2925
          %v2929 = vmul.f32 %v2911, %v2925
          %v2930 = vmul.f32 %v2912, %v2925
          %v2931 = vmul.f32 %v2913, %v2925
          %v2932 = vmul.f32 %v2914, %v2925
          %v2933 = vmul.f32 %v2915, %v2925
          %v2934 = vmul.f32 %v2916, %v2925
          %v2935 = vmul.f32 %v2917, %v2925
          %v2936 = vmul.f32 %v2918, %v2925
          %v2937 = vmul.f32 %v2919, %v2925
          %v2938 = vmul.f32 %v2920, %v2925
          %v2939 = vmul.f32 %v2921, %v2925
          %v2940 = vmul.f32 %v2922, %v2925
          %v2941 = vmul.f32 %v2923, %v2925
          %v2942 = vadd.f32 %v2748, %v2926
          %v2943 = vadd.f32 %v2749, %v2927
          %v2944 = vadd.f32 %v2750, %v2928
          %v2945 = vadd.f32 %v2751, %v2929
          %v2946 = vadd.f32 %v2752, %v2930
          %v2947 = vadd.f32 %v2753, %v2931
          %v2948 = vadd.f32 %v2754, %v2932
          %v2949 = vadd.f32 %v2755, %v2933
          %v2950 = vadd.f32 %v2756, %v2934
          %v2951 = vadd.f32 %v2757, %v2935
          %v2952 = vadd.f32 %v2758, %v2936
          %v2953 = vadd.f32 %v2759, %v2937
          %v2954 = vadd.f32 %v2760, %v2938
          %v2955 = vadd.f32 %v2761, %v2939
          %v2956 = vadd.f32 %v2762, %v2940
          %v2957 = vadd.f32 %v2763, %v2941
          %v2958 = vmul.f32 %v2433, -0.25
          %v2959 = vmul.f32 %v2434, -0.25
          %v2960 = vmul.f32 %v2435, -0.25
          %v2961 = vmul.f32 %v2436, -0.25
          %v2962 = vmul.f32 %v2437, -0.25
          %v2963 = vmul.f32 %v2438, -0.25
          %v2964 = vmul.f32 %v2439, -0.25
          %v2965 = vmul.f32 %v2440, -0.25
          %v2966 = vmul.f32 %v2441, -0.25
          %v2967 = vmul.f32 %v2442, -0.25
          %v2968 = vmul.f32 %v2443, -0.25
          %v2969 = vmul.f32 %v2444, -0.25
          %v2970 = vmul.f32 %v2445, -0.25
          %v2971 = vmul.f32 %v2446, -0.25
          %v2972 = vmul.f32 %v2447, -0.25
          %v2973 = vmul.f32 %v2448, -0.25
          %v2974 = vmul.f32 %v2958, 1.442695
          %v2975 = vpow.pop %v2974
          %v2976 = vmul.f32 %v2959, 1.442695
          %v2977 = vpow.pop %v2976
          %v2978 = vmul.f32 %v2960, 1.442695
          %v2979 = vpow.pop %v2978
          %v2980 = vmul.f32 %v2961, 1.442695
          %v2981 = vpow.pop %v2980
          %v2982 = vmul.f32 %v2962, 1.442695
          %v2983 = vpow.pop %v2982
          %v2984 = vmul.f32 %v2963, 1.442695
          %v2985 = vpow.pop %v2984
          %v2986 = vmul.f32 %v2964, 1.442695
          %v2987 = vpow.pop %v2986
          %v2988 = vmul.f32 %v2965, 1.442695
          %v2989 = vpow.pop %v2988
          %v2990 = vmul.f32 %v2966, 1.442695
          %v2991 = vpow.pop %v2990
          %v2992 = vmul.f32 %v2967, 1.442695
          %v2993 = vpow.pop %v2992
          %v2994 = vmul.f32 %v2968, 1.442695
          %v2995 = vpow.pop %v2994
          %v2996 = vmul.f32 %v2969, 1.442695
          %v2997 = vpow.pop %v2996
          %v2998 = vmul.f32 %v2970, 1.442695
          %v2999 = vpow.pop %v2998
          %v3000 = vmul.f32 %v2971, 1.442695
          %v3001 = vpow.pop %v3000
          %v3002 = vmul.f32 %v2972, 1.442695
          %v3003 = vpow.pop %v3002
          %v3004 = vmul.f32 %v2973, 1.442695
          %v3005 = vpow.pop %v3004
          %v3006 = vmul.f32 %v2975, %v2175
          %v3007 = vmul.f32 %v2977, %v2176
          %v3008 = vmul.f32 %v2979, %v2177
          %v3009 = vmul.f32 %v2981, %v2178
          %v3010 = vmul.f32 %v2983, %v2179
          %v3011 = vmul.f32 %v2985, %v2180
          %v3012 = vmul.f32 %v2987, %v2181
          %v3013 = vmul.f32 %v2989, %v2182
          %v3014 = vmul.f32 %v2991, %v2183
          %v3015 = vmul.f32 %v2993, %v2184
          %v3016 = vmul.f32 %v2995, %v2185
          %v3017 = vmul.f32 %v2997, %v2186
          %v3018 = vmul.f32 %v2999, %v2187
          %v3019 = vmul.f32 %v3001, %v2188
          %v3020 = vmul.f32 %v3003, %v2189
          %v3021 = vmul.f32 %v3005, %v2190
          %3022 = vadd.xlane.f32.xlu0 %v3006
          %v3023 = vpop.xlane.xlu0 %3022
          %3024 = vadd.xlane.f32.xlu0 %v3007
          %v3025 = vpop.xlane.xlu0 %3024
          %3026 = vadd.xlane.f32.xlu0 %v3008
          %v3027 = vpop.xlane.xlu0 %3026
          %3028 = vadd.xlane.f32.xlu0 %v3009
          %v3029 = vpop.xlane.xlu0 %3028
          %3030 = vadd.xlane.f32.xlu0 %v3010
          %v3031 = vpop.xlane.xlu0 %3030
          %3032 = vadd.xlane.f32.xlu0 %v3011
          %v3033 = vpop.xlane.xlu0 %3032
          %3034 = vadd.xlane.f32.xlu0 %v3012
          %v3035 = vpop.xlane.xlu0 %3034
          %3036 = vadd.xlane.f32.xlu0 %v3013
          %v3037 = vpop.xlane.xlu0 %3036
          %3038 = vadd.xlane.f32.xlu0 %v3014
          %v3039 = vpop.xlane.xlu0 %3038
          %3040 = vadd.xlane.f32.xlu0 %v3015
          %v3041 = vpop.xlane.xlu0 %3040
          %3042 = vadd.xlane.f32.xlu0 %v3016
          %v3043 = vpop.xlane.xlu0 %3042
          %3044 = vadd.xlane.f32.xlu0 %v3017
          %v3045 = vpop.xlane.xlu0 %3044
          %3046 = vadd.xlane.f32.xlu0 %v3018
          %v3047 = vpop.xlane.xlu0 %3046
          %3048 = vadd.xlane.f32.xlu0 %v3019
          %v3049 = vpop.xlane.xlu0 %3048
          %3050 = vadd.xlane.f32.xlu0 %v3020
          %v3051 = vpop.xlane.xlu0 %3050
          %3052 = vadd.xlane.f32.xlu0 %v3021
          %v3053 = vpop.xlane.xlu0 %3052
          %3054 = vadd.xlane.f32.xlu0 %v2975
          %v3055 = vpop.xlane.xlu0 %3054
          %3056 = vadd.xlane.f32.xlu0 %v2977
          %v3057 = vpop.xlane.xlu0 %3056
          %3058 = vadd.xlane.f32.xlu0 %v2979
          %v3059 = vpop.xlane.xlu0 %3058
          %3060 = vadd.xlane.f32.xlu0 %v2981
          %v3061 = vpop.xlane.xlu0 %3060
          %3062 = vadd.xlane.f32.xlu0 %v2983
          %v3063 = vpop.xlane.xlu0 %3062
          %3064 = vadd.xlane.f32.xlu0 %v2985
          %v3065 = vpop.xlane.xlu0 %3064
          %3066 = vadd.xlane.f32.xlu0 %v2987
          %v3067 = vpop.xlane.xlu0 %3066
          %3068 = vadd.xlane.f32.xlu0 %v2989
          %v3069 = vpop.xlane.xlu0 %3068
          %3070 = vadd.xlane.f32.xlu0 %v2991
          %v3071 = vpop.xlane.xlu0 %3070
          %3072 = vadd.xlane.f32.xlu0 %v2993
          %v3073 = vpop.xlane.xlu0 %3072
          %3074 = vadd.xlane.f32.xlu0 %v2995
          %v3075 = vpop.xlane.xlu0 %3074
          %3076 = vadd.xlane.f32.xlu0 %v2997
          %v3077 = vpop.xlane.xlu0 %3076
          %3078 = vadd.xlane.f32.xlu0 %v2999
          %v3079 = vpop.xlane.xlu0 %3078
          %3080 = vadd.xlane.f32.xlu0 %v3001
          %v3081 = vpop.xlane.xlu0 %3080
          %3082 = vadd.xlane.f32.xlu0 %v3003
          %v3083 = vpop.xlane.xlu0 %3082
          %3084 = vadd.xlane.f32.xlu0 %v3005
          %v3085 = vpop.xlane.xlu0 %3084
          %v3086 = vrcp.pop %v3055
          %v3087 = vrcp.pop %v3057
          %v3088 = vrcp.pop %v3059
          %v3089 = vrcp.pop %v3061
          %v3090 = vrcp.pop %v3063
          %v3091 = vrcp.pop %v3065
          %v3092 = vrcp.pop %v3067
          %v3093 = vrcp.pop %v3069
          %v3094 = vrcp.pop %v3071
          %v3095 = vrcp.pop %v3073
          %v3096 = vrcp.pop %v3075
          %v3097 = vrcp.pop %v3077
          %v3098 = vrcp.pop %v3079
          %v3099 = vrcp.pop %v3081
          %v3100 = vrcp.pop %v3083
          %v3101 = vrcp.pop %v3085
          %v3102 = vmul.f32 %v3023, %v3086
          %v3103 = vmul.f32 %v3025, %v3087
          %v3104 = vmul.f32 %v3027, %v3088
          %v3105 = vmul.f32 %v3029, %v3089
          %v3106 = vmul.f32 %v3031, %v3090
          %v3107 = vmul.f32 %v3033, %v3091
          %v3108 = vmul.f32 %v3035, %v3092
          %v3109 = vmul.f32 %v3037, %v3093
          %v3110 = vmul.f32 %v3039, %v3094
          %v3111 = vmul.f32 %v3041, %v3095
          %v3112 = vmul.f32 %v3043, %v3096
          %v3113 = vmul.f32 %v3045, %v3097
          %v3114 = vmul.f32 %v3047, %v3098
          %v3115 = vmul.f32 %v3049, %v3099
          %v3116 = vmul.f32 %v3051, %v3100
          %v3117 = vmul.f32 %v3053, %v3101
          %v3118 = vld [vmem:[#allocation12 + $0x2] sm:$0x1]
          %v3119 = vperm.slane %v3118, 0
          %v3120 = vmul.f32 %v3102, %v3119
          %v3121 = vmul.f32 %v3103, %v3119
          %v3122 = vmul.f32 %v3104, %v3119
          %v3123 = vmul.f32 %v3105, %v3119
          %v3124 = vmul.f32 %v3106, %v3119
          %v3125 = vmul.f32 %v3107, %v3119
          %v3126 = vmul.f32 %v3108, %v3119
          %v3127 = vmul.f32 %v3109, %v3119
          %v3128 = vmul.f32 %v3110, %v3119
          %v3129 = vmul.f32 %v3111, %v3119
          %v3130 = vmul.f32 %v3112, %v3119
          %v3131 = vmul.f32 %v3113, %v3119
          %v3132 = vmul.f32 %v3114, %v3119
          %v3133 = vmul.f32 %v3115, %v3119
          %v3134 = vmul.f32 %v3116, %v3119
          %v3135 = vmul.f32 %v3117, %v3119
          %v3136 = vadd.f32 %v2942, %v3120
          %v3137 = vadd.f32 %v2943, %v3121
          %v3138 = vadd.f32 %v2944, %v3122
          %v3139 = vadd.f32 %v2945, %v3123
          %v3140 = vadd.f32 %v2946, %v3124
          %v3141 = vadd.f32 %v2947, %v3125
          %v3142 = vadd.f32 %v2948, %v3126
          %v3143 = vadd.f32 %v2949, %v3127
          %v3144 = vadd.f32 %v2950, %v3128
          %v3145 = vadd.f32 %v2951, %v3129
          %v3146 = vadd.f32 %v2952, %v3130
          %v3147 = vadd.f32 %v2953, %v3131
          %v3148 = vadd.f32 %v2954, %v3132
          %v3149 = vadd.f32 %v2955, %v3133
          %v3150 = vadd.f32 %v2956, %v3134
          %v3151 = vadd.f32 %v2957, %v3135
          %v3152 = vmax.f32 %v3136, 0.0
          %v3153 = vmax.f32 %v3137, 0.0
          %v3154 = vmax.f32 %v3138, 0.0
          %v3155 = vmax.f32 %v3139, 0.0
          %v3156 = vmax.f32 %v3140, 0.0
          %v3157 = vmax.f32 %v3141, 0.0
          %v3158 = vmax.f32 %v3142, 0.0
          %v3159 = vmax.f32 %v3143, 0.0
          %v3160 = vmax.f32 %v3144, 0.0
          %v3161 = vmax.f32 %v3145, 0.0
          %v3162 = vmax.f32 %v3146, 0.0
          %v3163 = vmax.f32 %v3147, 0.0
          %v3164 = vmax.f32 %v3148, 0.0
          %v3165 = vmax.f32 %v3149, 0.0
          %v3166 = vmax.f32 %v3150, 0.0
          %v3167 = vmax.f32 %v3151, 0.0
          %v3168 = vld [vmem:[#allocation3] sm:$0xff]
          %v3169 = vld [vmem:[#allocation3 + $0x8] sm:$0xff]
          %v3170 = vld [vmem:[#allocation3 + $0x10] sm:$0xff]
          %v3171 = vld [vmem:[#allocation3 + $0x18] sm:$0xff]
          %v3172 = vld [vmem:[#allocation3 + $0x20] sm:$0xff]
          %v3173 = vld [vmem:[#allocation3 + $0x28] sm:$0xff]
          %v3174 = vld [vmem:[#allocation3 + $0x30] sm:$0xff]
          %v3175 = vld [vmem:[#allocation3 + $0x38] sm:$0xff]
          %v3176 = vld [vmem:[#allocation3 + $0x40] sm:$0xff]
          %v3177 = vld [vmem:[#allocation3 + $0x48] sm:$0xff]
          %v3178 = vld [vmem:[#allocation3 + $0x50] sm:$0xff]
          %v3179 = vld [vmem:[#allocation3 + $0x58] sm:$0xff]
          %v3180 = vld [vmem:[#allocation3 + $0x60] sm:$0xff]
          %v3181 = vld [vmem:[#allocation3 + $0x68] sm:$0xff]
          %v3182 = vld [vmem:[#allocation3 + $0x70] sm:$0xff]
          %v3183 = vld [vmem:[#allocation3 + $0x78] sm:$0xff]
          %v3184 = vld [vmem:[#allocation3 + $0x80] sm:$0xff]
          %v3185 = vld [vmem:[#allocation3 + $0x88] sm:$0xff]
          %v3186 = vld [vmem:[#allocation3 + $0x90] sm:$0xff]
          %v3187 = vld [vmem:[#allocation3 + $0x98] sm:$0xff]
          %v3188 = vld [vmem:[#allocation3 + $0xa0] sm:$0xff]
          %v3189 = vld [vmem:[#allocation3 + $0xa8] sm:$0xff]
          %v3190 = vld [vmem:[#allocation3 + $0xb0] sm:$0xff]
          %v3191 = vld [vmem:[#allocation3 + $0xb8] sm:$0xff]
          %v3192 = vld [vmem:[#allocation3 + $0xc0] sm:$0xff]
          %v3193 = vld [vmem:[#allocation3 + $0xc8] sm:$0xff]
          %v3194 = vld [vmem:[#allocation3 + $0xd0] sm:$0xff]
          %v3195 = vld [vmem:[#allocation3 + $0xd8] sm:$0xff]
          %v3196 = vld [vmem:[#allocation3 + $0xe0] sm:$0xff]
          %v3197 = vld [vmem:[#allocation3 + $0xe8] sm:$0xff]
          %v3198 = vld [vmem:[#allocation3 + $0xf0] sm:$0xff]
          %v3199 = vld [vmem:[#allocation3 + $0xf8] sm:$0xff]
          %v3200 = vpack.c.bf16 %v3153, %v3152
          %v3201 = vpack.c.bf16 %v3155, %v3154
          %v3202 = vpack.c.bf16 %v3157, %v3156
          %v3203 = vpack.c.bf16 %v3159, %v3158
          %v3204 = vpack.c.bf16 %v3161, %v3160
          %v3205 = vpack.c.bf16 %v3163, %v3162
          %v3206 = vpack.c.bf16 %v3165, %v3164
          %v3207 = vpack.c.bf16 %v3167, %v3166
          %v3208 = vld [vmem:[#allocation15] sm:$0xff]
          %v3209 = vld [vmem:[#allocation15 + $0x8] sm:$0xff]
          %v3210 = vld [vmem:[#allocation15 + $0x10] sm:$0xff]
          %v3211 = vld [vmem:[#allocation15 + $0x18] sm:$0xff]
          %v3212 = vld [vmem:[#allocation15 + $0x20] sm:$0xff]
          %v3213 = vld [vmem:[#allocation15 + $0x28] sm:$0xff]
          %v3214 = vld [vmem:[#allocation15 + $0x30] sm:$0xff]
          %v3215 = vld [vmem:[#allocation15 + $0x38] sm:$0xff]
          %v3224 = vunpack.c.l.b16 %v3208
          %v3225 = vunpack.c.h.b16 %v3208
          %v3226 = vunpack.c.l.b16 %v3209
          %v3227 = vunpack.c.h.b16 %v3209
          %v3228 = vunpack.c.l.b16 %v3210
          %v3229 = vunpack.c.h.b16 %v3210
          %v3230 = vunpack.c.l.b16 %v3211
          %v3231 = vunpack.c.h.b16 %v3211
          %v3232 = vunpack.c.l.b16 %v3212
          %v3233 = vunpack.c.h.b16 %v3212
          %v3234 = vunpack.c.l.b16 %v3213
          %v3235 = vunpack.c.h.b16 %v3213
          %v3236 = vunpack.c.l.b16 %v3214
          %v3237 = vunpack.c.h.b16 %v3214
          %v3238 = vunpack.c.l.b16 %v3215
          %v3239 = vunpack.c.h.b16 %v3215
          %v3240 = vpack.c.b16 %v3226, %v3224
          %v3241 = vpack.c.b16 %v3227, %v3225
          %v3242 = vpack.c.b16 %v3230, %v3228
          %v3243 = vpack.c.b16 %v3231, %v3229
          %v3244 = vpack.c.b16 %v3234, %v3232
          %v3245 = vpack.c.b16 %v3235, %v3233
          %v3246 = vpack.c.b16 %v3238, %v3236
          %v3247 = vpack.c.b16 %v3239, %v3237
          %v3257 = vsel %vm1111, %v3200, 0
          %v3260 = vsel %vm1111, %v3201, 0
          %v3263 = vsel %vm1111, %v3202, 0
          %v3266 = vsel %vm1111, %v3203, 0
          %v3269 = vsel %vm1111, %v3204, 0
          %v3272 = vsel %vm1111, %v3205, 0
          %v3275 = vsel %vm1111, %v3206, 0
          %v3278 = vsel %vm1111, %v3207, 0
          %3280 = vmatpush.bf16.msra.mxu0 0
          %3281 = vmatpush.bf16.msra.mxu0 0
          %3282 = vmatpush.bf16.msra.mxu0 0
          %3283 = vmatpush.bf16.msra.mxu0 0
          %3284 = vmatpush.bf16.msra.mxu0 %v3246
          %3285 = vmatpush.bf16.msra.mxu0 %v3244
          %3286 = vmatpush.bf16.msra.mxu0 %v3242
          %3287 = vmatpush.bf16.msra.mxu0 %v3240
          %3288 = vmatmul.bf16.gmra.mxu0 %v3257
          %v3289 = vpop.f32.mrf.mxu0
          %v3290 = vadd.f32 0.0, %v3289
          %v3291 = vpop.f32.mrf.mxu0
          %v3292 = vadd.f32 0.0, %v3291
          %3293 = vmatmul.bf16.gmra.mxu0 %v3260
          %v3294 = vpop.f32.mrf.mxu0
          %v3295 = vadd.f32 0.0, %v3294
          %v3296 = vpop.f32.mrf.mxu0
          %v3297 = vadd.f32 0.0, %v3296
          %3298 = vmatmul.bf16.gmra.mxu0 %v3263
          %v3299 = vpop.f32.mrf.mxu0
          %v3300 = vadd.f32 0.0, %v3299
          %v3301 = vpop.f32.mrf.mxu0
          %v3302 = vadd.f32 0.0, %v3301
          %3303 = vmatmul.bf16.gmra.mxu0 %v3266
          %v3304 = vpop.f32.mrf.mxu0
          %v3305 = vadd.f32 0.0, %v3304
          %v3306 = vpop.f32.mrf.mxu0
          %v3307 = vadd.f32 0.0, %v3306
          %3308 = vmatmul.bf16.gmra.mxu0 %v3269
          %v3309 = vpop.f32.mrf.mxu0
          %v3310 = vadd.f32 0.0, %v3309
          %v3311 = vpop.f32.mrf.mxu0
          %v3312 = vadd.f32 0.0, %v3311
          %3313 = vmatmul.bf16.gmra.mxu0 %v3272
          %v3314 = vpop.f32.mrf.mxu0
          %v3315 = vadd.f32 0.0, %v3314
          %v3316 = vpop.f32.mrf.mxu0
          %v3317 = vadd.f32 0.0, %v3316
          %3318 = vmatmul.bf16.gmra.mxu0 %v3275
          %v3319 = vpop.f32.mrf.mxu0
          %v3320 = vadd.f32 0.0, %v3319
          %v3321 = vpop.f32.mrf.mxu0
          %v3322 = vadd.f32 0.0, %v3321
          %3323 = vmatmul.bf16.gmra.mxu0 %v3278
          %v3324 = vpop.f32.mrf.mxu0
          %v3325 = vadd.f32 0.0, %v3324
          %v3326 = vpop.f32.mrf.mxu0
          %v3327 = vadd.f32 0.0, %v3326
          %3328 = vdwg.mxu0
          %3329 = vmatpush.bf16.msra.mxu0 0
          %3330 = vmatpush.bf16.msra.mxu0 0
          %3331 = vmatpush.bf16.msra.mxu0 0
          %3332 = vmatpush.bf16.msra.mxu0 0
          %3333 = vmatpush.bf16.msra.mxu0 %v3247
          %3334 = vmatpush.bf16.msra.mxu0 %v3245
          %3335 = vmatpush.bf16.msra.mxu0 %v3243
          %3336 = vmatpush.bf16.msra.mxu0 %v3241
          %3337 = vmatmul.bf16.gmra.mxu0 %v3257
          %v3338 = vpop.f32.mrf.mxu0
          %v3339 = vadd.f32 0.0, %v3338
          %v3340 = vpop.f32.mrf.mxu0
          %v3341 = vadd.f32 0.0, %v3340
          %3342 = vmatmul.bf16.gmra.mxu0 %v3260
          %v3343 = vpop.f32.mrf.mxu0
          %v3344 = vadd.f32 0.0, %v3343
          %v3345 = vpop.f32.mrf.mxu0
          %v3346 = vadd.f32 0.0, %v3345
          %3347 = vmatmul.bf16.gmra.mxu0 %v3263
          %v3348 = vpop.f32.mrf.mxu0
          %v3349 = vadd.f32 0.0, %v3348
          %v3350 = vpop.f32.mrf.mxu0
          %v3351 = vadd.f32 0.0, %v3350
          %3352 = vmatmul.bf16.gmra.mxu0 %v3266
          %v3353 = vpop.f32.mrf.mxu0
          %v3354 = vadd.f32 0.0, %v3353
          %v3355 = vpop.f32.mrf.mxu0
          %v3356 = vadd.f32 0.0, %v3355
          %3357 = vmatmul.bf16.gmra.mxu0 %v3269
          %v3358 = vpop.f32.mrf.mxu0
          %v3359 = vadd.f32 0.0, %v3358
          %v3360 = vpop.f32.mrf.mxu0
          %v3361 = vadd.f32 0.0, %v3360
          %3362 = vmatmul.bf16.gmra.mxu0 %v3272
          %v3363 = vpop.f32.mrf.mxu0
          %v3364 = vadd.f32 0.0, %v3363
          %v3365 = vpop.f32.mrf.mxu0
          %v3366 = vadd.f32 0.0, %v3365
          %3367 = vmatmul.bf16.gmra.mxu0 %v3275
          %v3368 = vpop.f32.mrf.mxu0
          %v3369 = vadd.f32 0.0, %v3368
          %v3370 = vpop.f32.mrf.mxu0
          %v3371 = vadd.f32 0.0, %v3370
          %3372 = vmatmul.bf16.gmra.mxu0 %v3278
          %v3373 = vpop.f32.mrf.mxu0
          %v3374 = vadd.f32 0.0, %v3373
          %v3375 = vpop.f32.mrf.mxu0
          %v3376 = vadd.f32 0.0, %v3375
          %3377 = vdwg.mxu0
          %v3378 = vadd.f32 %v3168, %v3290
          %v3379 = vadd.f32 %v3169, %v3339
          %v3380 = vadd.f32 %v3170, %v3292
          %v3381 = vadd.f32 %v3171, %v3341
          %v3382 = vadd.f32 %v3172, %v3295
          %v3383 = vadd.f32 %v3173, %v3344
          %v3384 = vadd.f32 %v3174, %v3297
          %v3385 = vadd.f32 %v3175, %v3346
          %v3386 = vadd.f32 %v3176, %v3300
          %v3387 = vadd.f32 %v3177, %v3349
          %v3388 = vadd.f32 %v3178, %v3302
          %v3389 = vadd.f32 %v3179, %v3351
          %v3390 = vadd.f32 %v3180, %v3305
          %v3391 = vadd.f32 %v3181, %v3354
          %v3392 = vadd.f32 %v3182, %v3307
          %v3393 = vadd.f32 %v3183, %v3356
          %v3394 = vadd.f32 %v3184, %v3310
          %v3395 = vadd.f32 %v3185, %v3359
          %v3396 = vadd.f32 %v3186, %v3312
          %v3397 = vadd.f32 %v3187, %v3361
          %v3398 = vadd.f32 %v3188, %v3315
          %v3399 = vadd.f32 %v3189, %v3364
          %v3400 = vadd.f32 %v3190, %v3317
          %v3401 = vadd.f32 %v3191, %v3366
          %v3402 = vadd.f32 %v3192, %v3320
          %v3403 = vadd.f32 %v3193, %v3369
          %v3404 = vadd.f32 %v3194, %v3322
          %v3405 = vadd.f32 %v3195, %v3371
          %v3406 = vadd.f32 %v3196, %v3325
          %v3407 = vadd.f32 %v3197, %v3374
          %v3408 = vadd.f32 %v3198, %v3327
          %v3409 = vadd.f32 %v3199, %v3376
          %v3410 = vpack.c.bf16 %v2112, %v2111
          %v3411 = vpack.c.bf16 %v2114, %v2113
          %v3412 = vpack.c.bf16 %v2116, %v2115
          %v3413 = vpack.c.bf16 %v2118, %v2117
          %v3414 = vpack.c.bf16 %v2120, %v2119
          %v3415 = vpack.c.bf16 %v2122, %v2121
          %v3416 = vpack.c.bf16 %v2124, %v2123
          %v3417 = vpack.c.bf16 %v2126, %v2125
          %v3418 = vld [vmem:[#allocation17] sm:$0xf]
          %v3419 = vld [vmem:[#allocation17 + $0x4] sm:$0xf]
          %v3420 = vld [vmem:[#allocation17 + $0x8] sm:$0xf]
          %v3421 = vld [vmem:[#allocation17 + $0xc] sm:$0xf]
          %v3422 = vld [vmem:[#allocation17 + $0x10] sm:$0xf]
          %v3423 = vld [vmem:[#allocation17 + $0x14] sm:$0xf]
          %v3424 = vld [vmem:[#allocation17 + $0x18] sm:$0xf]
          %v3425 = vld [vmem:[#allocation17 + $0x1c] sm:$0xf]
          %v3434 = vunpack.c.l.b16 %v3418
          %v3435 = vunpack.c.l.b16 %v3419
          %v3436 = vunpack.c.l.b16 %v3420
          %v3437 = vunpack.c.l.b16 %v3421
          %v3438 = vunpack.c.l.b16 %v3422
          %v3439 = vunpack.c.l.b16 %v3423
          %v3440 = vunpack.c.l.b16 %v3424
          %v3441 = vunpack.c.l.b16 %v3425
          %v3442 = vpack.c.b16 %v3435, %v3434
          %v3443 = vpack.c.b16 %v3437, %v3436
          %v3444 = vpack.c.b16 %v3439, %v3438
          %v3445 = vpack.c.b16 %v3441, %v3440
          %v3451 = vsel %vm1111, %v3410, 0
          %v3454 = vsel %vm1111, %v3411, 0
          %v3457 = vsel %vm1111, %v3412, 0
          %v3460 = vsel %vm1111, %v3413, 0
          %v3463 = vsel %vm1111, %v3414, 0
          %v3466 = vsel %vm1111, %v3415, 0
          %v3469 = vsel %vm1111, %v3416, 0
          %v3472 = vsel %vm1111, %v3417, 0
          %3474 = vmatpush.bf16.msra.mxu0 0
          %3475 = vmatpush.bf16.msra.mxu0 0
          %3476 = vmatpush.bf16.msra.mxu0 0
          %3477 = vmatpush.bf16.msra.mxu0 0
          %3478 = vmatpush.bf16.msra.mxu0 %v3445
          %3479 = vmatpush.bf16.msra.mxu0 %v3444
          %3480 = vmatpush.bf16.msra.mxu0 %v3443
          %3481 = vmatpush.bf16.msra.mxu0 %v3442
          %3482 = vmatmul.bf16.gmra.mxu0 %v3451
          %v3483 = vpop.f32.mrf.mxu0
          %v3484 = vadd.f32 0.0, %v3483
          %v3485 = vpop.f32.mrf.mxu0
          %v3486 = vadd.f32 0.0, %v3485
          %3487 = vmatmul.bf16.gmra.mxu0 %v3454
          %v3488 = vpop.f32.mrf.mxu0
          %v3489 = vadd.f32 0.0, %v3488
          %v3490 = vpop.f32.mrf.mxu0
          %v3491 = vadd.f32 0.0, %v3490
          %3492 = vmatmul.bf16.gmra.mxu0 %v3457
          %v3493 = vpop.f32.mrf.mxu0
          %v3494 = vadd.f32 0.0, %v3493
          %v3495 = vpop.f32.mrf.mxu0
          %v3496 = vadd.f32 0.0, %v3495
          %3497 = vmatmul.bf16.gmra.mxu0 %v3460
          %v3498 = vpop.f32.mrf.mxu0
          %v3499 = vadd.f32 0.0, %v3498
          %v3500 = vpop.f32.mrf.mxu0
          %v3501 = vadd.f32 0.0, %v3500
          %3502 = vmatmul.bf16.gmra.mxu0 %v3463
          %v3503 = vpop.f32.mrf.mxu0
          %v3504 = vadd.f32 0.0, %v3503
          %v3505 = vpop.f32.mrf.mxu0
          %v3506 = vadd.f32 0.0, %v3505
          %3507 = vmatmul.bf16.gmra.mxu0 %v3466
          %v3508 = vpop.f32.mrf.mxu0
          %v3509 = vadd.f32 0.0, %v3508
          %v3510 = vpop.f32.mrf.mxu0
          %v3511 = vadd.f32 0.0, %v3510
          %3512 = vmatmul.bf16.gmra.mxu0 %v3469
          %v3513 = vpop.f32.mrf.mxu0
          %v3514 = vadd.f32 0.0, %v3513
          %v3515 = vpop.f32.mrf.mxu0
          %v3516 = vadd.f32 0.0, %v3515
          %3517 = vmatmul.bf16.gmra.mxu0 %v3472
          %v3518 = vpop.f32.mrf.mxu0
          %v3519 = vadd.f32 0.0, %v3518
          %v3520 = vpop.f32.mrf.mxu0
          %v3521 = vadd.f32 0.0, %v3520
          %3522 = vdwg.mxu0
          %v3523 = vadd.f32 %v3378, %v3484
          %v3524 = vadd.f32 %v3380, %v3486
          %v3525 = vadd.f32 %v3382, %v3489
          %v3526 = vadd.f32 %v3384, %v3491
          %v3527 = vadd.f32 %v3386, %v3494
          %v3528 = vadd.f32 %v3388, %v3496
          %v3529 = vadd.f32 %v3390, %v3499
          %v3530 = vadd.f32 %v3392, %v3501
          %v3531 = vadd.f32 %v3394, %v3504
          %v3532 = vadd.f32 %v3396, %v3506
          %v3533 = vadd.f32 %v3398, %v3509
          %v3534 = vadd.f32 %v3400, %v3511
          %v3535 = vadd.f32 %v3402, %v3514
          %v3536 = vadd.f32 %v3404, %v3516
          %v3537 = vadd.f32 %v3406, %v3519
          %v3538 = vadd.f32 %v3408, %v3521
          %v3539 = vxor.u32 %v3523, 2147483648
          %v3540 = vxor.u32 %v3524, 2147483648
          %v3541 = vxor.u32 %v3525, 2147483648
          %v3542 = vxor.u32 %v3526, 2147483648
          %v3543 = vxor.u32 %v3527, 2147483648
          %v3544 = vxor.u32 %v3528, 2147483648
          %v3545 = vxor.u32 %v3529, 2147483648
          %v3546 = vxor.u32 %v3530, 2147483648
          %v3547 = vxor.u32 %v3531, 2147483648
          %v3548 = vxor.u32 %v3532, 2147483648
          %v3549 = vxor.u32 %v3533, 2147483648
          %v3550 = vxor.u32 %v3534, 2147483648
          %v3551 = vxor.u32 %v3535, 2147483648
          %v3552 = vxor.u32 %v3536, 2147483648
          %v3553 = vxor.u32 %v3537, 2147483648
          %v3554 = vxor.u32 %v3538, 2147483648
          %v3555 = vmul.f32 %v3539, 1.442695
          %v3556 = vpow.pop %v3555
          %v3557 = vmul.f32 %v3540, 1.442695
          %v3558 = vpow.pop %v3557
          %v3559 = vmul.f32 %v3541, 1.442695
          %v3560 = vpow.pop %v3559
          %v3561 = vmul.f32 %v3542, 1.442695
          %v3562 = vpow.pop %v3561
          %v3563 = vmul.f32 %v3543, 1.442695
          %v3564 = vpow.pop %v3563
          %v3565 = vmul.f32 %v3544, 1.442695
          %v3566 = vpow.pop %v3565
          %v3567 = vmul.f32 %v3545, 1.442695
          %v3568 = vpow.pop %v3567
          %v3569 = vmul.f32 %v3546, 1.442695
          %v3570 = vpow.pop %v3569
          %v3571 = vmul.f32 %v3547, 1.442695
          %v3572 = vpow.pop %v3571
          %v3573 = vmul.f32 %v3548, 1.442695
          %v3574 = vpow.pop %v3573
          %v3575 = vmul.f32 %v3549, 1.442695
          %v3576 = vpow.pop %v3575
          %v3577 = vmul.f32 %v3550, 1.442695
          %v3578 = vpow.pop %v3577
          %v3579 = vmul.f32 %v3551, 1.442695
          %v3580 = vpow.pop %v3579
          %v3581 = vmul.f32 %v3552, 1.442695
          %v3582 = vpow.pop %v3581
          %v3583 = vmul.f32 %v3553, 1.442695
          %v3584 = vpow.pop %v3583
          %v3585 = vmul.f32 %v3554, 1.442695
          %v3586 = vpow.pop %v3585
          %v3587 = vadd.f32 %v3556, 1.0
          %v3588 = vadd.f32 %v3558, 1.0
          %v3589 = vadd.f32 %v3560, 1.0
          %v3590 = vadd.f32 %v3562, 1.0
          %v3591 = vadd.f32 %v3564, 1.0
          %v3592 = vadd.f32 %v3566, 1.0
          %v3593 = vadd.f32 %v3568, 1.0
          %v3594 = vadd.f32 %v3570, 1.0
          %v3595 = vadd.f32 %v3572, 1.0
          %v3596 = vadd.f32 %v3574, 1.0
          %v3597 = vadd.f32 %v3576, 1.0
          %v3598 = vadd.f32 %v3578, 1.0
          %v3599 = vadd.f32 %v3580, 1.0
          %v3600 = vadd.f32 %v3582, 1.0
          %v3601 = vadd.f32 %v3584, 1.0
          %v3602 = vadd.f32 %v3586, 1.0
          %v3603 = vrcp.pop %v3587
          %v3604 = vmul.f32 %v3587, %v3603
          %v3605 = vsub.f32 1.0, %v3604
          %v3606 = vmul.f32 %v3603, %v3605
          %v3607 = vadd.f32 %v3603, %v3606
          %vm3608 = vweird.f32 %v3587
          %vm3609 = vweird.f32 %v3603
          %vm3610 = vmor %vm3608, %vm3609
          %v3611 = vsel %vm3610, %v3603, %v3607
          %v3612 = vand.u32 2147483647, %v3587
          %vm3613 = vcmp.eq.f32.partialorder %v3612, 8.507059e+37
          %v3614 = vand.u32 %v3587, 2147483648
          %v3615 = vor.u32 1.1754944e-38, %v3614
          %v3616 = vsel %vm3613, %v3615, %v3611
          %v3617 = vmul.f32 1.0, %v3616
          %v3618 = vrcp.pop %v3588
          %v3619 = vmul.f32 %v3588, %v3618
          %v3620 = vsub.f32 1.0, %v3619
          %v3621 = vmul.f32 %v3618, %v3620
          %v3622 = vadd.f32 %v3618, %v3621
          %vm3623 = vweird.f32 %v3588
          %vm3624 = vweird.f32 %v3618
          %vm3625 = vmor %vm3623, %vm3624
          %v3626 = vsel %vm3625, %v3618, %v3622
          %v3627 = vand.u32 2147483647, %v3588
          %vm3628 = vcmp.eq.f32.partialorder %v3627, 8.507059e+37
          %v3629 = vand.u32 %v3588, 2147483648
          %v3630 = vor.u32 1.1754944e-38, %v3629
          %v3631 = vsel %vm3628, %v3630, %v3626
          %v3632 = vmul.f32 1.0, %v3631
          %v3633 = vrcp.pop %v3589
          %v3634 = vmul.f32 %v3589, %v3633
          %v3635 = vsub.f32 1.0, %v3634
          %v3636 = vmul.f32 %v3633, %v3635
          %v3637 = vadd.f32 %v3633, %v3636
          %vm3638 = vweird.f32 %v3589
          %vm3639 = vweird.f32 %v3633
          %vm3640 = vmor %vm3638, %vm3639
          %v3641 = vsel %vm3640, %v3633, %v3637
          %v3642 = vand.u32 2147483647, %v3589
          %vm3643 = vcmp.eq.f32.partialorder %v3642, 8.507059e+37
          %v3644 = vand.u32 %v3589, 2147483648
          %v3645 = vor.u32 1.1754944e-38, %v3644
          %v3646 = vsel %vm3643, %v3645, %v3641
          %v3647 = vmul.f32 1.0, %v3646
          %v3648 = vrcp.pop %v3590
          %v3649 = vmul.f32 %v3590, %v3648
          %v3650 = vsub.f32 1.0, %v3649
          %v3651 = vmul.f32 %v3648, %v3650
          %v3652 = vadd.f32 %v3648, %v3651
          %vm3653 = vweird.f32 %v3590
          %vm3654 = vweird.f32 %v3648
          %vm3655 = vmor %vm3653, %vm3654
          %v3656 = vsel %vm3655, %v3648, %v3652
          %v3657 = vand.u32 2147483647, %v3590
          %vm3658 = vcmp.eq.f32.partialorder %v3657, 8.507059e+37
          %v3659 = vand.u32 %v3590, 2147483648
          %v3660 = vor.u32 1.1754944e-38, %v3659
          %v3661 = vsel %vm3658, %v3660, %v3656
          %v3662 = vmul.f32 1.0, %v3661
          %v3663 = vrcp.pop %v3591
          %v3664 = vmul.f32 %v3591, %v3663
          %v3665 = vsub.f32 1.0, %v3664
          %v3666 = vmul.f32 %v3663, %v3665
          %v3667 = vadd.f32 %v3663, %v3666
          %vm3668 = vweird.f32 %v3591
          %vm3669 = vweird.f32 %v3663
          %vm3670 = vmor %vm3668, %vm3669
          %v3671 = vsel %vm3670, %v3663, %v3667
          %v3672 = vand.u32 2147483647, %v3591
          %vm3673 = vcmp.eq.f32.partialorder %v3672, 8.507059e+37
          %v3674 = vand.u32 %v3591, 2147483648
          %v3675 = vor.u32 1.1754944e-38, %v3674
          %v3676 = vsel %vm3673, %v3675, %v3671
          %v3677 = vmul.f32 1.0, %v3676
          %v3678 = vrcp.pop %v3592
          %v3679 = vmul.f32 %v3592, %v3678
          %v3680 = vsub.f32 1.0, %v3679
          %v3681 = vmul.f32 %v3678, %v3680
          %v3682 = vadd.f32 %v3678, %v3681
          %vm3683 = vweird.f32 %v3592
          %vm3684 = vweird.f32 %v3678
          %vm3685 = vmor %vm3683, %vm3684
          %v3686 = vsel %vm3685, %v3678, %v3682
          %v3687 = vand.u32 2147483647, %v3592
          %vm3688 = vcmp.eq.f32.partialorder %v3687, 8.507059e+37
          %v3689 = vand.u32 %v3592, 2147483648
          %v3690 = vor.u32 1.1754944e-38, %v3689
          %v3691 = vsel %vm3688, %v3690, %v3686
          %v3692 = vmul.f32 1.0, %v3691
          %v3693 = vrcp.pop %v3593
          %v3694 = vmul.f32 %v3593, %v3693
          %v3695 = vsub.f32 1.0, %v3694
          %v3696 = vmul.f32 %v3693, %v3695
          %v3697 = vadd.f32 %v3693, %v3696
          %vm3698 = vweird.f32 %v3593
          %vm3699 = vweird.f32 %v3693
          %vm3700 = vmor %vm3698, %vm3699
          %v3701 = vsel %vm3700, %v3693, %v3697
          %v3702 = vand.u32 2147483647, %v3593
          %vm3703 = vcmp.eq.f32.partialorder %v3702, 8.507059e+37
          %v3704 = vand.u32 %v3593, 2147483648
          %v3705 = vor.u32 1.1754944e-38, %v3704
          %v3706 = vsel %vm3703, %v3705, %v3701
          %v3707 = vmul.f32 1.0, %v3706
          %v3708 = vrcp.pop %v3594
          %v3709 = vmul.f32 %v3594, %v3708
          %v3710 = vsub.f32 1.0, %v3709
          %v3711 = vmul.f32 %v3708, %v3710
          %v3712 = vadd.f32 %v3708, %v3711
          %vm3713 = vweird.f32 %v3594
          %vm3714 = vweird.f32 %v3708
          %vm3715 = vmor %vm3713, %vm3714
          %v3716 = vsel %vm3715, %v3708, %v3712
          %v3717 = vand.u32 2147483647, %v3594
          %vm3718 = vcmp.eq.f32.partialorder %v3717, 8.507059e+37
          %v3719 = vand.u32 %v3594, 2147483648
          %v3720 = vor.u32 1.1754944e-38, %v3719
          %v3721 = vsel %vm3718, %v3720, %v3716
          %v3722 = vmul.f32 1.0, %v3721
          %v3723 = vrcp.pop %v3595
          %v3724 = vmul.f32 %v3595, %v3723
          %v3725 = vsub.f32 1.0, %v3724
          %v3726 = vmul.f32 %v3723, %v3725
          %v3727 = vadd.f32 %v3723, %v3726
          %vm3728 = vweird.f32 %v3595
          %vm3729 = vweird.f32 %v3723
          %vm3730 = vmor %vm3728, %vm3729
          %v3731 = vsel %vm3730, %v3723, %v3727
          %v3732 = vand.u32 2147483647, %v3595
          %vm3733 = vcmp.eq.f32.partialorder %v3732, 8.507059e+37
          %v3734 = vand.u32 %v3595, 2147483648
          %v3735 = vor.u32 1.1754944e-38, %v3734
          %v3736 = vsel %vm3733, %v3735, %v3731
          %v3737 = vmul.f32 1.0, %v3736
          %v3738 = vrcp.pop %v3596
          %v3739 = vmul.f32 %v3596, %v3738
          %v3740 = vsub.f32 1.0, %v3739
          %v3741 = vmul.f32 %v3738, %v3740
          %v3742 = vadd.f32 %v3738, %v3741
          %vm3743 = vweird.f32 %v3596
          %vm3744 = vweird.f32 %v3738
          %vm3745 = vmor %vm3743, %vm3744
          %v3746 = vsel %vm3745, %v3738, %v3742
          %v3747 = vand.u32 2147483647, %v3596
          %vm3748 = vcmp.eq.f32.partialorder %v3747, 8.507059e+37
          %v3749 = vand.u32 %v3596, 2147483648
          %v3750 = vor.u32 1.1754944e-38, %v3749
          %v3751 = vsel %vm3748, %v3750, %v3746
          %v3752 = vmul.f32 1.0, %v3751
          %v3753 = vrcp.pop %v3597
          %v3754 = vmul.f32 %v3597, %v3753
          %v3755 = vsub.f32 1.0, %v3754
          %v3756 = vmul.f32 %v3753, %v3755
          %v3757 = vadd.f32 %v3753, %v3756
          %vm3758 = vweird.f32 %v3597
          %vm3759 = vweird.f32 %v3753
          %vm3760 = vmor %vm3758, %vm3759
          %v3761 = vsel %vm3760, %v3753, %v3757
          %v3762 = vand.u32 2147483647, %v3597
          %vm3763 = vcmp.eq.f32.partialorder %v3762, 8.507059e+37
          %v3764 = vand.u32 %v3597, 2147483648
          %v3765 = vor.u32 1.1754944e-38, %v3764
          %v3766 = vsel %vm3763, %v3765, %v3761
          %v3767 = vmul.f32 1.0, %v3766
          %v3768 = vrcp.pop %v3598
          %v3769 = vmul.f32 %v3598, %v3768
          %v3770 = vsub.f32 1.0, %v3769
          %v3771 = vmul.f32 %v3768, %v3770
          %v3772 = vadd.f32 %v3768, %v3771
          %vm3773 = vweird.f32 %v3598
          %vm3774 = vweird.f32 %v3768
          %vm3775 = vmor %vm3773, %vm3774
          %v3776 = vsel %vm3775, %v3768, %v3772
          %v3777 = vand.u32 2147483647, %v3598
          %vm3778 = vcmp.eq.f32.partialorder %v3777, 8.507059e+37
          %v3779 = vand.u32 %v3598, 2147483648
          %v3780 = vor.u32 1.1754944e-38, %v3779
          %v3781 = vsel %vm3778, %v3780, %v3776
          %v3782 = vmul.f32 1.0, %v3781
          %v3783 = vrcp.pop %v3599
          %v3784 = vmul.f32 %v3599, %v3783
          %v3785 = vsub.f32 1.0, %v3784
          %v3786 = vmul.f32 %v3783, %v3785
          %v3787 = vadd.f32 %v3783, %v3786
          %vm3788 = vweird.f32 %v3599
          %vm3789 = vweird.f32 %v3783
          %vm3790 = vmor %vm3788, %vm3789
          %v3791 = vsel %vm3790, %v3783, %v3787
          %v3792 = vand.u32 2147483647, %v3599
          %vm3793 = vcmp.eq.f32.partialorder %v3792, 8.507059e+37
          %v3794 = vand.u32 %v3599, 2147483648
          %v3795 = vor.u32 1.1754944e-38, %v3794
          %v3796 = vsel %vm3793, %v3795, %v3791
          %v3797 = vmul.f32 1.0, %v3796
          %v3798 = vrcp.pop %v3600
          %v3799 = vmul.f32 %v3600, %v3798
          %v3800 = vsub.f32 1.0, %v3799
          %v3801 = vmul.f32 %v3798, %v3800
          %v3802 = vadd.f32 %v3798, %v3801
          %vm3803 = vweird.f32 %v3600
          %vm3804 = vweird.f32 %v3798
          %vm3805 = vmor %vm3803, %vm3804
          %v3806 = vsel %vm3805, %v3798, %v3802
          %v3807 = vand.u32 2147483647, %v3600
          %vm3808 = vcmp.eq.f32.partialorder %v3807, 8.507059e+37
          %v3809 = vand.u32 %v3600, 2147483648
          %v3810 = vor.u32 1.1754944e-38, %v3809
          %v3811 = vsel %vm3808, %v3810, %v3806
          %v3812 = vmul.f32 1.0, %v3811
          %v3813 = vrcp.pop %v3601
          %v3814 = vmul.f32 %v3601, %v3813
          %v3815 = vsub.f32 1.0, %v3814
          %v3816 = vmul.f32 %v3813, %v3815
          %v3817 = vadd.f32 %v3813, %v3816
          %vm3818 = vweird.f32 %v3601
          %vm3819 = vweird.f32 %v3813
          %vm3820 = vmor %vm3818, %vm3819
          %v3821 = vsel %vm3820, %v3813, %v3817
          %v3822 = vand.u32 2147483647, %v3601
          %vm3823 = vcmp.eq.f32.partialorder %v3822, 8.507059e+37
          %v3824 = vand.u32 %v3601, 2147483648
          %v3825 = vor.u32 1.1754944e-38, %v3824
          %v3826 = vsel %vm3823, %v3825, %v3821
          %v3827 = vmul.f32 1.0, %v3826
          %v3828 = vrcp.pop %v3602
          %v3829 = vmul.f32 %v3602, %v3828
          %v3830 = vsub.f32 1.0, %v3829
          %v3831 = vmul.f32 %v3828, %v3830
          %v3832 = vadd.f32 %v3828, %v3831
          %vm3833 = vweird.f32 %v3602
          %vm3834 = vweird.f32 %v3828
          %vm3835 = vmor %vm3833, %vm3834
          %v3836 = vsel %vm3835, %v3828, %v3832
          %v3837 = vand.u32 2147483647, %v3602
          %vm3838 = vcmp.eq.f32.partialorder %v3837, 8.507059e+37
          %v3839 = vand.u32 %v3602, 2147483648
          %v3840 = vor.u32 1.1754944e-38, %v3839
          %v3841 = vsel %vm3838, %v3840, %v3836
          %v3842 = vmul.f32 1.0, %v3841
          %3859 = vrot.lane.b32.xlu0 %v2111, 64
          %v3860 = vpop.permute.xlu0 %3859
          %3861 = vrot.lane.b32.xlu0 %v2112, 64
          %v3862 = vpop.permute.xlu0 %3861
          %3863 = vrot.lane.b32.xlu0 %v2113, 64
          %v3864 = vpop.permute.xlu0 %3863
          %3865 = vrot.lane.b32.xlu0 %v2114, 64
          %v3866 = vpop.permute.xlu0 %3865
          %3867 = vrot.lane.b32.xlu0 %v2115, 64
          %v3868 = vpop.permute.xlu0 %3867
          %3869 = vrot.lane.b32.xlu0 %v2116, 64
          %v3870 = vpop.permute.xlu0 %3869
          %3871 = vrot.lane.b32.xlu0 %v2117, 64
          %v3872 = vpop.permute.xlu0 %3871
          %3873 = vrot.lane.b32.xlu0 %v2118, 64
          %v3874 = vpop.permute.xlu0 %3873
          %3875 = vrot.lane.b32.xlu0 %v2119, 64
          %v3876 = vpop.permute.xlu0 %3875
          %3877 = vrot.lane.b32.xlu0 %v2120, 64
          %v3878 = vpop.permute.xlu0 %3877
          %3879 = vrot.lane.b32.xlu0 %v2121, 64
          %v3880 = vpop.permute.xlu0 %3879
          %3881 = vrot.lane.b32.xlu0 %v2122, 64
          %v3882 = vpop.permute.xlu0 %3881
          %3883 = vrot.lane.b32.xlu0 %v2123, 64
          %v3884 = vpop.permute.xlu0 %3883
          %3885 = vrot.lane.b32.xlu0 %v2124, 64
          %v3886 = vpop.permute.xlu0 %3885
          %3887 = vrot.lane.b32.xlu0 %v2125, 64
          %v3888 = vpop.permute.xlu0 %3887
          %3889 = vrot.lane.b32.xlu0 %v2126, 64
          %v3890 = vpop.permute.xlu0 %3889
          %v3907 = vmul.f32 %v3617, %v3860
          %v3908 = vmul.f32 %v3632, %v3862
          %v3909 = vmul.f32 %v3647, %v3864
          %v3910 = vmul.f32 %v3662, %v3866
          %v3911 = vmul.f32 %v3677, %v3868
          %v3912 = vmul.f32 %v3692, %v3870
          %v3913 = vmul.f32 %v3707, %v3872
          %v3914 = vmul.f32 %v3722, %v3874
          %v3915 = vmul.f32 %v3737, %v3876
          %v3916 = vmul.f32 %v3752, %v3878
          %v3917 = vmul.f32 %v3767, %v3880
          %v3918 = vmul.f32 %v3782, %v3882
          %v3919 = vmul.f32 %v3797, %v3884
          %v3920 = vmul.f32 %v3812, %v3886
          %v3921 = vmul.f32 %v3827, %v3888
          %v3922 = vmul.f32 %v3842, %v3890
          %v3923 = vpack.c.bf16 %v3908, %v3907
          %v3924 = vpack.c.bf16 %v3910, %v3909
          %v3925 = vpack.c.bf16 %v3912, %v3911
          %v3926 = vpack.c.bf16 %v3914, %v3913
          %v3927 = vpack.c.bf16 %v3916, %v3915
          %v3928 = vpack.c.bf16 %v3918, %v3917
          %v3929 = vpack.c.bf16 %v3920, %v3919
          %v3930 = vpack.c.bf16 %v3922, %v3921
          %v3931 = vld [vmem:[#allocation18] sm:$0xf]
          %v3932 = vld [vmem:[#allocation18 + $0x4] sm:$0xf]
          %v3933 = vld [vmem:[#allocation18 + $0x8] sm:$0xf]
          %v3934 = vld [vmem:[#allocation18 + $0xc] sm:$0xf]
          %v3935 = vld [vmem:[#allocation18 + $0x10] sm:$0xf]
          %v3936 = vld [vmem:[#allocation18 + $0x14] sm:$0xf]
          %v3937 = vld [vmem:[#allocation18 + $0x18] sm:$0xf]
          %v3938 = vld [vmem:[#allocation18 + $0x1c] sm:$0xf]
          %3947 = vrot.lane.b32.xlu0 %v3923, 64
          %v3948 = vpop.permute.xlu0 %3947
          %3949 = vrot.lane.b32.xlu0 %v3924, 64
          %v3950 = vpop.permute.xlu0 %3949
          %3951 = vrot.lane.b32.xlu0 %v3925, 64
          %v3952 = vpop.permute.xlu0 %3951
          %3953 = vrot.lane.b32.xlu0 %v3926, 64
          %v3954 = vpop.permute.xlu0 %3953
          %3955 = vrot.lane.b32.xlu0 %v3927, 64
          %v3956 = vpop.permute.xlu0 %3955
          %3957 = vrot.lane.b32.xlu0 %v3928, 64
          %v3958 = vpop.permute.xlu0 %3957
          %3959 = vrot.lane.b32.xlu0 %v3929, 64
          %v3960 = vpop.permute.xlu0 %3959
          %3961 = vrot.lane.b32.xlu0 %v3930, 64
          %v3962 = vpop.permute.xlu0 %3961
          %v3971 = vunpack.c.l.b16 %v3931
          %v3972 = vunpack.c.l.b16 %v3932
          %v3973 = vunpack.c.l.b16 %v3933
          %v3974 = vunpack.c.l.b16 %v3934
          %v3975 = vunpack.c.l.b16 %v3935
          %v3976 = vunpack.c.l.b16 %v3936
          %v3977 = vunpack.c.l.b16 %v3937
          %v3978 = vunpack.c.l.b16 %v3938
          %v3979 = vpack.c.b16 %v3972, %v3971
          %v3980 = vpack.c.b16 %v3974, %v3973
          %v3981 = vpack.c.b16 %v3976, %v3975
          %v3982 = vpack.c.b16 %v3978, %v3977
          %v3988 = vsel %vm1111, %v3948, 0
          %v3991 = vsel %vm1111, %v3950, 0
          %v3994 = vsel %vm1111, %v3952, 0
          %v3997 = vsel %vm1111, %v3954, 0
          %v4000 = vsel %vm1111, %v3956, 0
          %v4003 = vsel %vm1111, %v3958, 0
          %v4006 = vsel %vm1111, %v3960, 0
          %v4009 = vsel %vm1111, %v3962, 0
          %4011 = vmatpush.bf16.msra.mxu0 0
          %4012 = vmatpush.bf16.msra.mxu0 0
          %4013 = vmatpush.bf16.msra.mxu0 0
          %4014 = vmatpush.bf16.msra.mxu0 0
          %4015 = vmatpush.bf16.msra.mxu0 %v3982
          %4016 = vmatpush.bf16.msra.mxu0 %v3981
          %4017 = vmatpush.bf16.msra.mxu0 %v3980
          %4018 = vmatpush.bf16.msra.mxu0 %v3979
          %4019 = vmatmul.bf16.gmra.mxu0 %v3988
          %v4020 = vpop.f32.mrf.mxu0
          %v4021 = vadd.f32 0.0, %v4020
          %v4022 = vpop.f32.mrf.mxu0
          %v4023 = vadd.f32 0.0, %v4022
          %4024 = vmatmul.bf16.gmra.mxu0 %v3991
          %v4025 = vpop.f32.mrf.mxu0
          %v4026 = vadd.f32 0.0, %v4025
          %v4027 = vpop.f32.mrf.mxu0
          %v4028 = vadd.f32 0.0, %v4027
          %4029 = vmatmul.bf16.gmra.mxu0 %v3994
          %v4030 = vpop.f32.mrf.mxu0
          %v4031 = vadd.f32 0.0, %v4030
          %v4032 = vpop.f32.mrf.mxu0
          %v4033 = vadd.f32 0.0, %v4032
          %4034 = vmatmul.bf16.gmra.mxu0 %v3997
          %v4035 = vpop.f32.mrf.mxu0
          %v4036 = vadd.f32 0.0, %v4035
          %v4037 = vpop.f32.mrf.mxu0
          %v4038 = vadd.f32 0.0, %v4037
          %4039 = vmatmul.bf16.gmra.mxu0 %v4000
          %v4040 = vpop.f32.mrf.mxu0
          %v4041 = vadd.f32 0.0, %v4040
          %v4042 = vpop.f32.mrf.mxu0
          %v4043 = vadd.f32 0.0, %v4042
          %4044 = vmatmul.bf16.gmra.mxu0 %v4003
          %v4045 = vpop.f32.mrf.mxu0
          %v4046 = vadd.f32 0.0, %v4045
          %v4047 = vpop.f32.mrf.mxu0
          %v4048 = vadd.f32 0.0, %v4047
          %4049 = vmatmul.bf16.gmra.mxu0 %v4006
          %v4050 = vpop.f32.mrf.mxu0
          %v4051 = vadd.f32 0.0, %v4050
          %v4052 = vpop.f32.mrf.mxu0
          %v4053 = vadd.f32 0.0, %v4052
          %4054 = vmatmul.bf16.gmra.mxu0 %v4009
          %v4055 = vpop.f32.mrf.mxu0
          %v4056 = vadd.f32 0.0, %v4055
          %v4057 = vpop.f32.mrf.mxu0
          %v4058 = vadd.f32 0.0, %v4057
          %4059 = vdwg.mxu0
          %v4060 = vadd.f32 %v3379, %v4021
          %v4061 = vadd.f32 %v3381, %v4023
          %v4062 = vadd.f32 %v3383, %v4026
          %v4063 = vadd.f32 %v3385, %v4028
          %v4064 = vadd.f32 %v3387, %v4031
          %v4065 = vadd.f32 %v3389, %v4033
          %v4066 = vadd.f32 %v3391, %v4036
          %v4067 = vadd.f32 %v3393, %v4038
          %v4068 = vadd.f32 %v3395, %v4041
          %v4069 = vadd.f32 %v3397, %v4043
          %v4070 = vadd.f32 %v3399, %v4046
          %v4071 = vadd.f32 %v3401, %v4048
          %v4072 = vadd.f32 %v3403, %v4051
          %v4073 = vadd.f32 %v3405, %v4053
          %v4074 = vadd.f32 %v3407, %v4056
          %v4075 = vadd.f32 %v3409, %v4058
          %v4076 = vtanh.pop %v4060
          %v4077 = vtanh.pop %v4061
          %v4078 = vtanh.pop %v4062
          %v4079 = vtanh.pop %v4063
          %v4080 = vtanh.pop %v4064
          %v4081 = vtanh.pop %v4065
          %v4082 = vtanh.pop %v4066
          %v4083 = vtanh.pop %v4067
          %v4084 = vtanh.pop %v4068
          %v4085 = vtanh.pop %v4069
          %v4086 = vtanh.pop %v4070
          %v4087 = vtanh.pop %v4071
          %v4088 = vtanh.pop %v4072
          %v4089 = vtanh.pop %v4073
          %v4090 = vtanh.pop %v4074
          %v4091 = vtanh.pop %v4075
          %v4092 = vsub.f32 1.0, %v3617
          %v4093 = vsub.f32 1.0, %v3632
          %v4094 = vsub.f32 1.0, %v3647
          %v4095 = vsub.f32 1.0, %v3662
          %v4096 = vsub.f32 1.0, %v3677
          %v4097 = vsub.f32 1.0, %v3692
          %v4098 = vsub.f32 1.0, %v3707
          %v4099 = vsub.f32 1.0, %v3722
          %v4100 = vsub.f32 1.0, %v3737
          %v4101 = vsub.f32 1.0, %v3752
          %v4102 = vsub.f32 1.0, %v3767
          %v4103 = vsub.f32 1.0, %v3782
          %v4104 = vsub.f32 1.0, %v3797
          %v4105 = vsub.f32 1.0, %v3812
          %v4106 = vsub.f32 1.0, %v3827
          %v4107 = vsub.f32 1.0, %v3842
          %v4108 = vmul.f32 %v4092, %v2111
          %v4109 = vmul.f32 %v4093, %v2112
          %v4110 = vmul.f32 %v4094, %v2113
          %v4111 = vmul.f32 %v4095, %v2114
          %v4112 = vmul.f32 %v4096, %v2115
          %v4113 = vmul.f32 %v4097, %v2116
          %v4114 = vmul.f32 %v4098, %v2117
          %v4115 = vmul.f32 %v4099, %v2118
          %v4116 = vmul.f32 %v4100, %v2119
          %v4117 = vmul.f32 %v4101, %v2120
          %v4118 = vmul.f32 %v4102, %v2121
          %v4119 = vmul.f32 %v4103, %v2122
          %v4120 = vmul.f32 %v4104, %v2123
          %v4121 = vmul.f32 %v4105, %v2124
          %v4122 = vmul.f32 %v4106, %v2125
          %v4123 = vmul.f32 %v4107, %v2126
          %v4124 = vmul.f32 %v3617, %v4076
          %v4125 = vmul.f32 %v3632, %v4077
          %v4126 = vmul.f32 %v3647, %v4078
          %v4127 = vmul.f32 %v3662, %v4079
          %v4128 = vmul.f32 %v3677, %v4080
          %v4129 = vmul.f32 %v3692, %v4081
          %v4130 = vmul.f32 %v3707, %v4082
          %v4131 = vmul.f32 %v3722, %v4083
          %v4132 = vmul.f32 %v3737, %v4084
          %v4133 = vmul.f32 %v3752, %v4085
          %v4134 = vmul.f32 %v3767, %v4086
          %v4135 = vmul.f32 %v3782, %v4087
          %v4136 = vmul.f32 %v3797, %v4088
          %v4137 = vmul.f32 %v3812, %v4089
          %v4138 = vmul.f32 %v3827, %v4090
          %v4139 = vmul.f32 %v3842, %v4091
          %v4140 = vadd.f32 %v4108, %v4124
          %v4141 = vadd.f32 %v4109, %v4125
          %v4142 = vadd.f32 %v4110, %v4126
          %v4143 = vadd.f32 %v4111, %v4127
          %v4144 = vadd.f32 %v4112, %v4128
          %v4145 = vadd.f32 %v4113, %v4129
          %v4146 = vadd.f32 %v4114, %v4130
          %v4147 = vadd.f32 %v4115, %v4131
          %v4148 = vadd.f32 %v4116, %v4132
          %v4149 = vadd.f32 %v4117, %v4133
          %v4150 = vadd.f32 %v4118, %v4134
          %v4151 = vadd.f32 %v4119, %v4135
          %v4152 = vadd.f32 %v4120, %v4136
          %v4153 = vadd.f32 %v4121, %v4137
          %v4154 = vadd.f32 %v4122, %v4138
          %v4155 = vadd.f32 %v4123, %v4139
          %v4156 = vpack.c.bf16 %v4141, %v4140
          %v4157 = vpack.c.bf16 %v4143, %v4142
          %v4158 = vpack.c.bf16 %v4145, %v4144
          %v4159 = vpack.c.bf16 %v4147, %v4146
          %v4160 = vpack.c.bf16 %v4149, %v4148
          %v4161 = vpack.c.bf16 %v4151, %v4150
          %v4162 = vpack.c.bf16 %v4153, %v4152
          %v4163 = vpack.c.bf16 %v4155, %v4154
          %v4164 = vld [vmem:[#allocation20] sm:$0xf]
          %v4165 = vld [vmem:[#allocation20 + $0x4] sm:$0xf]
          %v4166 = vld [vmem:[#allocation20 + $0x8] sm:$0xf]
          %v4167 = vld [vmem:[#allocation20 + $0xc] sm:$0xf]
          %v4168 = vld [vmem:[#allocation20 + $0x10] sm:$0xf]
          %v4169 = vld [vmem:[#allocation20 + $0x14] sm:$0xf]
          %v4170 = vld [vmem:[#allocation20 + $0x18] sm:$0xf]
          %v4171 = vld [vmem:[#allocation20 + $0x1c] sm:$0xf]
          %v4172 = vld [vmem:[%s19] sm:$0x1]
          %v4174 = vperm.slane %v4172, 0
          %v4184 = vunpack.c.l.b16 %v4164
          %v4185 = vunpack.c.l.b16 %v4165
          %v4186 = vunpack.c.l.b16 %v4166
          %v4187 = vunpack.c.l.b16 %v4167
          %v4188 = vunpack.c.l.b16 %v4168
          %v4189 = vunpack.c.l.b16 %v4169
          %v4190 = vunpack.c.l.b16 %v4170
          %v4191 = vunpack.c.l.b16 %v4171
          %v4192 = vpack.c.b16 %v4185, %v4184
          %v4193 = vpack.c.b16 %v4187, %v4186
          %v4194 = vpack.c.b16 %v4189, %v4188
          %v4195 = vpack.c.b16 %v4191, %v4190
          %v4201 = vsel %vm1111, %v4156, 0
          %v4204 = vsel %vm1111, %v4157, 0
          %v4207 = vsel %vm1111, %v4158, 0
          %v4210 = vsel %vm1111, %v4159, 0
          %v4213 = vsel %vm1111, %v4160, 0
          %v4216 = vsel %vm1111, %v4161, 0
          %v4219 = vsel %vm1111, %v4162, 0
          %v4222 = vsel %vm1111, %v4163, 0
          %4224 = vmatpush.bf16.msra.mxu0 0
          %4225 = vmatpush.bf16.msra.mxu0 0
          %4226 = vmatpush.bf16.msra.mxu0 0
          %4227 = vmatpush.bf16.msra.mxu0 0
          %4228 = vmatpush.bf16.msra.mxu0 %v4195
          %4229 = vmatpush.bf16.msra.mxu0 %v4194
          %4230 = vmatpush.bf16.msra.mxu0 %v4193
          %4231 = vmatpush.bf16.msra.mxu0 %v4192
          %4232 = vmatmul.bf16.gmra.mxu0 %v4201
          %v4233 = vpop.f32.mrf.mxu0
          %v4234 = vadd.f32 %v4174, %v4233
          %v4235 = vpop.f32.mrf.mxu0
          %v4236 = vadd.f32 %v4174, %v4235
          %4237 = vmatmul.bf16.gmra.mxu0 %v4204
          %v4238 = vpop.f32.mrf.mxu0
          %v4239 = vadd.f32 %v4174, %v4238
          %v4240 = vpop.f32.mrf.mxu0
          %v4241 = vadd.f32 %v4174, %v4240
          %4242 = vmatmul.bf16.gmra.mxu0 %v4207
          %v4243 = vpop.f32.mrf.mxu0
          %v4244 = vadd.f32 %v4174, %v4243
          %v4245 = vpop.f32.mrf.mxu0
          %v4246 = vadd.f32 %v4174, %v4245
          %4247 = vmatmul.bf16.gmra.mxu0 %v4210
          %v4248 = vpop.f32.mrf.mxu0
          %v4249 = vadd.f32 %v4174, %v4248
          %v4250 = vpop.f32.mrf.mxu0
          %v4251 = vadd.f32 %v4174, %v4250
          %4252 = vmatmul.bf16.gmra.mxu0 %v4213
          %v4253 = vpop.f32.mrf.mxu0
          %v4254 = vadd.f32 %v4174, %v4253
          %v4255 = vpop.f32.mrf.mxu0
          %v4256 = vadd.f32 %v4174, %v4255
          %4257 = vmatmul.bf16.gmra.mxu0 %v4216
          %v4258 = vpop.f32.mrf.mxu0
          %v4259 = vadd.f32 %v4174, %v4258
          %v4260 = vpop.f32.mrf.mxu0
          %v4261 = vadd.f32 %v4174, %v4260
          %4262 = vmatmul.bf16.gmra.mxu0 %v4219
          %v4263 = vpop.f32.mrf.mxu0
          %v4264 = vadd.f32 %v4174, %v4263
          %v4265 = vpop.f32.mrf.mxu0
          %v4266 = vadd.f32 %v4174, %v4265
          %4267 = vmatmul.bf16.gmra.mxu0 %v4222
          %v4268 = vpop.f32.mrf.mxu0
          %v4269 = vadd.f32 %v4174, %v4268
          %v4270 = vpop.f32.mrf.mxu0
          %v4271 = vadd.f32 %v4174, %v4270
          %4272 = vdwg.mxu0
          %v4273 = vmax.f32 %v4234, 0.0
          %v4274 = vmax.f32 %v4236, 0.0
          %v4275 = vmax.f32 %v4239, 0.0
          %v4276 = vmax.f32 %v4241, 0.0
          %v4277 = vmax.f32 %v4244, 0.0
          %v4278 = vmax.f32 %v4246, 0.0
          %v4279 = vmax.f32 %v4249, 0.0
          %v4280 = vmax.f32 %v4251, 0.0
          %v4281 = vmax.f32 %v4254, 0.0
          %v4282 = vmax.f32 %v4256, 0.0
          %v4283 = vmax.f32 %v4259, 0.0
          %v4284 = vmax.f32 %v4261, 0.0
          %v4285 = vmax.f32 %v4264, 0.0
          %v4286 = vmax.f32 %v4266, 0.0
          %v4287 = vmax.f32 %v4269, 0.0
          %v4288 = vmax.f32 %v4271, 0.0
          %v4289 = vld [vmem:[#allocation21] sm:$0xff]
          %v4290 = vld [vmem:[#allocation21 + $0x8] sm:$0xff]
          %v4291 = vld [vmem:[#allocation21 + $0x10] sm:$0xff]
          %v4292 = vld [vmem:[#allocation21 + $0x18] sm:$0xff]
          %v4293 = vld [vmem:[#allocation21 + $0x20] sm:$0xff]
          %v4294 = vld [vmem:[#allocation21 + $0x28] sm:$0xff]
          %v4295 = vld [vmem:[#allocation21 + $0x30] sm:$0xff]
          %v4296 = vld [vmem:[#allocation21 + $0x38] sm:$0xff]
          %v4297 = vld [vmem:[%s21] sm:$0x1]
          %v4299 = vperm.slane %v4297, 0
          %v4302 = vsel %vm1111, %v4273, 0
          %v4305 = vsel %vm1111, %v4274, 0
          %v4308 = vsel %vm1111, %v4275, 0
          %v4311 = vsel %vm1111, %v4276, 0
          %v4314 = vsel %vm1111, %v4277, 0
          %v4317 = vsel %vm1111, %v4278, 0
          %v4320 = vsel %vm1111, %v4279, 0
          %v4323 = vsel %vm1111, %v4280, 0
          %v4326 = vsel %vm1111, %v4281, 0
          %v4329 = vsel %vm1111, %v4282, 0
          %v4332 = vsel %vm1111, %v4283, 0
          %v4335 = vsel %vm1111, %v4284, 0
          %v4338 = vsel %vm1111, %v4285, 0
          %v4341 = vsel %vm1111, %v4286, 0
          %v4344 = vsel %vm1111, %v4287, 0
          %v4347 = vsel %vm1111, %v4288, 0
          %4349 = vmatpush.msra.mxu0 0.0
          %4350 = vmatpush.msra.mxu0 0.0
          %4351 = vmatpush.msra.mxu0 0.0
          %4352 = vmatpush.msra.mxu0 0.0
          %4353 = vmatpush.msra.mxu0 0.0
          %4354 = vmatpush.msra.mxu0 0.0
          %4355 = vmatpush.msra.mxu0 0.0
          %4356 = vmatpush.msra.mxu0 0.0
          %4357 = vmatpush.msra.mxu0 %v4296
          %4358 = vmatpush.msra.mxu0 %v4295
          %4359 = vmatpush.msra.mxu0 %v4294
          %4360 = vmatpush.msra.mxu0 %v4293
          %4361 = vmatpush.msra.mxu0 %v4292
          %4362 = vmatpush.msra.mxu0 %v4291
          %4363 = vmatpush.msra.mxu0 %v4290
          %4364 = vmatpush.msra.mxu0 %v4289
          %4365 = vmatmul.f32.gmra.mxu0 %v4302
          %v4366 = vpop.f32.mrf.mxu0
          %v4367 = vadd.f32 %v4299, %v4366
          %4368 = vmatmul.f32.gmra.mxu0 %v4305
          %v4369 = vpop.f32.mrf.mxu0
          %v4370 = vadd.f32 %v4299, %v4369
          %4371 = vmatmul.f32.gmra.mxu0 %v4308
          %v4372 = vpop.f32.mrf.mxu0
          %v4373 = vadd.f32 %v4299, %v4372
          %4374 = vmatmul.f32.gmra.mxu0 %v4311
          %v4375 = vpop.f32.mrf.mxu0
          %v4376 = vadd.f32 %v4299, %v4375
          %4377 = vmatmul.f32.gmra.mxu0 %v4314
          %v4378 = vpop.f32.mrf.mxu0
          %v4379 = vadd.f32 %v4299, %v4378
          %4380 = vmatmul.f32.gmra.mxu0 %v4317
          %v4381 = vpop.f32.mrf.mxu0
          %v4382 = vadd.f32 %v4299, %v4381
          %4383 = vmatmul.f32.gmra.mxu0 %v4320
          %v4384 = vpop.f32.mrf.mxu0
          %v4385 = vadd.f32 %v4299, %v4384
          %4386 = vmatmul.f32.gmra.mxu0 %v4323
          %v4387 = vpop.f32.mrf.mxu0
          %v4388 = vadd.f32 %v4299, %v4387
          %4389 = vmatmul.f32.gmra.mxu0 %v4326
          %v4390 = vpop.f32.mrf.mxu0
          %v4391 = vadd.f32 %v4299, %v4390
          %4392 = vmatmul.f32.gmra.mxu0 %v4329
          %v4393 = vpop.f32.mrf.mxu0
          %v4394 = vadd.f32 %v4299, %v4393
          %4395 = vmatmul.f32.gmra.mxu0 %v4332
          %v4396 = vpop.f32.mrf.mxu0
          %v4397 = vadd.f32 %v4299, %v4396
          %4398 = vmatmul.f32.gmra.mxu0 %v4335
          %v4399 = vpop.f32.mrf.mxu0
          %v4400 = vadd.f32 %v4299, %v4399
          %4401 = vmatmul.f32.gmra.mxu0 %v4338
          %v4402 = vpop.f32.mrf.mxu0
          %v4403 = vadd.f32 %v4299, %v4402
          %4404 = vmatmul.f32.gmra.mxu0 %v4341
          %v4405 = vpop.f32.mrf.mxu0
          %v4406 = vadd.f32 %v4299, %v4405
          %4407 = vmatmul.f32.gmra.mxu0 %v4344
          %v4408 = vpop.f32.mrf.mxu0
          %v4409 = vadd.f32 %v4299, %v4408
          %4410 = vmatmul.f32.gmra.mxu0 %v4347
          %v4411 = vpop.f32.mrf.mxu0
          %v4412 = vadd.f32 %v4299, %v4411
          %4413 = vdwg.mxu0
          %v4414 = vadd.f32 %v2127, %v4367
          %v4415 = vadd.f32 %v2128, %v4370
          %v4416 = vadd.f32 %v2129, %v4373
          %v4417 = vadd.f32 %v2130, %v4376
          %v4418 = vadd.f32 %v2131, %v4379
          %v4419 = vadd.f32 %v2132, %v4382
          %v4420 = vadd.f32 %v2133, %v4385
          %v4421 = vadd.f32 %v2134, %v4388
          %v4422 = vadd.f32 %v2135, %v4391
          %v4423 = vadd.f32 %v2136, %v4394
          %v4424 = vadd.f32 %v2137, %v4397
          %v4425 = vadd.f32 %v2138, %v4400
          %v4426 = vadd.f32 %v2139, %v4403
          %v4427 = vadd.f32 %v2140, %v4406
          %v4428 = vadd.f32 %v2141, %v4409
          %v4429 = vadd.f32 %v2142, %v4412
          %v4430 = vsub.f32 %v4414, %v2143
          %v4431 = vsub.f32 %v4415, %v2144
          %v4432 = vsub.f32 %v4416, %v2145
          %v4433 = vsub.f32 %v4417, %v2146
          %v4434 = vsub.f32 %v4418, %v2147
          %v4435 = vsub.f32 %v4419, %v2148
          %v4436 = vsub.f32 %v4420, %v2149
          %v4437 = vsub.f32 %v4421, %v2150
          %v4438 = vsub.f32 %v4422, %v2151
          %v4439 = vsub.f32 %v4423, %v2152
          %v4440 = vsub.f32 %v4424, %v2153
          %v4441 = vsub.f32 %v4425, %v2154
          %v4442 = vsub.f32 %v4426, %v2155
          %v4443 = vsub.f32 %v4427, %v2156
          %v4444 = vsub.f32 %v4428, %v2157
          %v4445 = vsub.f32 %v4429, %v2158
          %s4446 = smul.u32 %s2106, 128
          %s4447 = scalar_lea.vmem %s894, %s4446
          %4448 = vst.msk [vmem:[%s4447] sm:$0xff] %vm933, %v4430
          %4449 = vst.msk [vmem:[%s4447 + $0x8] sm:$0xff] %vm933, %v4431
          %4450 = vst.msk [vmem:[%s4447 + $0x10] sm:$0xff] %vm933, %v4432
          %4451 = vst.msk [vmem:[%s4447 + $0x18] sm:$0xff] %vm933, %v4433
          %4452 = vst.msk [vmem:[%s4447 + $0x20] sm:$0xff] %vm933, %v4434
          %4453 = vst.msk [vmem:[%s4447 + $0x28] sm:$0xff] %vm933, %v4435
          %4454 = vst.msk [vmem:[%s4447 + $0x30] sm:$0xff] %vm933, %v4436
          %4455 = vst.msk [vmem:[%s4447 + $0x38] sm:$0xff] %vm933, %v4437
          %4456 = vst.msk [vmem:[%s4447 + $0x40] sm:$0xff] %vm933, %v4438
          %4457 = vst.msk [vmem:[%s4447 + $0x48] sm:$0xff] %vm933, %v4439
          %4458 = vst.msk [vmem:[%s4447 + $0x50] sm:$0xff] %vm933, %v4440
          %4459 = vst.msk [vmem:[%s4447 + $0x58] sm:$0xff] %vm933, %v4441
          %4460 = vst.msk [vmem:[%s4447 + $0x60] sm:$0xff] %vm933, %v4442
          %4461 = vst.msk [vmem:[%s4447 + $0x68] sm:$0xff] %vm933, %v4443
          %4462 = vst.msk [vmem:[%s4447 + $0x70] sm:$0xff] %vm933, %v4444
          %4463 = vst.msk [vmem:[%s4447 + $0x78] sm:$0xff] %vm933, %v4445
        $region161: #{pt_rsf_forward.1} parent=107 // loop_footer
          %s2110 = sadd.s32 1, %s2106
        $region162: #{pt_rsf_forward.1} parent=107 // loop_footer_branch
          %2105 = sbr.rel target = $region158
        $region163: #{pt_rsf_forward.1} parent=107 // loop_exit
          _
        %p4464 = scmp.lt.s32.totalorder %s40, 1
        %s4465 = scalar_select %p4464, %s40, 1
        %s4466 = smul.addr %s4465, 192
        %s4467 = smul.addr %s4466, 8
        %s4468 = scalar_lea.vmem %s22, %s4467
        // Predicated region
        $region164: #{pt_rsf_forward.1} parent=107 // pred_check
          %p4469 = pneg %p530
        $region165: #{pt_rsf_forward.1} parent=107 // pred_check_branch
          %4471 = sbr.rel (%p4469) target = $region167
        $region166: #{pt_rsf_forward.1} parent=107 // pred_region
          _
        $region167: #{pt_rsf_forward.1} parent=107 // pred_fallthru
          _
      $region108: #{pt_rsf_forward.1} parent=5 // pred_fallthru
        _
      %p4472 = scmp.le.s32.totalorder 2, %s35
      // Predicated region
      $region168: #{pt_rsf_forward.1} parent=5 // pred_check
        %p4473 = pneg %p4472
      $region169: #{pt_rsf_forward.1} parent=5 // pred_check_branch
        %4475 = sbr.rel (%p4473) target = $region171
      $region170: #{pt_rsf_forward.1} parent=5 // pred_region
        %s4476 = ssub.s32 %s35, 2
        // Predicated region
        $region172: #{pt_rsf_forward.1} parent=170 // pred_check
          %p4477 = pneg %p536
        $region173: #{pt_rsf_forward.1} parent=170 // pred_check_branch
          %4479 = sbr.rel (%p4477) target = $region175
        $region174: #{pt_rsf_forward.1} parent=170 // pred_region
          %p4480 = scmp.lt.s32.totalorder %s41, 1
          %s4481 = scalar_select %p4480, %s41, 1
          %s4482 = smul.addr %s4481, 192
          %s4483 = smul.addr %s4482, 8
          %s4484 = scalar_lea.vmem %s22, %s4483
        $region175: #{pt_rsf_forward.1} parent=170 // pred_fallthru
          _
      $region171: #{pt_rsf_forward.1} parent=5 // pred_fallthru
        _
    $region6: #{pt_rsf_forward.1} parent=1 // loop_footer
      %s39 = sadd.s32 1, %s35
    $region7: #{pt_rsf_forward.1} parent=1 // loop_footer_branch
      %34 = sbr.rel target = $region3
    $region8: #{pt_rsf_forward.1} parent=1 // loop_exit
      _
    %4485 = vsyncpa [#allocation5], 1
    %s4486 = scalar_lea.sflag [#allocation5], 1
    %4487 = vsyncpa %s4486, 1
    %4488 = vsyncpa [#allocation7], 1
    %4489 = vsyncpa [#allocation10], 1
    %4490 = vsyncpa [#allocation13], 1
    %4491 = vsyncpa [#allocation16], 1
    %4492 = vsyncpa [#allocation19], 1
    %4493 = vsyncpa [#allocation22], 1

</llo_original>
